<compile_context>
chip_gen: v5e
topology: v5e:2x2
jax: 0.10.0
libtpu: 0.0.40
codegen_flags: <defaults>
</compile_context>

<pallas_src>
import numpy as np
import jax
import jax.numpy as jnp
from jax.experimental import pallas as pl
from jax.experimental.pallas import tpu as pltpu

# ---- model dimensions (fixed by the MNISTNet / LocallyConnectedLayer spec) ----
B = 2             # small test batch
C_IN = 1
H = W_IN = 28     # input spatial size implied by output_size=(24,24), kernel=5, stride=1
K = 5
STRIDE = 1
OH = OW = 24
OC = 10
S = OH * OW                 # 576  (output spatial positions, lane axis)
P = C_IN * K * K            # 25   (receptive-field taps, accumulation axis)
FC1_IN = OC * S             # 5760
FC1_OUT = 128
FC2_OUT = 10


# ---------------------------------------------------------------------------
# Precomputed gather indices for patch extraction (single gather, no 6-D transpose)
# ---------------------------------------------------------------------------
def _make_patch_indices():
    c = np.arange(C_IN).reshape(C_IN, 1, 1, 1, 1)
    kh = np.arange(K).reshape(1, K, 1, 1, 1)
    kw = np.arange(K).reshape(1, 1, K, 1, 1)
    i = np.arange(OH).reshape(1, 1, 1, OH, 1)
    j = np.arange(OW).reshape(1, 1, 1, 1, OW)
    idx = c * (H * W_IN) + (i * STRIDE + kh) * W_IN + (j * STRIDE + kw)
    return idx.reshape(P, S).astype(np.int32)          # [(c,kh,kw), (i,j)]

_PATCH_IDX = _make_patch_indices()


def extract_patches(x):
    """x: (B, C, H, W) NCHW -> (B, P, S) via one gather with precomputed flat indices."""
    # TODO(synk): the gather stays in XLA glue; doing it in-kernel would need 25 unaligned 2-D
    # shifted slices of the raw image and a (B,OC,24,24) accumulator that blows vreg pressure.
    return x.reshape(x.shape[0], C_IN * H * W_IN)[:, _PATCH_IDX]


# ---------------------------------------------------------------------------
# Fused Pallas kernel: locally-connected layer + ReLU + fc1 + ReLU + fc2
# Grid is over the batch; each step handles one example.
# ---------------------------------------------------------------------------
def _fused_kernel(patches_ref, wlc_ref, blc_ref, w1_ref, b1_ref, w2_ref, b2_ref,
                  lc_ref, out_ref):
    # patches_ref: (1, P, S) f32      wlc_ref: (P, OC, S) f32     blc_ref: (OC, S) f32
    # w1_ref:      (OC, S, FC1_OUT) bf16   b1_ref: (1, FC1_OUT) f32
    # w2_ref:      (FC1_OUT, FC2_OUT) f32  b2_ref: (1, FC2_OUT) f32
    # lc_ref:      (1, OC, S) f32  (pre-ReLU; == LocallyConnectedLayer.forward output)
    # out_ref:     (1, 1, FC2_OUT) f32

    # ---- locally connected layer: acc[oc, s] = b[oc, s] + sum_t p[t, s] * w[t, oc, s] ----
    # Running accumulator over the 25 taps; no (OC, P, S) intermediate is ever materialized.
    acc = blc_ref[...]                                       # (OC, S) f32
    for t in range(P):                                       # fully unrolled (25 taps)
        acc = acc + patches_ref[0, t, :] * wlc_ref[t]        # (S,) * (OC, S) -> (OC, S)
    lc_ref[0] = acc                                          # spec module output (pre-ReLU)

    # ---- fc1 (+ReLU) consumed straight from registers ----
    # fc1 is computed as OC small MXU dots against W1 pre-reshaped to (OC, S, FC1_OUT); this
    # avoids an in-kernel (OC, S) -> (OC*S,) lane relayout while matching the NCHW flatten order.
    h = b1_ref[...]                                          # (1, FC1_OUT) f32
    for oc in range(OC):                                     # fully unrolled (10 channels)
        a_oc = jnp.maximum(acc[oc], 0.0).astype(jnp.bfloat16)            # (S,)
        h = h + jnp.dot(a_oc[None, :], w1_ref[oc],
                        preferred_element_type=jnp.float32)              # (1, FC1_OUT)
    h = jnp.maximum(h, 0.0)

    # ---- fc2 ----
    out_ref[0] = jnp.dot(h, w2_ref[...],
                         preferred_element_type=jnp.float32) + b2_ref[...]


def mnist_fused(patches, wlc, blc, w1, b1, w2, b2):
    Bb = patches.shape[0]
    lc, logits = pl.pallas_call(
        _fused_kernel,
        out_shape=(jax.ShapeDtypeStruct((Bb, OC, S), jnp.float32),
                   jax.ShapeDtypeStruct((Bb, 1, FC2_OUT), jnp.float32)),
        grid=(Bb,),
        in_specs=[
            pl.BlockSpec((1, P, S), lambda b: (b, 0, 0)),            # patches (per example)
            pl.BlockSpec((P, OC, S), lambda b: (0, 0, 0)),           # LC weights (resident)
            pl.BlockSpec((OC, S), lambda b: (0, 0)),                 # LC bias
            pl.BlockSpec((OC, S, FC1_OUT), lambda b: (0, 0, 0)),     # fc1 weights (bf16)
            pl.BlockSpec((1, FC1_OUT), lambda b: (0, 0)),            # fc1 bias
            pl.BlockSpec((FC1_OUT, FC2_OUT), lambda b: (0, 0)),      # fc2 weights
            pl.BlockSpec((1, FC2_OUT), lambda b: (0, 0)),            # fc2 bias
        ],
        out_specs=[
            pl.BlockSpec((1, OC, S), lambda b: (b, 0, 0)),           # LC pre-ReLU output
            pl.BlockSpec((1, 1, FC2_OUT), lambda b: (b, 0, 0)),      # logits
        ],
        # no vmem_limit_bytes: footprint < 4 MiB, default scoped limit is fine on v5e/v6e/v7x
        compiler_params=pltpu.CompilerParams(dimension_semantics=("parallel",)),
    )(patches, wlc, blc, w1, b1, w2, b2)
    return lc, logits.reshape(Bb, FC2_OUT)


# ---------------------------------------------------------------------------
# One-time parameter re-layout (hoisted out of the per-call forward)
# ---------------------------------------------------------------------------
def prepare_params(params):
    lc_w, lc_b, fc1_w, fc1_b, fc2_w, fc2_b = params
    # (OH, OW, C, K, K, OC) -> (P=(c,kh,kw), OC, S=(i,j)) matching the patch-gather ordering
    wlc = jnp.transpose(lc_w, (2, 3, 4, 5, 0, 1)).reshape(P, OC, S).astype(jnp.float32)
    blc = jnp.transpose(lc_b, (2, 0, 1)).reshape(OC, S).astype(jnp.float32)
    w1 = fc1_w.reshape(OC, S, FC1_OUT).astype(jnp.bfloat16)   # bf16 storage, f32 accumulate
    b1 = fc1_b.reshape(1, FC1_OUT).astype(jnp.float32)
    w2 = fc2_w.astype(jnp.float32)
    b2 = fc2_b.reshape(1, FC2_OUT).astype(jnp.float32)
    return (wlc, blc, w1, b1, w2, b2)


@jax.jit
def mnist_net_forward(x, prep):
    wlc, blc, w1, b1, w2, b2 = prep
    patches = extract_patches(x)                              # (B, P, S), one gather
    lc_flat, logits = mnist_fused(patches, wlc, blc, w1, b1, w2, b2)
    lc = lc_flat.reshape(x.shape[0], OC, OH, OW)              # LocallyConnectedLayer output (NCHW)
    return lc, logits


# ---------------------------------------------------------------------------
# Pure-JAX references
# ---------------------------------------------------------------------------
def reference_locally_connected(x, lc_w, lc_b):
    """Mirrors the PyTorch triple loop: out[b,k,i,j] = sum_{c,kh,kw} x[b,c,i+kh,j+kw]*W[i,j,c,kh,kw,k] + b[i,j,k]."""
    idx_h = jnp.arange(OH)[:, None] * STRIDE + jnp.arange(K)[None, :]
    idx_w = jnp.arange(OW)[:, None] * STRIDE + jnp.arange(K)[None, :]
    p = x[:, :, idx_h][:, :, :, :, idx_w]                     # (B, C, OH, K, OW, K) = b c i x j y
    out = jnp.einsum("bcixjy,ijcxyk->bkij", p, lc_w,
                     precision=jax.lax.Precision.HIGHEST)
    return out + jnp.transpose(lc_b, (2, 0, 1))[None]


def reference_forward(x, params):
    lc_w, lc_b, fc1_w, fc1_b, fc2_w, fc2_b = params
    lc = reference_locally_connected(x, lc_w, lc_b)           # (B, OC, OH, OW), pre-ReLU
    a = jnp.maximum(lc, 0.0).reshape(x.shape[0], FC1_IN)
    # fc1 weights are stored in bf16 by the kernel (f32 accumulate) -> mirror that storage here.
    h = jnp.dot(a.astype(jnp.bfloat16), fc1_w.astype(jnp.bfloat16),
                preferred_element_type=jnp.float32) + fc1_b
    h = jnp.maximum(h, 0.0)
    logits = jnp.dot(h, fc2_w, precision=jax.lax.Precision.HIGHEST) + fc2_b
    return lc, logits


def init_params(key):
    k1, k2, k3, k4, k5, k6 = jax.random.split(key, 6)
    lc_w = jax.random.normal(k1, (OH, OW, C_IN, K, K, OC), jnp.float32)   # torch.randn init
    lc_b = jax.random.normal(k2, (OH, OW, OC), jnp.float32)               # torch.randn init
    fc1_w = jax.random.normal(k3, (FC1_IN, FC1_OUT), jnp.float32) / jnp.sqrt(FC1_IN)
    fc1_b = jax.random.normal(k4, (FC1_OUT,), jnp.float32) / jnp.sqrt(FC1_IN)
    fc2_w = jax.random.normal(k5, (FC1_OUT, FC2_OUT), jnp.float32) / jnp.sqrt(FC1_OUT)
    fc2_b = jax.random.normal(k6, (FC2_OUT,), jnp.float32) / jnp.sqrt(FC1_OUT)
    return (lc_w, lc_b, fc1_w, fc1_b, fc2_w, fc2_b)


if __name__ == "__main__":
    key = jax.random.PRNGKey(0)
    kx, kp = jax.random.split(key)
    x = jax.random.normal(kx, (B, C_IN, H, W_IN), jnp.float32)   # NCHW, like PyTorch MNIST
    params = init_params(kp)
    prep = prepare_params(params)        # one-time param re-layout (hoisted out of the forward)

    lc_out, logits = mnist_net_forward(x, prep)
    lc_out, logits = jax.block_until_ready((lc_out, logits))
    assert lc_out.shape == (B, OC, OH, OW), lc_out.shape
    assert logits.shape == (B, FC2_OUT), logits.shape

    lc_ref, logits_ref = reference_forward(x, params)
    assert jnp.allclose(lc_out, lc_ref, rtol=1e-3, atol=1e-3), \
        f"LC mismatch, max abs err = {float(jnp.max(jnp.abs(lc_out - lc_ref)))}"
    assert jnp.allclose(logits, logits_ref, rtol=2e-2, atol=2e-2), \
        f"logits mismatch, max abs err = {float(jnp.max(jnp.abs(logits - logits_ref)))}"

    print("KERNEL_OK")
</pallas_src>

<mosaic_0001>
module attributes {stable_mosaic.version = 11 : i64} {
  func.func @_fused_kernel(%arg0: i32, %arg1: memref<1x25x576xf32, #tpu.memory_space<vmem>>, %arg2: memref<25x10x576xf32, #tpu.memory_space<vmem>>, %arg3: memref<10x576xf32, #tpu.memory_space<vmem>>, %arg4: memref<10x576x128xbf16, #tpu.memory_space<vmem>>, %arg5: memref<1x128xf32, #tpu.memory_space<vmem>>, %arg6: memref<128x10xf32, #tpu.memory_space<vmem>>, %arg7: memref<1x10xf32, #tpu.memory_space<vmem>>, %arg8: memref<1x10x576xf32, #tpu.memory_space<vmem>>, %arg9: memref<1x1x10xf32, #tpu.memory_space<vmem>>) attributes {dimension_semantics = [#tpu.dimension_semantics<parallel>], iteration_bounds = array<i64: 2>, scalar_prefetch = 0 : i64, scratch_operands = 0 : i64, tpu.core_type = #tpu.core_type<tc>, window_params = [{transform_indices = @transform_0, window_bounds = array<i64: 1, 25, 576>}, {pipeline_mode = #tpu.pipeline_mode<synchronous>, transform_indices = @transform_1, window_bounds = array<i64: 25, 10, 576>}, {pipeline_mode = #tpu.pipeline_mode<synchronous>, transform_indices = @transform_2, window_bounds = array<i64: 10, 576>}, {pipeline_mode = #tpu.pipeline_mode<synchronous>, transform_indices = @transform_3, window_bounds = array<i64: 10, 576, 128>}, {pipeline_mode = #tpu.pipeline_mode<synchronous>, transform_indices = @transform_4, window_bounds = array<i64: 1, 128>}, {pipeline_mode = #tpu.pipeline_mode<synchronous>, transform_indices = @transform_5, window_bounds = array<i64: 128, 10>}, {pipeline_mode = #tpu.pipeline_mode<synchronous>, transform_indices = @transform_6, window_bounds = array<i64: 1, 10>}, {transform_indices = @transform_7, window_bounds = array<i64: 1, 10, 576>}, {transform_indices = @transform_8, window_bounds = array<i64: 1, 1, 10>}]} {
    %c0 = arith.constant 0 : index
    %c0_0 = arith.constant 0 : index
    %0 = vector.load %arg3[%c0, %c0_0] : memref<10x576xf32, #tpu.memory_space<vmem>>, vector<10x576xf32>
    %c0_1 = arith.constant 0 : index
    %c0_2 = arith.constant 0 : index
    %c0_3 = arith.constant 0 : index
    %1 = vector.load %arg1[%c0_1, %c0_2, %c0_3] : memref<1x25x576xf32, #tpu.memory_space<vmem>>, vector<1x1x576xf32>
    %2 = vector.shape_cast %1 : vector<1x1x576xf32> to vector<576xf32>
    %c0_4 = arith.constant 0 : index
    %c0_5 = arith.constant 0 : index
    %c0_6 = arith.constant 0 : index
    %3 = vector.load %arg2[%c0_4, %c0_5, %c0_6] : memref<25x10x576xf32, #tpu.memory_space<vmem>>, vector<1x10x576xf32>
    %4 = vector.shape_cast %3 : vector<1x10x576xf32> to vector<10x576xf32>
    %5 = vector.shape_cast %2 : vector<576xf32> to vector<1x576xf32>
    %6 = vector.broadcast %5 : vector<1x576xf32> to vector<10x576xf32>
    %7 = arith.mulf %6, %4 : vector<10x576xf32>
    %8 = arith.addf %0, %7 : vector<10x576xf32>
    %c0_7 = arith.constant 0 : index
    %c1 = arith.constant 1 : index
    %c0_8 = arith.constant 0 : index
    %9 = vector.load %arg1[%c0_7, %c1, %c0_8] : memref<1x25x576xf32, #tpu.memory_space<vmem>>, vector<1x1x576xf32>
    %10 = vector.shape_cast %9 : vector<1x1x576xf32> to vector<576xf32>
    %c1_9 = arith.constant 1 : index
    %c0_10 = arith.constant 0 : index
    %c0_11 = arith.constant 0 : index
    %11 = vector.load %arg2[%c1_9, %c0_10, %c0_11] : memref<25x10x576xf32, #tpu.memory_space<vmem>>, vector<1x10x576xf32>
    %12 = vector.shape_cast %11 : vector<1x10x576xf32> to vector<10x576xf32>
    %13 = vector.shape_cast %10 : vector<576xf32> to vector<1x576xf32>
    %14 = vector.broadcast %13 : vector<1x576xf32> to vector<10x576xf32>
    %15 = arith.mulf %14, %12 : vector<10x576xf32>
    %16 = arith.addf %8, %15 : vector<10x576xf32>
    %c0_12 = arith.constant 0 : index
    %c2 = arith.constant 2 : index
    %c0_13 = arith.constant 0 : index
    %17 = vector.load %arg1[%c0_12, %c2, %c0_13] : memref<1x25x576xf32, #tpu.memory_space<vmem>>, vector<1x1x576xf32>
    %18 = vector.shape_cast %17 : vector<1x1x576xf32> to vector<576xf32>
    %c2_14 = arith.constant 2 : index
    %c0_15 = arith.constant 0 : index
    %c0_16 = arith.constant 0 : index
    %19 = vector.load %arg2[%c2_14, %c0_15, %c0_16] : memref<25x10x576xf32, #tpu.memory_space<vmem>>, vector<1x10x576xf32>
    %20 = vector.shape_cast %19 : vector<1x10x576xf32> to vector<10x576xf32>
    %21 = vector.shape_cast %18 : vector<576xf32> to vector<1x576xf32>
    %22 = vector.broadcast %21 : vector<1x576xf32> to vector<10x576xf32>
    %23 = arith.mulf %22, %20 : vector<10x576xf32>
    %24 = arith.addf %16, %23 : vector<10x576xf32>
    %c0_17 = arith.constant 0 : index
    %c3 = arith.constant 3 : index
    %c0_18 = arith.constant 0 : index
    %25 = vector.load %arg1[%c0_17, %c3, %c0_18] : memref<1x25x576xf32, #tpu.memory_space<vmem>>, vector<1x1x576xf32>
    %26 = vector.shape_cast %25 : vector<1x1x576xf32> to vector<576xf32>
    %c3_19 = arith.constant 3 : index
    %c0_20 = arith.constant 0 : index
    %c0_21 = arith.constant 0 : index
    %27 = vector.load %arg2[%c3_19, %c0_20, %c0_21] : memref<25x10x576xf32, #tpu.memory_space<vmem>>, vector<1x10x576xf32>
    %28 = vector.shape_cast %27 : vector<1x10x576xf32> to vector<10x576xf32>
    %29 = vector.shape_cast %26 : vector<576xf32> to vector<1x576xf32>
    %30 = vector.broadcast %29 : vector<1x576xf32> to vector<10x576xf32>
    %31 = arith.mulf %30, %28 : vector<10x576xf32>
    %32 = arith.addf %24, %31 : vector<10x576xf32>
    %c0_22 = arith.constant 0 : index
    %c4 = arith.constant 4 : index
    %c0_23 = arith.constant 0 : index
    %33 = vector.load %arg1[%c0_22, %c4, %c0_23] : memref<1x25x576xf32, #tpu.memory_space<vmem>>, vector<1x1x576xf32>
    %34 = vector.shape_cast %33 : vector<1x1x576xf32> to vector<576xf32>
    %c4_24 = arith.constant 4 : index
    %c0_25 = arith.constant 0 : index
    %c0_26 = arith.constant 0 : index
    %35 = vector.load %arg2[%c4_24, %c0_25, %c0_26] : memref<25x10x576xf32, #tpu.memory_space<vmem>>, vector<1x10x576xf32>
    %36 = vector.shape_cast %35 : vector<1x10x576xf32> to vector<10x576xf32>
    %37 = vector.shape_cast %34 : vector<576xf32> to vector<1x576xf32>
    %38 = vector.broadcast %37 : vector<1x576xf32> to vector<10x576xf32>
    %39 = arith.mulf %38, %36 : vector<10x576xf32>
    %40 = arith.addf %32, %39 : vector<10x576xf32>
    %c0_27 = arith.constant 0 : index
    %c5 = arith.constant 5 : index
    %c0_28 = arith.constant 0 : index
    %41 = vector.load %arg1[%c0_27, %c5, %c0_28] : memref<1x25x576xf32, #tpu.memory_space<vmem>>, vector<1x1x576xf32>
    %42 = vector.shape_cast %41 : vector<1x1x576xf32> to vector<576xf32>
    %c5_29 = arith.constant 5 : index
    %c0_30 = arith.constant 0 : index
    %c0_31 = arith.constant 0 : index
    %43 = vector.load %arg2[%c5_29, %c0_30, %c0_31] : memref<25x10x576xf32, #tpu.memory_space<vmem>>, vector<1x10x576xf32>
    %44 = vector.shape_cast %43 : vector<1x10x576xf32> to vector<10x576xf32>
    %45 = vector.shape_cast %42 : vector<576xf32> to vector<1x576xf32>
    %46 = vector.broadcast %45 : vector<1x576xf32> to vector<10x576xf32>
    %47 = arith.mulf %46, %44 : vector<10x576xf32>
    %48 = arith.addf %40, %47 : vector<10x576xf32>
    %c0_32 = arith.constant 0 : index
    %c6 = arith.constant 6 : index
    %c0_33 = arith.constant 0 : index
    %49 = vector.load %arg1[%c0_32, %c6, %c0_33] : memref<1x25x576xf32, #tpu.memory_space<vmem>>, vector<1x1x576xf32>
    %50 = vector.shape_cast %49 : vector<1x1x576xf32> to vector<576xf32>
    %c6_34 = arith.constant 6 : index
    %c0_35 = arith.constant 0 : index
    %c0_36 = arith.constant 0 : index
    %51 = vector.load %arg2[%c6_34, %c0_35, %c0_36] : memref<25x10x576xf32, #tpu.memory_space<vmem>>, vector<1x10x576xf32>
    %52 = vector.shape_cast %51 : vector<1x10x576xf32> to vector<10x576xf32>
    %53 = vector.shape_cast %50 : vector<576xf32> to vector<1x576xf32>
    %54 = vector.broadcast %53 : vector<1x576xf32> to vector<10x576xf32>
    %55 = arith.mulf %54, %52 : vector<10x576xf32>
    %56 = arith.addf %48, %55 : vector<10x576xf32>
    %c0_37 = arith.constant 0 : index
    %c7 = arith.constant 7 : index
    %c0_38 = arith.constant 0 : index
    %57 = vector.load %arg1[%c0_37, %c7, %c0_38] : memref<1x25x576xf32, #tpu.memory_space<vmem>>, vector<1x1x576xf32>
    %58 = vector.shape_cast %57 : vector<1x1x576xf32> to vector<576xf32>
    %c7_39 = arith.constant 7 : index
    %c0_40 = arith.constant 0 : index
    %c0_41 = arith.constant 0 : index
    %59 = vector.load %arg2[%c7_39, %c0_40, %c0_41] : memref<25x10x576xf32, #tpu.memory_space<vmem>>, vector<1x10x576xf32>
    %60 = vector.shape_cast %59 : vector<1x10x576xf32> to vector<10x576xf32>
    %61 = vector.shape_cast %58 : vector<576xf32> to vector<1x576xf32>
    %62 = vector.broadcast %61 : vector<1x576xf32> to vector<10x576xf32>
    %63 = arith.mulf %62, %60 : vector<10x576xf32>
    %64 = arith.addf %56, %63 : vector<10x576xf32>
    %c0_42 = arith.constant 0 : index
    %c8 = arith.constant 8 : index
    %c0_43 = arith.constant 0 : index
    %65 = vector.load %arg1[%c0_42, %c8, %c0_43] : memref<1x25x576xf32, #tpu.memory_space<vmem>>, vector<1x1x576xf32>
    %66 = vector.shape_cast %65 : vector<1x1x576xf32> to vector<576xf32>
    %c8_44 = arith.constant 8 : index
    %c0_45 = arith.constant 0 : index
    %c0_46 = arith.constant 0 : index
    %67 = vector.load %arg2[%c8_44, %c0_45, %c0_46] : memref<25x10x576xf32, #tpu.memory_space<vmem>>, vector<1x10x576xf32>
    %68 = vector.shape_cast %67 : vector<1x10x576xf32> to vector<10x576xf32>
    %69 = vector.shape_cast %66 : vector<576xf32> to vector<1x576xf32>
    %70 = vector.broadcast %69 : vector<1x576xf32> to vector<10x576xf32>
    %71 = arith.mulf %70, %68 : vector<10x576xf32>
    %72 = arith.addf %64, %71 : vector<10x576xf32>
    %c0_47 = arith.constant 0 : index
    %c9 = arith.constant 9 : index
    %c0_48 = arith.constant 0 : index
    %73 = vector.load %arg1[%c0_47, %c9, %c0_48] : memref<1x25x576xf32, #tpu.memory_space<vmem>>, vector<1x1x576xf32>
    %74 = vector.shape_cast %73 : vector<1x1x576xf32> to vector<576xf32>
    %c9_49 = arith.constant 9 : index
    %c0_50 = arith.constant 0 : index
    %c0_51 = arith.constant 0 : index
    %75 = vector.load %arg2[%c9_49, %c0_50, %c0_51] : memref<25x10x576xf32, #tpu.memory_space<vmem>>, vector<1x10x576xf32>
    %76 = vector.shape_cast %75 : vector<1x10x576xf32> to vector<10x576xf32>
    %77 = vector.shape_cast %74 : vector<576xf32> to vector<1x576xf32>
    %78 = vector.broadcast %77 : vector<1x576xf32> to vector<10x576xf32>
    %79 = arith.mulf %78, %76 : vector<10x576xf32>
    %80 = arith.addf %72, %79 : vector<10x576xf32>
    %c0_52 = arith.constant 0 : index
    %c10 = arith.constant 10 : index
    %c0_53 = arith.constant 0 : index
    %81 = vector.load %arg1[%c0_52, %c10, %c0_53] : memref<1x25x576xf32, #tpu.memory_space<vmem>>, vector<1x1x576xf32>
    %82 = vector.shape_cast %81 : vector<1x1x576xf32> to vector<576xf32>
    %c10_54 = arith.constant 10 : index
    %c0_55 = arith.constant 0 : index
    %c0_56 = arith.constant 0 : index
    %83 = vector.load %arg2[%c10_54, %c0_55, %c0_56] : memref<25x10x576xf32, #tpu.memory_space<vmem>>, vector<1x10x576xf32>
    %84 = vector.shape_cast %83 : vector<1x10x576xf32> to vector<10x576xf32>
    %85 = vector.shape_cast %82 : vector<576xf32> to vector<1x576xf32>
    %86 = vector.broadcast %85 : vector<1x576xf32> to vector<10x576xf32>
    %87 = arith.mulf %86, %84 : vector<10x576xf32>
    %88 = arith.addf %80, %87 : vector<10x576xf32>
    %c0_57 = arith.constant 0 : index
    %c11 = arith.constant 11 : index
    %c0_58 = arith.constant 0 : index
    %89 = vector.load %arg1[%c0_57, %c11, %c0_58] : memref<1x25x576xf32, #tpu.memory_space<vmem>>, vector<1x1x576xf32>
    %90 = vector.shape_cast %89 : vector<1x1x576xf32> to vector<576xf32>
    %c11_59 = arith.constant 11 : index
    %c0_60 = arith.constant 0 : index
    %c0_61 = arith.constant 0 : index
    %91 = vector.load %arg2[%c11_59, %c0_60, %c0_61] : memref<25x10x576xf32, #tpu.memory_space<vmem>>, vector<1x10x576xf32>
    %92 = vector.shape_cast %91 : vector<1x10x576xf32> to vector<10x576xf32>
    %93 = vector.shape_cast %90 : vector<576xf32> to vector<1x576xf32>
    %94 = vector.broadcast %93 : vector<1x576xf32> to vector<10x576xf32>
    %95 = arith.mulf %94, %92 : vector<10x576xf32>
    %96 = arith.addf %88, %95 : vector<10x576xf32>
    %c0_62 = arith.constant 0 : index
    %c12 = arith.constant 12 : index
    %c0_63 = arith.constant 0 : index
    %97 = vector.load %arg1[%c0_62, %c12, %c0_63] : memref<1x25x576xf32, #tpu.memory_space<vmem>>, vector<1x1x576xf32>
    %98 = vector.shape_cast %97 : vector<1x1x576xf32> to vector<576xf32>
    %c12_64 = arith.constant 12 : index
    %c0_65 = arith.constant 0 : index
    %c0_66 = arith.constant 0 : index
    %99 = vector.load %arg2[%c12_64, %c0_65, %c0_66] : memref<25x10x576xf32, #tpu.memory_space<vmem>>, vector<1x10x576xf32>
    %100 = vector.shape_cast %99 : vector<1x10x576xf32> to vector<10x576xf32>
    %101 = vector.shape_cast %98 : vector<576xf32> to vector<1x576xf32>
    %102 = vector.broadcast %101 : vector<1x576xf32> to vector<10x576xf32>
    %103 = arith.mulf %102, %100 : vector<10x576xf32>
    %104 = arith.addf %96, %103 : vector<10x576xf32>
    %c0_67 = arith.constant 0 : index
    %c13 = arith.constant 13 : index
    %c0_68 = arith.constant 0 : index
    %105 = vector.load %arg1[%c0_67, %c13, %c0_68] : memref<1x25x576xf32, #tpu.memory_space<vmem>>, vector<1x1x576xf32>
    %106 = vector.shape_cast %105 : vector<1x1x576xf32> to vector<576xf32>
    %c13_69 = arith.constant 13 : index
    %c0_70 = arith.constant 0 : index
    %c0_71 = arith.constant 0 : index
    %107 = vector.load %arg2[%c13_69, %c0_70, %c0_71] : memref<25x10x576xf32, #tpu.memory_space<vmem>>, vector<1x10x576xf32>
    %108 = vector.shape_cast %107 : vector<1x10x576xf32> to vector<10x576xf32>
    %109 = vector.shape_cast %106 : vector<576xf32> to vector<1x576xf32>
    %110 = vector.broadcast %109 : vector<1x576xf32> to vector<10x576xf32>
    %111 = arith.mulf %110, %108 : vector<10x576xf32>
    %112 = arith.addf %104, %111 : vector<10x576xf32>
    %c0_72 = arith.constant 0 : index
    %c14 = arith.constant 14 : index
    %c0_73 = arith.constant 0 : index
    %113 = vector.load %arg1[%c0_72, %c14, %c0_73] : memref<1x25x576xf32, #tpu.memory_space<vmem>>, vector<1x1x576xf32>
    %114 = vector.shape_cast %113 : vector<1x1x576xf32> to vector<576xf32>
    %c14_74 = arith.constant 14 : index
    %c0_75 = arith.constant 0 : index
    %c0_76 = arith.constant 0 : index
    %115 = vector.load %arg2[%c14_74, %c0_75, %c0_76] : memref<25x10x576xf32, #tpu.memory_space<vmem>>, vector<1x10x576xf32>
    %116 = vector.shape_cast %115 : vector<1x10x576xf32> to vector<10x576xf32>
    %117 = vector.shape_cast %114 : vector<576xf32> to vector<1x576xf32>
    %118 = vector.broadcast %117 : vector<1x576xf32> to vector<10x576xf32>
    %119 = arith.mulf %118, %116 : vector<10x576xf32>
    %120 = arith.addf %112, %119 : vector<10x576xf32>
    %c0_77 = arith.constant 0 : index
    %c15 = arith.constant 15 : index
    %c0_78 = arith.constant 0 : index
    %121 = vector.load %arg1[%c0_77, %c15, %c0_78] : memref<1x25x576xf32, #tpu.memory_space<vmem>>, vector<1x1x576xf32>
    %122 = vector.shape_cast %121 : vector<1x1x576xf32> to vector<576xf32>
    %c15_79 = arith.constant 15 : index
    %c0_80 = arith.constant 0 : index
    %c0_81 = arith.constant 0 : index
    %123 = vector.load %arg2[%c15_79, %c0_80, %c0_81] : memref<25x10x576xf32, #tpu.memory_space<vmem>>, vector<1x10x576xf32>
    %124 = vector.shape_cast %123 : vector<1x10x576xf32> to vector<10x576xf32>
    %125 = vector.shape_cast %122 : vector<576xf32> to vector<1x576xf32>
    %126 = vector.broadcast %125 : vector<1x576xf32> to vector<10x576xf32>
    %127 = arith.mulf %126, %124 : vector<10x576xf32>
    %128 = arith.addf %120, %127 : vector<10x576xf32>
    %c0_82 = arith.constant 0 : index
    %c16 = arith.constant 16 : index
    %c0_83 = arith.constant 0 : index
    %129 = vector.load %arg1[%c0_82, %c16, %c0_83] : memref<1x25x576xf32, #tpu.memory_space<vmem>>, vector<1x1x576xf32>
    %130 = vector.shape_cast %129 : vector<1x1x576xf32> to vector<576xf32>
    %c16_84 = arith.constant 16 : index
    %c0_85 = arith.constant 0 : index
    %c0_86 = arith.constant 0 : index
    %131 = vector.load %arg2[%c16_84, %c0_85, %c0_86] : memref<25x10x576xf32, #tpu.memory_space<vmem>>, vector<1x10x576xf32>
    %132 = vector.shape_cast %131 : vector<1x10x576xf32> to vector<10x576xf32>
    %133 = vector.shape_cast %130 : vector<576xf32> to vector<1x576xf32>
    %134 = vector.broadcast %133 : vector<1x576xf32> to vector<10x576xf32>
    %135 = arith.mulf %134, %132 : vector<10x576xf32>
    %136 = arith.addf %128, %135 : vector<10x576xf32>
    %c0_87 = arith.constant 0 : index
    %c17 = arith.constant 17 : index
    %c0_88 = arith.constant 0 : index
    %137 = vector.load %arg1[%c0_87, %c17, %c0_88] : memref<1x25x576xf32, #tpu.memory_space<vmem>>, vector<1x1x576xf32>
    %138 = vector.shape_cast %137 : vector<1x1x576xf32> to vector<576xf32>
    %c17_89 = arith.constant 17 : index
    %c0_90 = arith.constant 0 : index
    %c0_91 = arith.constant 0 : index
    %139 = vector.load %arg2[%c17_89, %c0_90, %c0_91] : memref<25x10x576xf32, #tpu.memory_space<vmem>>, vector<1x10x576xf32>
    %140 = vector.shape_cast %139 : vector<1x10x576xf32> to vector<10x576xf32>
    %141 = vector.shape_cast %138 : vector<576xf32> to vector<1x576xf32>
    %142 = vector.broadcast %141 : vector<1x576xf32> to vector<10x576xf32>
    %143 = arith.mulf %142, %140 : vector<10x576xf32>
    %144 = arith.addf %136, %143 : vector<10x576xf32>
    %c0_92 = arith.constant 0 : index
    %c18 = arith.constant 18 : index
    %c0_93 = arith.constant 0 : index
    %145 = vector.load %arg1[%c0_92, %c18, %c0_93] : memref<1x25x576xf32, #tpu.memory_space<vmem>>, vector<1x1x576xf32>
    %146 = vector.shape_cast %145 : vector<1x1x576xf32> to vector<576xf32>
    %c18_94 = arith.constant 18 : index
    %c0_95 = arith.constant 0 : index
    %c0_96 = arith.constant 0 : index
    %147 = vector.load %arg2[%c18_94, %c0_95, %c0_96] : memref<25x10x576xf32, #tpu.memory_space<vmem>>, vector<1x10x576xf32>
    %148 = vector.shape_cast %147 : vector<1x10x576xf32> to vector<10x576xf32>
    %149 = vector.shape_cast %146 : vector<576xf32> to vector<1x576xf32>
    %150 = vector.broadcast %149 : vector<1x576xf32> to vector<10x576xf32>
    %151 = arith.mulf %150, %148 : vector<10x576xf32>
    %152 = arith.addf %144, %151 : vector<10x576xf32>
    %c0_97 = arith.constant 0 : index
    %c19 = arith.constant 19 : index
    %c0_98 = arith.constant 0 : index
    %153 = vector.load %arg1[%c0_97, %c19, %c0_98] : memref<1x25x576xf32, #tpu.memory_space<vmem>>, vector<1x1x576xf32>
    %154 = vector.shape_cast %153 : vector<1x1x576xf32> to vector<576xf32>
    %c19_99 = arith.constant 19 : index
    %c0_100 = arith.constant 0 : index
    %c0_101 = arith.constant 0 : index
    %155 = vector.load %arg2[%c19_99, %c0_100, %c0_101] : memref<25x10x576xf32, #tpu.memory_space<vmem>>, vector<1x10x576xf32>
    %156 = vector.shape_cast %155 : vector<1x10x576xf32> to vector<10x576xf32>
    %157 = vector.shape_cast %154 : vector<576xf32> to vector<1x576xf32>
    %158 = vector.broadcast %157 : vector<1x576xf32> to vector<10x576xf32>
    %159 = arith.mulf %158, %156 : vector<10x576xf32>
    %160 = arith.addf %152, %159 : vector<10x576xf32>
    %c0_102 = arith.constant 0 : index
    %c20 = arith.constant 20 : index
    %c0_103 = arith.constant 0 : index
    %161 = vector.load %arg1[%c0_102, %c20, %c0_103] : memref<1x25x576xf32, #tpu.memory_space<vmem>>, vector<1x1x576xf32>
    %162 = vector.shape_cast %161 : vector<1x1x576xf32> to vector<576xf32>
    %c20_104 = arith.constant 20 : index
    %c0_105 = arith.constant 0 : index
    %c0_106 = arith.constant 0 : index
    %163 = vector.load %arg2[%c20_104, %c0_105, %c0_106] : memref<25x10x576xf32, #tpu.memory_space<vmem>>, vector<1x10x576xf32>
    %164 = vector.shape_cast %163 : vector<1x10x576xf32> to vector<10x576xf32>
    %165 = vector.shape_cast %162 : vector<576xf32> to vector<1x576xf32>
    %166 = vector.broadcast %165 : vector<1x576xf32> to vector<10x576xf32>
    %167 = arith.mulf %166, %164 : vector<10x576xf32>
    %168 = arith.addf %160, %167 : vector<10x576xf32>
    %c0_107 = arith.constant 0 : index
    %c21 = arith.constant 21 : index
    %c0_108 = arith.constant 0 : index
    %169 = vector.load %arg1[%c0_107, %c21, %c0_108] : memref<1x25x576xf32, #tpu.memory_space<vmem>>, vector<1x1x576xf32>
    %170 = vector.shape_cast %169 : vector<1x1x576xf32> to vector<576xf32>
    %c21_109 = arith.constant 21 : index
    %c0_110 = arith.constant 0 : index
    %c0_111 = arith.constant 0 : index
    %171 = vector.load %arg2[%c21_109, %c0_110, %c0_111] : memref<25x10x576xf32, #tpu.memory_space<vmem>>, vector<1x10x576xf32>
    %172 = vector.shape_cast %171 : vector<1x10x576xf32> to vector<10x576xf32>
    %173 = vector.shape_cast %170 : vector<576xf32> to vector<1x576xf32>
    %174 = vector.broadcast %173 : vector<1x576xf32> to vector<10x576xf32>
    %175 = arith.mulf %174, %172 : vector<10x576xf32>
    %176 = arith.addf %168, %175 : vector<10x576xf32>
    %c0_112 = arith.constant 0 : index
    %c22 = arith.constant 22 : index
    %c0_113 = arith.constant 0 : index
    %177 = vector.load %arg1[%c0_112, %c22, %c0_113] : memref<1x25x576xf32, #tpu.memory_space<vmem>>, vector<1x1x576xf32>
    %178 = vector.shape_cast %177 : vector<1x1x576xf32> to vector<576xf32>
    %c22_114 = arith.constant 22 : index
    %c0_115 = arith.constant 0 : index
    %c0_116 = arith.constant 0 : index
    %179 = vector.load %arg2[%c22_114, %c0_115, %c0_116] : memref<25x10x576xf32, #tpu.memory_space<vmem>>, vector<1x10x576xf32>
    %180 = vector.shape_cast %179 : vector<1x10x576xf32> to vector<10x576xf32>
    %181 = vector.shape_cast %178 : vector<576xf32> to vector<1x576xf32>
    %182 = vector.broadcast %181 : vector<1x576xf32> to vector<10x576xf32>
    %183 = arith.mulf %182, %180 : vector<10x576xf32>
    %184 = arith.addf %176, %183 : vector<10x576xf32>
    %c0_117 = arith.constant 0 : index
    %c23 = arith.constant 23 : index
    %c0_118 = arith.constant 0 : index
    %185 = vector.load %arg1[%c0_117, %c23, %c0_118] : memref<1x25x576xf32, #tpu.memory_space<vmem>>, vector<1x1x576xf32>
    %186 = vector.shape_cast %185 : vector<1x1x576xf32> to vector<576xf32>
    %c23_119 = arith.constant 23 : index
    %c0_120 = arith.constant 0 : index
    %c0_121 = arith.constant 0 : index
    %187 = vector.load %arg2[%c23_119, %c0_120, %c0_121] : memref<25x10x576xf32, #tpu.memory_space<vmem>>, vector<1x10x576xf32>
    %188 = vector.shape_cast %187 : vector<1x10x576xf32> to vector<10x576xf32>
    %189 = vector.shape_cast %186 : vector<576xf32> to vector<1x576xf32>
    %190 = vector.broadcast %189 : vector<1x576xf32> to vector<10x576xf32>
    %191 = arith.mulf %190, %188 : vector<10x576xf32>
    %192 = arith.addf %184, %191 : vector<10x576xf32>
    %c0_122 = arith.constant 0 : index
    %c24 = arith.constant 24 : index
    %c0_123 = arith.constant 0 : index
    %193 = vector.load %arg1[%c0_122, %c24, %c0_123] : memref<1x25x576xf32, #tpu.memory_space<vmem>>, vector<1x1x576xf32>
    %194 = vector.shape_cast %193 : vector<1x1x576xf32> to vector<576xf32>
    %c24_124 = arith.constant 24 : index
    %c0_125 = arith.constant 0 : index
    %c0_126 = arith.constant 0 : index
    %195 = vector.load %arg2[%c24_124, %c0_125, %c0_126] : memref<25x10x576xf32, #tpu.memory_space<vmem>>, vector<1x10x576xf32>
    %196 = vector.shape_cast %195 : vector<1x10x576xf32> to vector<10x576xf32>
    %197 = vector.shape_cast %194 : vector<576xf32> to vector<1x576xf32>
    %198 = vector.broadcast %197 : vector<1x576xf32> to vector<10x576xf32>
    %199 = arith.mulf %198, %196 : vector<10x576xf32>
    %200 = arith.addf %192, %199 : vector<10x576xf32>
    %c0_127 = arith.constant 0 : index
    %c0_128 = arith.constant 0 : index
    %c0_129 = arith.constant 0 : index
    %201 = vector.load %arg8[%c0_127, %c0_128, %c0_129] : memref<1x10x576xf32, #tpu.memory_space<vmem>>, vector<1x10x576xf32>
    %202 = vector.shape_cast %201 : vector<1x10x576xf32> to vector<10x576xf32>
    %203 = vector.shape_cast %200 : vector<10x576xf32> to vector<1x10x576xf32>
    tpu.vector_store %arg8[%c0_127, %c0_128, %c0_129], %203 {strides = array<i32>} : memref<1x10x576xf32, #tpu.memory_space<vmem>>, vector<1x10x576xf32>,
    %c0_130 = arith.constant 0 : index
    %c0_131 = arith.constant 0 : index
    %204 = vector.load %arg5[%c0_130, %c0_131] : memref<1x128xf32, #tpu.memory_space<vmem>>, vector<1x128xf32>
    %205 = vector.extract_strided_slice %200 {offsets = [0, 0], sizes = [1, 576], strides = [1, 1]} : vector<10x576xf32> to vector<1x576xf32>
    %206 = vector.shape_cast %205 : vector<1x576xf32> to vector<576xf32>
    %cst = arith.constant 0.000000e+00 : f32
    %207 = vector.broadcast %cst : f32 to vector<576xf32>
    %208 = arith.maximumf %206, %207 : vector<576xf32>
    %209 = arith.truncf %208 : vector<576xf32> to vector<576xbf16>
    %210 = vector.shape_cast %209 : vector<576xbf16> to vector<1x576xbf16>
    %c0_132 = arith.constant 0 : index
    %c0_133 = arith.constant 0 : index
    %c0_134 = arith.constant 0 : index
    %211 = vector.load %arg4[%c0_132, %c0_133, %c0_134] : memref<10x576x128xbf16, #tpu.memory_space<vmem>>, vector<1x576x128xbf16>
    %212 = vector.shape_cast %211 : vector<1x576x128xbf16> to vector<576x128xbf16>
    %cst_135 = arith.constant dense<0.000000e+00> : vector<1x128xf32>
    %213 = tpu.matmul %210, %212, %cst_135 {dimension_numbers = #tpu.dot_dimension_numbers<[1], [0], [0], [1], [0, 0, 1, 1], [], []>} : vector<1x576xbf16>, vector<576x128xbf16>, vector<1x128xf32> -> vector<1x128xf32>
    %214 = arith.addf %204, %213 : vector<1x128xf32>
    %215 = vector.extract_strided_slice %200 {offsets = [1, 0], sizes = [1, 576], strides = [1, 1]} : vector<10x576xf32> to vector<1x576xf32>
    %216 = vector.shape_cast %215 : vector<1x576xf32> to vector<576xf32>
    %cst_136 = arith.constant 0.000000e+00 : f32
    %217 = vector.broadcast %cst_136 : f32 to vector<576xf32>
    %218 = arith.maximumf %216, %217 : vector<576xf32>
    %219 = arith.truncf %218 : vector<576xf32> to vector<576xbf16>
    %220 = vector.shape_cast %219 : vector<576xbf16> to vector<1x576xbf16>
    %c1_137 = arith.constant 1 : index
    %c0_138 = arith.constant 0 : index
    %c0_139 = arith.constant 0 : index
    %221 = vector.load %arg4[%c1_137, %c0_138, %c0_139] : memref<10x576x128xbf16, #tpu.memory_space<vmem>>, vector<1x576x128xbf16>
    %222 = vector.shape_cast %221 : vector<1x576x128xbf16> to vector<576x128xbf16>
    %cst_140 = arith.constant dense<0.000000e+00> : vector<1x128xf32>
    %223 = tpu.matmul %220, %222, %cst_140 {dimension_numbers = #tpu.dot_dimension_numbers<[1], [0], [0], [1], [0, 0, 1, 1], [], []>} : vector<1x576xbf16>, vector<576x128xbf16>, vector<1x128xf32> -> vector<1x128xf32>
    %224 = arith.addf %214, %223 : vector<1x128xf32>
    %225 = vector.extract_strided_slice %200 {offsets = [2, 0], sizes = [1, 576], strides = [1, 1]} : vector<10x576xf32> to vector<1x576xf32>
    %226 = vector.shape_cast %225 : vector<1x576xf32> to vector<576xf32>
    %cst_141 = arith.constant 0.000000e+00 : f32
    %227 = vector.broadcast %cst_141 : f32 to vector<576xf32>
    %228 = arith.maximumf %226, %227 : vector<576xf32>
    %229 = arith.truncf %228 : vector<576xf32> to vector<576xbf16>
    %230 = vector.shape_cast %229 : vector<576xbf16> to vector<1x576xbf16>
    %c2_142 = arith.constant 2 : index
    %c0_143 = arith.constant 0 : index
    %c0_144 = arith.constant 0 : index
    %231 = vector.load %arg4[%c2_142, %c0_143, %c0_144] : memref<10x576x128xbf16, #tpu.memory_space<vmem>>, vector<1x576x128xbf16>
    %232 = vector.shape_cast %231 : vector<1x576x128xbf16> to vector<576x128xbf16>
    %cst_145 = arith.constant dense<0.000000e+00> : vector<1x128xf32>
    %233 = tpu.matmul %230, %232, %cst_145 {dimension_numbers = #tpu.dot_dimension_numbers<[1], [0], [0], [1], [0, 0, 1, 1], [], []>} : vector<1x576xbf16>, vector<576x128xbf16>, vector<1x128xf32> -> vector<1x128xf32>
    %234 = arith.addf %224, %233 : vector<1x128xf32>
    %235 = vector.extract_strided_slice %200 {offsets = [3, 0], sizes = [1, 576], strides = [1, 1]} : vector<10x576xf32> to vector<1x576xf32>
    %236 = vector.shape_cast %235 : vector<1x576xf32> to vector<576xf32>
    %cst_146 = arith.constant 0.000000e+00 : f32
    %237 = vector.broadcast %cst_146 : f32 to vector<576xf32>
    %238 = arith.maximumf %236, %237 : vector<576xf32>
    %239 = arith.truncf %238 : vector<576xf32> to vector<576xbf16>
    %240 = vector.shape_cast %239 : vector<576xbf16> to vector<1x576xbf16>
    %c3_147 = arith.constant 3 : index
    %c0_148 = arith.constant 0 : index
    %c0_149 = arith.constant 0 : index
    %241 = vector.load %arg4[%c3_147, %c0_148, %c0_149] : memref<10x576x128xbf16, #tpu.memory_space<vmem>>, vector<1x576x128xbf16>
    %242 = vector.shape_cast %241 : vector<1x576x128xbf16> to vector<576x128xbf16>
    %cst_150 = arith.constant dense<0.000000e+00> : vector<1x128xf32>
    %243 = tpu.matmul %240, %242, %cst_150 {dimension_numbers = #tpu.dot_dimension_numbers<[1], [0], [0], [1], [0, 0, 1, 1], [], []>} : vector<1x576xbf16>, vector<576x128xbf16>, vector<1x128xf32> -> vector<1x128xf32>
    %244 = arith.addf %234, %243 : vector<1x128xf32>
    %245 = vector.extract_strided_slice %200 {offsets = [4, 0], sizes = [1, 576], strides = [1, 1]} : vector<10x576xf32> to vector<1x576xf32>
    %246 = vector.shape_cast %245 : vector<1x576xf32> to vector<576xf32>
    %cst_151 = arith.constant 0.000000e+00 : f32
    %247 = vector.broadcast %cst_151 : f32 to vector<576xf32>
    %248 = arith.maximumf %246, %247 : vector<576xf32>
    %249 = arith.truncf %248 : vector<576xf32> to vector<576xbf16>
    %250 = vector.shape_cast %249 : vector<576xbf16> to vector<1x576xbf16>
    %c4_152 = arith.constant 4 : index
    %c0_153 = arith.constant 0 : index
    %c0_154 = arith.constant 0 : index
    %251 = vector.load %arg4[%c4_152, %c0_153, %c0_154] : memref<10x576x128xbf16, #tpu.memory_space<vmem>>, vector<1x576x128xbf16>
    %252 = vector.shape_cast %251 : vector<1x576x128xbf16> to vector<576x128xbf16>
    %cst_155 = arith.constant dense<0.000000e+00> : vector<1x128xf32>
    %253 = tpu.matmul %250, %252, %cst_155 {dimension_numbers = #tpu.dot_dimension_numbers<[1], [0], [0], [1], [0, 0, 1, 1], [], []>} : vector<1x576xbf16>, vector<576x128xbf16>, vector<1x128xf32> -> vector<1x128xf32>
    %254 = arith.addf %244, %253 : vector<1x128xf32>
    %255 = vector.extract_strided_slice %200 {offsets = [5, 0], sizes = [1, 576], strides = [1, 1]} : vector<10x576xf32> to vector<1x576xf32>
    %256 = vector.shape_cast %255 : vector<1x576xf32> to vector<576xf32>
    %cst_156 = arith.constant 0.000000e+00 : f32
    %257 = vector.broadcast %cst_156 : f32 to vector<576xf32>
    %258 = arith.maximumf %256, %257 : vector<576xf32>
    %259 = arith.truncf %258 : vector<576xf32> to vector<576xbf16>
    %260 = vector.shape_cast %259 : vector<576xbf16> to vector<1x576xbf16>
    %c5_157 = arith.constant 5 : index
    %c0_158 = arith.constant 0 : index
    %c0_159 = arith.constant 0 : index
    %261 = vector.load %arg4[%c5_157, %c0_158, %c0_159] : memref<10x576x128xbf16, #tpu.memory_space<vmem>>, vector<1x576x128xbf16>
    %262 = vector.shape_cast %261 : vector<1x576x128xbf16> to vector<576x128xbf16>
    %cst_160 = arith.constant dense<0.000000e+00> : vector<1x128xf32>
    %263 = tpu.matmul %260, %262, %cst_160 {dimension_numbers = #tpu.dot_dimension_numbers<[1], [0], [0], [1], [0, 0, 1, 1], [], []>} : vector<1x576xbf16>, vector<576x128xbf16>, vector<1x128xf32> -> vector<1x128xf32>
    %264 = arith.addf %254, %263 : vector<1x128xf32>
    %265 = vector.extract_strided_slice %200 {offsets = [6, 0], sizes = [1, 576], strides = [1, 1]} : vector<10x576xf32> to vector<1x576xf32>
    %266 = vector.shape_cast %265 : vector<1x576xf32> to vector<576xf32>
    %cst_161 = arith.constant 0.000000e+00 : f32
    %267 = vector.broadcast %cst_161 : f32 to vector<576xf32>
    %268 = arith.maximumf %266, %267 : vector<576xf32>
    %269 = arith.truncf %268 : vector<576xf32> to vector<576xbf16>
    %270 = vector.shape_cast %269 : vector<576xbf16> to vector<1x576xbf16>
    %c6_162 = arith.constant 6 : index
    %c0_163 = arith.constant 0 : index
    %c0_164 = arith.constant 0 : index
    %271 = vector.load %arg4[%c6_162, %c0_163, %c0_164] : memref<10x576x128xbf16, #tpu.memory_space<vmem>>, vector<1x576x128xbf16>
    %272 = vector.shape_cast %271 : vector<1x576x128xbf16> to vector<576x128xbf16>
    %cst_165 = arith.constant dense<0.000000e+00> : vector<1x128xf32>
    %273 = tpu.matmul %270, %272, %cst_165 {dimension_numbers = #tpu.dot_dimension_numbers<[1], [0], [0], [1], [0, 0, 1, 1], [], []>} : vector<1x576xbf16>, vector<576x128xbf16>, vector<1x128xf32> -> vector<1x128xf32>
    %274 = arith.addf %264, %273 : vector<1x128xf32>
    %275 = vector.extract_strided_slice %200 {offsets = [7, 0], sizes = [1, 576], strides = [1, 1]} : vector<10x576xf32> to vector<1x576xf32>
    %276 = vector.shape_cast %275 : vector<1x576xf32> to vector<576xf32>
    %cst_166 = arith.constant 0.000000e+00 : f32
    %277 = vector.broadcast %cst_166 : f32 to vector<576xf32>
    %278 = arith.maximumf %276, %277 : vector<576xf32>
    %279 = arith.truncf %278 : vector<576xf32> to vector<576xbf16>
    %280 = vector.shape_cast %279 : vector<576xbf16> to vector<1x576xbf16>
    %c7_167 = arith.constant 7 : index
    %c0_168 = arith.constant 0 : index
    %c0_169 = arith.constant 0 : index
    %281 = vector.load %arg4[%c7_167, %c0_168, %c0_169] : memref<10x576x128xbf16, #tpu.memory_space<vmem>>, vector<1x576x128xbf16>
    %282 = vector.shape_cast %281 : vector<1x576x128xbf16> to vector<576x128xbf16>
    %cst_170 = arith.constant dense<0.000000e+00> : vector<1x128xf32>
    %283 = tpu.matmul %280, %282, %cst_170 {dimension_numbers = #tpu.dot_dimension_numbers<[1], [0], [0], [1], [0, 0, 1, 1], [], []>} : vector<1x576xbf16>, vector<576x128xbf16>, vector<1x128xf32> -> vector<1x128xf32>
    %284 = arith.addf %274, %283 : vector<1x128xf32>
    %285 = vector.extract_strided_slice %200 {offsets = [8, 0], sizes = [1, 576], strides = [1, 1]} : vector<10x576xf32> to vector<1x576xf32>
    %286 = vector.shape_cast %285 : vector<1x576xf32> to vector<576xf32>
    %cst_171 = arith.constant 0.000000e+00 : f32
    %287 = vector.broadcast %cst_171 : f32 to vector<576xf32>
    %288 = arith.maximumf %286, %287 : vector<576xf32>
    %289 = arith.truncf %288 : vector<576xf32> to vector<576xbf16>
    %290 = vector.shape_cast %289 : vector<576xbf16> to vector<1x576xbf16>
    %c8_172 = arith.constant 8 : index
    %c0_173 = arith.constant 0 : index
    %c0_174 = arith.constant 0 : index
    %291 = vector.load %arg4[%c8_172, %c0_173, %c0_174] : memref<10x576x128xbf16, #tpu.memory_space<vmem>>, vector<1x576x128xbf16>
    %292 = vector.shape_cast %291 : vector<1x576x128xbf16> to vector<576x128xbf16>
    %cst_175 = arith.constant dense<0.000000e+00> : vector<1x128xf32>
    %293 = tpu.matmul %290, %292, %cst_175 {dimension_numbers = #tpu.dot_dimension_numbers<[1], [0], [0], [1], [0, 0, 1, 1], [], []>} : vector<1x576xbf16>, vector<576x128xbf16>, vector<1x128xf32> -> vector<1x128xf32>
    %294 = arith.addf %284, %293 : vector<1x128xf32>
    %295 = vector.extract_strided_slice %200 {offsets = [9, 0], sizes = [1, 576], strides = [1, 1]} : vector<10x576xf32> to vector<1x576xf32>
    %296 = vector.shape_cast %295 : vector<1x576xf32> to vector<576xf32>
    %cst_176 = arith.constant 0.000000e+00 : f32
    %297 = vector.broadcast %cst_176 : f32 to vector<576xf32>
    %298 = arith.maximumf %296, %297 : vector<576xf32>
    %299 = arith.truncf %298 : vector<576xf32> to vector<576xbf16>
    %300 = vector.shape_cast %299 : vector<576xbf16> to vector<1x576xbf16>
    %c9_177 = arith.constant 9 : index
    %c0_178 = arith.constant 0 : index
    %c0_179 = arith.constant 0 : index
    %301 = vector.load %arg4[%c9_177, %c0_178, %c0_179] : memref<10x576x128xbf16, #tpu.memory_space<vmem>>, vector<1x576x128xbf16>
    %302 = vector.shape_cast %301 : vector<1x576x128xbf16> to vector<576x128xbf16>
    %cst_180 = arith.constant dense<0.000000e+00> : vector<1x128xf32>
    %303 = tpu.matmul %300, %302, %cst_180 {dimension_numbers = #tpu.dot_dimension_numbers<[1], [0], [0], [1], [0, 0, 1, 1], [], []>} : vector<1x576xbf16>, vector<576x128xbf16>, vector<1x128xf32> -> vector<1x128xf32>
    %304 = arith.addf %294, %303 : vector<1x128xf32>
    %cst_181 = arith.constant 0.000000e+00 : f32
    %305 = vector.broadcast %cst_181 : f32 to vector<1x128xf32>
    %306 = arith.maximumf %304, %305 : vector<1x128xf32>
    %c0_182 = arith.constant 0 : index
    %c0_183 = arith.constant 0 : index
    %307 = vector.load %arg6[%c0_182, %c0_183] : memref<128x10xf32, #tpu.memory_space<vmem>>, vector<128x10xf32>
    %cst_184 = arith.constant dense<0.000000e+00> : vector<1x10xf32>
    %308 = tpu.matmul %306, %307, %cst_184 {dimension_numbers = #tpu.dot_dimension_numbers<[1], [0], [0], [1], [0, 0, 1, 1], [], []>} : vector<1x128xf32>, vector<128x10xf32>, vector<1x10xf32> -> vector<1x10xf32>
    %c0_185 = arith.constant 0 : index
    %c0_186 = arith.constant 0 : index
    %309 = vector.load %arg7[%c0_185, %c0_186] : memref<1x10xf32, #tpu.memory_space<vmem>>, vector<1x10xf32>
    %310 = arith.addf %308, %309 : vector<1x10xf32>
    %c0_187 = arith.constant 0 : index
    %c0_188 = arith.constant 0 : index
    %c0_189 = arith.constant 0 : index
    %311 = vector.load %arg9[%c0_187, %c0_188, %c0_189] : memref<1x1x10xf32, #tpu.memory_space<vmem>>, vector<1x1x10xf32>
    %312 = vector.shape_cast %311 : vector<1x1x10xf32> to vector<1x10xf32>
    %313 = vector.shape_cast %310 : vector<1x10xf32> to vector<1x1x10xf32>
    tpu.vector_store %arg9[%c0_187, %c0_188, %c0_189], %313 {strides = array<i32>} : memref<1x1x10xf32, #tpu.memory_space<vmem>>, vector<1x1x10xf32>,
    return
  }
  func.func @transform_0(%arg0: i32) -> (i32, i32, i32) {
    %c0_i32 = arith.constant 0 : i32
    %c0_i32_0 = arith.constant 0 : i32
    %c0_i32_1 = arith.constant 0 : i32
    return %arg0, %c0_i32, %c0_i32_0 : i32, i32, i32
  }
  func.func @transform_1(%arg0: i32) -> (i32, i32, i32) {
    %c0_i32 = arith.constant 0 : i32
    %c0_i32_0 = arith.constant 0 : i32
    %c0_i32_1 = arith.constant 0 : i32
    %c0_i32_2 = arith.constant 0 : i32
    return %c0_i32, %c0_i32_0, %c0_i32_1 : i32, i32, i32
  }
  func.func @transform_2(%arg0: i32) -> (i32, i32) {
    %c0_i32 = arith.constant 0 : i32
    %c0_i32_0 = arith.constant 0 : i32
    %c0_i32_1 = arith.constant 0 : i32
    return %c0_i32, %c0_i32_0 : i32, i32
  }
  func.func @transform_3(%arg0: i32) -> (i32, i32, i32) {
    %c0_i32 = arith.constant 0 : i32
    %c0_i32_0 = arith.constant 0 : i32
    %c0_i32_1 = arith.constant 0 : i32
    %c0_i32_2 = arith.constant 0 : i32
    return %c0_i32, %c0_i32_0, %c0_i32_1 : i32, i32, i32
  }
  func.func @transform_4(%arg0: i32) -> (i32, i32) {
    %c0_i32 = arith.constant 0 : i32
    %c0_i32_0 = arith.constant 0 : i32
    %c0_i32_1 = arith.constant 0 : i32
    return %c0_i32, %c0_i32_0 : i32, i32
  }
  func.func @transform_5(%arg0: i32) -> (i32, i32) {
    %c0_i32 = arith.constant 0 : i32
    %c0_i32_0 = arith.constant 0 : i32
    %c0_i32_1 = arith.constant 0 : i32
    return %c0_i32, %c0_i32_0 : i32, i32
  }
  func.func @transform_6(%arg0: i32) -> (i32, i32) {
    %c0_i32 = arith.constant 0 : i32
    %c0_i32_0 = arith.constant 0 : i32
    %c0_i32_1 = arith.constant 0 : i32
    return %c0_i32, %c0_i32_0 : i32, i32
  }
  func.func @transform_7(%arg0: i32) -> (i32, i32, i32) {
    %c0_i32 = arith.constant 0 : i32
    %c0_i32_0 = arith.constant 0 : i32
    %c0_i32_1 = arith.constant 0 : i32
    return %arg0, %c0_i32, %c0_i32_0 : i32, i32, i32
  }
  func.func @transform_8(%arg0: i32) -> (i32, i32, i32) {
    %c0_i32 = arith.constant 0 : i32
    %c0_i32_0 = arith.constant 0 : i32
    %c0_i32_1 = arith.constant 0 : i32
    return %arg0, %c0_i32, %c0_i32_0 : i32, i32, i32
  }
}

</mosaic_0001>

<llo_original>
// kernel: mnist_net_forward.1
$region0: #{mnist_net_forward.1}
  #allocation0 [shape = 'u32[]', space=smem, size = 0x4, offset = 0x4, fixed_abs, tag = 'smem constant byte address 0x4 - core index']
  #allocation1 [shape = 'u32[72,128]{1,0:T(1,128)}', space=vmem, size = 0x9000, scoped, tag = 'internal scratch']
  %s0 = inlined_call_operand.vmem [shape: f32[2,25,576], index: 0, kind: input, shape index: {}]
  %s1 = inlined_call_operand.vmem [shape: f32[25,10,576], index: 1, kind: input, shape index: {}]
  %s2 = inlined_call_operand.vmem [shape: f32[10,576], index: 2, kind: input, shape index: {}]
  %s3 = inlined_call_operand.vmem [shape: bf16[10,576,128], index: 3, kind: input, shape index: {}]
  %s4 = inlined_call_operand.vmem [shape: f32[1,128], index: 4, kind: input, shape index: {}]
  %s5 = inlined_call_operand.vmem [shape: f32[128,10], index: 5, kind: input, shape index: {}]
  %s6 = inlined_call_operand.vmem [shape: f32[1,10], index: 6, kind: input, shape index: {}]
  %s7 = inlined_call_operand.vmem [shape: f32[2,10,576], index: 7, kind: output, shape index: {0}]
  %s8 = inlined_call_operand.hbm [shape: f32[2,1,10], index: 8, kind: output, shape index: {1}]
  %9 = xla_tuple %s7, %s8
  %s10 = sld [smem:[#allocation0]]
  $region69: #{mnist_net_forward.1} parent=0
    _
  %s12 = ssub.s32 1, %s10
  %s13 = scalar_select 0, %s12, %s10
  $region1: #{mnist_net_forward.1} parent=0
    #allocation2 [shape = 'u8[1024]{0}', space=vmem, size = 0x400, scoped, tag = 'output window, operand 1']
    #allocation3 [shape = 's32[2]{0}', space=sflag, size = 0x8, scoped, tag = 'scoped memory for mnist_net_forward.1']
    %14 = vsyncpa [#allocation3], 0
    %s15 = scalar_lea.sflag [#allocation3], 1
    %16 = vsyncpa %s15, 0
    loop: start=0, step=1, limit=4
    $region2: #{mnist_net_forward.1} parent=1 // loop_pre_header
      _
    $region3: #{mnist_net_forward.1} parent=1 // loop_header
      %s18 = sphi 0, %s22
      %p19 = scmp.ge.s32.totalorder %s18, 4
      %s28 = sphi 0, %s30
      %s31 = sphi 0, %s28
      %s32 = sphi 0, %s31
      %s48 = sphi 0, %s32
      %s52 = sphi 0, %s52
      %s54 = sphi 0, %s52
      %s55 = sphi 0, %s54
      %s69 = sphi 0, %s55
      %s73 = sphi 0, %s73
      %s75 = sphi 0, %s73
      %s76 = sphi 0, %s75
      %s90 = sphi 0, %s76
      %s94 = sphi 0, %s94
      %s96 = sphi 0, %s94
      %s97 = sphi 0, %s96
      %s111 = sphi 0, %s97
      %s115 = sphi 0, %s115
      %s117 = sphi 0, %s115
      %s118 = sphi 0, %s117
      %s132 = sphi 0, %s118
      %s136 = sphi 0, %s136
      %s138 = sphi 0, %s136
      %s139 = sphi 0, %s138
      %s153 = sphi 0, %s139
      %s157 = sphi 0, %s157
      %s159 = sphi 0, %s157
      %s160 = sphi 0, %s159
      %s174 = sphi 0, %s160
      %s180 = sphi 0, %s182
      %s183 = sphi 0, %s180
      %s184 = sphi 0, %s183
      %s200 = sphi 0, %s184
      %s206 = sphi 0, %s208
      %s209 = sphi 0, %s206
      %s210 = sphi 0, %s209
      %s226 = sphi 0, %s210
    $region4: #{mnist_net_forward.1} parent=1 // loop_header_branch
      %21 = sbr.rel (%p19) target = $region8
    $region5: #{mnist_net_forward.1} parent=1 // loop_body
      %s23 = ssub.s32 %s18, 1
      %s24 = ssub.s32 %s18, 2
      %s25 = sadd.s32 %s18, 1
      %s26 = ssub.s32 %s18, %s25
      %p27 = scmp.eq.s32.totalorder %s26, 0
      %s29 = sadd.s32 %s28, 1
      %s30 = scalar_select %p27, %s28, %s29
      %p33 = pneg %p27
      %p34 = scmp.eq.s32.totalorder %s18, 1
      %p35 = por %p33, %p34
      %p36 = scmp.ne.s32.totalorder %s28, %s31
      %p37 = scmp.eq.s32.totalorder %s18, 0
      %p38 = por %p36, %p37
      %p39 = scmp.ne.s32.totalorder %s28, %s31
      %p40 = scmp.eq.s32.totalorder %s23, 1
      %p41 = por %p39, %p40
      %p42 = scmp.ne.s32.totalorder %s31, %s32
      %p43 = scmp.eq.s32.totalorder %s23, 0
      %p44 = por %p42, %p43
      %p45 = scmp.ne.s32.totalorder %s31, %s32
      %p46 = scmp.eq.s32.totalorder %s24, 1
      %p47 = por %p45, %p46
      %p49 = scmp.ne.s32.totalorder %s32, %s48
      %p50 = scmp.eq.s32.totalorder %s24, 0
      %p51 = por %p49, %p50
      %s53 = sadd.s32 %s52, 1
      %p56 = scmp.eq.s32.totalorder %s18, 1
      %p57 = scmp.ne.s32.totalorder %s52, %s54
      %p58 = scmp.eq.s32.totalorder %s18, 0
      %p59 = por %p57, %p58
      %p60 = scmp.ne.s32.totalorder %s52, %s54
      %p61 = scmp.eq.s32.totalorder %s23, 1
      %p62 = por %p60, %p61
      %p63 = scmp.ne.s32.totalorder %s54, %s55
      %p64 = scmp.eq.s32.totalorder %s23, 0
      %p65 = por %p63, %p64
      %p66 = scmp.ne.s32.totalorder %s54, %s55
      %p67 = scmp.eq.s32.totalorder %s24, 1
      %p68 = por %p66, %p67
      %p70 = scmp.ne.s32.totalorder %s55, %s69
      %p71 = scmp.eq.s32.totalorder %s24, 0
      %p72 = por %p70, %p71
      %s74 = sadd.s32 %s73, 1
      %p77 = scmp.eq.s32.totalorder %s18, 1
      %p78 = scmp.ne.s32.totalorder %s73, %s75
      %p79 = scmp.eq.s32.totalorder %s18, 0
      %p80 = por %p78, %p79
      %p81 = scmp.ne.s32.totalorder %s73, %s75
      %p82 = scmp.eq.s32.totalorder %s23, 1
      %p83 = por %p81, %p82
      %p84 = scmp.ne.s32.totalorder %s75, %s76
      %p85 = scmp.eq.s32.totalorder %s23, 0
      %p86 = por %p84, %p85
      %p87 = scmp.ne.s32.totalorder %s75, %s76
      %p88 = scmp.eq.s32.totalorder %s24, 1
      %p89 = por %p87, %p88
      %p91 = scmp.ne.s32.totalorder %s76, %s90
      %p92 = scmp.eq.s32.totalorder %s24, 0
      %p93 = por %p91, %p92
      %s95 = sadd.s32 %s94, 1
      %p98 = scmp.eq.s32.totalorder %s18, 1
      %p99 = scmp.ne.s32.totalorder %s94, %s96
      %p100 = scmp.eq.s32.totalorder %s18, 0
      %p101 = por %p99, %p100
      %p102 = scmp.ne.s32.totalorder %s94, %s96
      %p103 = scmp.eq.s32.totalorder %s23, 1
      %p104 = por %p102, %p103
      %p105 = scmp.ne.s32.totalorder %s96, %s97
      %p106 = scmp.eq.s32.totalorder %s23, 0
      %p107 = por %p105, %p106
      %p108 = scmp.ne.s32.totalorder %s96, %s97
      %p109 = scmp.eq.s32.totalorder %s24, 1
      %p110 = por %p108, %p109
      %p112 = scmp.ne.s32.totalorder %s97, %s111
      %p113 = scmp.eq.s32.totalorder %s24, 0
      %p114 = por %p112, %p113
      %s116 = sadd.s32 %s115, 1
      %p119 = scmp.eq.s32.totalorder %s18, 1
      %p120 = scmp.ne.s32.totalorder %s115, %s117
      %p121 = scmp.eq.s32.totalorder %s18, 0
      %p122 = por %p120, %p121
      %p123 = scmp.ne.s32.totalorder %s115, %s117
      %p124 = scmp.eq.s32.totalorder %s23, 1
      %p125 = por %p123, %p124
      %p126 = scmp.ne.s32.totalorder %s117, %s118
      %p127 = scmp.eq.s32.totalorder %s23, 0
      %p128 = por %p126, %p127
      %p129 = scmp.ne.s32.totalorder %s117, %s118
      %p130 = scmp.eq.s32.totalorder %s24, 1
      %p131 = por %p129, %p130
      %p133 = scmp.ne.s32.totalorder %s118, %s132
      %p134 = scmp.eq.s32.totalorder %s24, 0
      %p135 = por %p133, %p134
      %s137 = sadd.s32 %s136, 1
      %p140 = scmp.eq.s32.totalorder %s18, 1
      %p141 = scmp.ne.s32.totalorder %s136, %s138
      %p142 = scmp.eq.s32.totalorder %s18, 0
      %p143 = por %p141, %p142
      %p144 = scmp.ne.s32.totalorder %s136, %s138
      %p145 = scmp.eq.s32.totalorder %s23, 1
      %p146 = por %p144, %p145
      %p147 = scmp.ne.s32.totalorder %s138, %s139
      %p148 = scmp.eq.s32.totalorder %s23, 0
      %p149 = por %p147, %p148
      %p150 = scmp.ne.s32.totalorder %s138, %s139
      %p151 = scmp.eq.s32.totalorder %s24, 1
      %p152 = por %p150, %p151
      %p154 = scmp.ne.s32.totalorder %s139, %s153
      %p155 = scmp.eq.s32.totalorder %s24, 0
      %p156 = por %p154, %p155
      %s158 = sadd.s32 %s157, 1
      %p161 = scmp.eq.s32.totalorder %s18, 1
      %p162 = scmp.ne.s32.totalorder %s157, %s159
      %p163 = scmp.eq.s32.totalorder %s18, 0
      %p164 = por %p162, %p163
      %p165 = scmp.ne.s32.totalorder %s157, %s159
      %p166 = scmp.eq.s32.totalorder %s23, 1
      %p167 = por %p165, %p166
      %p168 = scmp.ne.s32.totalorder %s159, %s160
      %p169 = scmp.eq.s32.totalorder %s23, 0
      %p170 = por %p168, %p169
      %p171 = scmp.ne.s32.totalorder %s159, %s160
      %p172 = scmp.eq.s32.totalorder %s24, 1
      %p173 = por %p171, %p172
      %p175 = scmp.ne.s32.totalorder %s160, %s174
      %p176 = scmp.eq.s32.totalorder %s24, 0
      %p177 = por %p175, %p176
      %s178 = ssub.s32 %s18, %s25
      %p179 = scmp.eq.s32.totalorder %s178, 0
      %s181 = sadd.s32 %s180, 1
      %s182 = scalar_select %p179, %s180, %s181
      %p185 = pneg %p179
      %p186 = scmp.eq.s32.totalorder %s18, 1
      %p187 = por %p185, %p186
      %p188 = scmp.ne.s32.totalorder %s180, %s183
      %p189 = scmp.eq.s32.totalorder %s18, 0
      %p190 = por %p188, %p189
      %p191 = scmp.ne.s32.totalorder %s180, %s183
      %p192 = scmp.eq.s32.totalorder %s23, 1
      %p193 = por %p191, %p192
      %p194 = scmp.ne.s32.totalorder %s183, %s184
      %p195 = scmp.eq.s32.totalorder %s23, 0
      %p196 = por %p194, %p195
      %p197 = scmp.ne.s32.totalorder %s183, %s184
      %p198 = scmp.eq.s32.totalorder %s24, 1
      %p199 = por %p197, %p198
      %p201 = scmp.ne.s32.totalorder %s184, %s200
      %p202 = scmp.eq.s32.totalorder %s24, 0
      %p203 = por %p201, %p202
      %s204 = ssub.s32 %s18, %s25
      %p205 = scmp.eq.s32.totalorder %s204, 0
      %s207 = sadd.s32 %s206, 1
      %s208 = scalar_select %p205, %s206, %s207
      %p211 = pneg %p205
      %p212 = scmp.eq.s32.totalorder %s18, 1
      %p213 = por %p211, %p212
      %p214 = scmp.ne.s32.totalorder %s206, %s209
      %p215 = scmp.eq.s32.totalorder %s18, 0
      %p216 = por %p214, %p215
      %p217 = scmp.ne.s32.totalorder %s206, %s209
      %p218 = scmp.eq.s32.totalorder %s23, 1
      %p219 = por %p217, %p218
      %p220 = scmp.ne.s32.totalorder %s209, %s210
      %p221 = scmp.eq.s32.totalorder %s23, 0
      %p222 = por %p220, %p221
      %p223 = scmp.ne.s32.totalorder %s209, %s210
      %p224 = scmp.eq.s32.totalorder %s24, 1
      %p225 = por %p223, %p224
      %p227 = scmp.ne.s32.totalorder %s210, %s226
      %p228 = scmp.eq.s32.totalorder %s24, 0
      %p229 = por %p227, %p228
      %p230 = scmp.le.s32.totalorder 1, %s18
      %p231 = scmp.lt.s32.totalorder %s18, 3
      %p232 = pnand %p230, %p231
      %p233 = pneg %p232
      // Predicated region
      $region9: #{mnist_net_forward.1} parent=5 // pred_check
        _
      $region10: #{mnist_net_forward.1} parent=5 // pred_check_branch
        %235 = sbr.rel (%p232) target = $region12
      $region11: #{mnist_net_forward.1} parent=5 // pred_region
        %s236 = ssub.s32 %s18, 1
        // Predicated region
        $region13: #{mnist_net_forward.1} parent=11 // pred_check
          %p237 = pneg %p65
        $region14: #{mnist_net_forward.1} parent=11 // pred_check_branch
          %239 = sbr.rel (%p237) target = $region16
        $region15: #{mnist_net_forward.1} parent=11 // pred_region
          _
        $region16: #{mnist_net_forward.1} parent=11 // pred_fallthru
          _
        // Predicated region
        $region17: #{mnist_net_forward.1} parent=11 // pred_check
          %p240 = pneg %p86
        $region18: #{mnist_net_forward.1} parent=11 // pred_check_branch
          %242 = sbr.rel (%p240) target = $region20
        $region19: #{mnist_net_forward.1} parent=11 // pred_region
          _
        $region20: #{mnist_net_forward.1} parent=11 // pred_fallthru
          _
        // Predicated region
        $region21: #{mnist_net_forward.1} parent=11 // pred_check
          %p243 = pneg %p107
        $region22: #{mnist_net_forward.1} parent=11 // pred_check_branch
          %245 = sbr.rel (%p243) target = $region24
        $region23: #{mnist_net_forward.1} parent=11 // pred_region
          _
        $region24: #{mnist_net_forward.1} parent=11 // pred_fallthru
          _
        // Predicated region
        $region25: #{mnist_net_forward.1} parent=11 // pred_check
          %p246 = pneg %p128
        $region26: #{mnist_net_forward.1} parent=11 // pred_check_branch
          %248 = sbr.rel (%p246) target = $region28
        $region27: #{mnist_net_forward.1} parent=11 // pred_region
          _
        $region28: #{mnist_net_forward.1} parent=11 // pred_fallthru
          _
        // Predicated region
        $region29: #{mnist_net_forward.1} parent=11 // pred_check
          %p249 = pneg %p149
        $region30: #{mnist_net_forward.1} parent=11 // pred_check_branch
          %251 = sbr.rel (%p249) target = $region32
        $region31: #{mnist_net_forward.1} parent=11 // pred_region
          _
        $region32: #{mnist_net_forward.1} parent=11 // pred_fallthru
          _
        // Predicated region
        $region33: #{mnist_net_forward.1} parent=11 // pred_check
          %p252 = pneg %p170
        $region34: #{mnist_net_forward.1} parent=11 // pred_check_branch
          %254 = sbr.rel (%p252) target = $region36
        $region35: #{mnist_net_forward.1} parent=11 // pred_region
          _
        $region36: #{mnist_net_forward.1} parent=11 // pred_fallthru
          _
      $region12: #{mnist_net_forward.1} parent=5 // pred_fallthru
        _
      %p255 = scmp.lt.s32.totalorder %s18, 2
      // Predicated region
      $region37: #{mnist_net_forward.1} parent=5 // pred_check
        %p256 = pneg %p255
      $region38: #{mnist_net_forward.1} parent=5 // pred_check_branch
        %258 = sbr.rel (%p256) target = $region40
      $region39: #{mnist_net_forward.1} parent=5 // pred_region
        // Predicated region
        $region41: #{mnist_net_forward.1} parent=39 // pred_check
          %p259 = pneg %p38
        $region42: #{mnist_net_forward.1} parent=39 // pred_check_branch
          %261 = sbr.rel (%p259) target = $region44
        $region43: #{mnist_net_forward.1} parent=39 // pred_region
          %p262 = scmp.lt.s32.totalorder %s18, 1
          %s263 = scalar_select %p262, %s18, 1
          %s264 = smul.addr %s263, 20
          %s265 = smul.addr %s264, 8
          %s266 = scalar_lea.vmem %s0, %s265
        $region44: #{mnist_net_forward.1} parent=39 // pred_fallthru
          _
      $region40: #{mnist_net_forward.1} parent=5 // pred_fallthru
        _
      %p267 = scmp.le.s32.totalorder 1, %s18
      %p268 = scmp.lt.s32.totalorder %s18, 3
      %p269 = pnand %p267, %p268
      %p270 = pneg %p269
      // Predicated region
      $region45: #{mnist_net_forward.1} parent=5 // pred_check
        _
      $region46: #{mnist_net_forward.1} parent=5 // pred_check_branch
        %272 = sbr.rel (%p269) target = $region48
      $region47: #{mnist_net_forward.1} parent=5 // pred_region
        %s273 = ssub.s32 %s18, 1
        %p274 = scmp.lt.s32.totalorder %s23, 1
        %s275 = scalar_select %p274, %s23, 1
        %s276 = smul.addr %s275, 20
        %s277 = smul.addr %s276, 8
        %s278 = scalar_lea.vmem %s0, %s277
        %p279 = pneg %p44
        %p280 = pneg %p41
        %p281 = pneg %p65
        %p282 = pneg %p62
        %p283 = pneg %p86
        %p284 = pneg %p83
        %p285 = pneg %p107
        %p286 = pneg %p104
        %p287 = pneg %p128
        %p288 = pneg %p125
        %p289 = pneg %p149
        %p290 = pneg %p146
        %p291 = pneg %p170
        %p292 = pneg %p167
        %p293 = pneg %p196
        %p294 = pneg %p193
        %p295 = scmp.lt.s32.totalorder %s23, 1
        %s296 = scalar_select %p295, %s23, 1
        %s297 = smul.addr %s296, 10
        %s298 = smul.addr %s297, 8
        %s299 = scalar_lea.vmem %s7, %s298
        %p300 = pneg %p222
        %p301 = pneg %p219
        %s302 = sand.u32 %s209, 1
        %s303 = scalar_lea.sflag [#allocation3], %s302
        %s304 = sand.u32 %s209, 1
        %s305 = scalar_lea.vmem [#allocation2], %s304
        %p306 = scmp.lt.s32.totalorder %s23, 1
        %s307 = scalar_select %p306, %s23, 1
        %s308 = smul.addr %s307, 20
        %s309 = smul.addr %s308, 8
        %s310 = scalar_lea.vmem %s0, %s309
        %p311 = scmp.lt.s32.totalorder %s23, 1
        %s312 = scalar_select %p311, %s23, 1
        %s313 = smul.addr %s312, 10
        %s314 = smul.addr %s313, 8
        %s315 = scalar_lea.vmem %s7, %s314
        %v317 = vld [vmem:[%s2] sm:$0xff]
        %v318 = vld [vmem:[%s2 + $0x8] sm:$0xff]
        %v319 = vld [vmem:[%s2 + $0x10] sm:$0xff]
        %v320 = vld [vmem:[%s2 + $0x18] sm:$0xff]
        %v321 = vld [vmem:[%s2 + $0x20] sm:$0xff]
        %v322 = vld [vmem:[%s2 + $0x28] sm:$0x3]
        %v323 = vld [vmem:[%s2 + $0x30] sm:$0x3]
        %v324 = vld [vmem:[%s2 + $0x38] sm:$0x3]
        %v325 = vld [vmem:[%s2 + $0x40] sm:$0x3]
        %v326 = vld [vmem:[%s2 + $0x48] sm:$0x3]
        %v327 = vld [vmem:[%s310] ss:$8 sm:$0xf]
        %v328 = vld [vmem:[%s310] ss:$8 sm:$0x10]
        %v329 = vor.u32 %v327, %v328
        %v330 = vld [vmem:[%s1] sm:$0xff]
        %v331 = vld [vmem:[%s1 + $0x8] sm:$0xff]
        %v332 = vld [vmem:[%s1 + $0x10] sm:$0xff]
        %v333 = vld [vmem:[%s1 + $0x18] sm:$0xff]
        %v334 = vld [vmem:[%s1 + $0x20] sm:$0xff]
        %v335 = vld [vmem:[%s1 + $0x28] sm:$0x3]
        %v336 = vld [vmem:[%s1 + $0x30] sm:$0x3]
        %v337 = vld [vmem:[%s1 + $0x38] sm:$0x3]
        %v338 = vld [vmem:[%s1 + $0x40] sm:$0x3]
        %v339 = vld [vmem:[%s1 + $0x48] sm:$0x3]
        %v341 = vperm.slane %v329, 0
        %v342 = vperm.slane %v329, 1
        %v343 = vperm.slane %v329, 2
        %v344 = vperm.slane %v329, 3
        %v345 = vperm.slane %v329, 4
        %v351 = vmul.f32 %v341, %v330
        %v352 = vmul.f32 %v342, %v331
        %v353 = vmul.f32 %v343, %v332
        %v354 = vmul.f32 %v344, %v333
        %v355 = vmul.f32 %v345, %v334
        %v356 = vmul.f32 %v341, %v335
        %v357 = vmul.f32 %v342, %v336
        %v358 = vmul.f32 %v343, %v337
        %v359 = vmul.f32 %v344, %v338
        %v360 = vmul.f32 %v345, %v339
        %v361 = vadd.f32 %v317, %v351
        %v362 = vadd.f32 %v318, %v352
        %v363 = vadd.f32 %v319, %v353
        %v364 = vadd.f32 %v320, %v354
        %v365 = vadd.f32 %v321, %v355
        %v366 = vadd.f32 %v322, %v356
        %v367 = vadd.f32 %v323, %v357
        %v368 = vadd.f32 %v324, %v358
        %v369 = vadd.f32 %v325, %v359
        %v370 = vadd.f32 %v326, %v360
        %s371 = scalar_lea.vmem %s310, 1
        %v372 = vld [vmem:[%s371] ss:$8 sm:$0xf]
        %v373 = vld [vmem:[%s371] ss:$8 sm:$0x10]
        %v374 = vor.u32 %v372, %v373
        %s375 = scalar_lea.vmem %s1, 80
        %v376 = vld [vmem:[%s375] sm:$0xff]
        %v377 = vld [vmem:[%s375 + $0x8] sm:$0xff]
        %v378 = vld [vmem:[%s375 + $0x10] sm:$0xff]
        %v379 = vld [vmem:[%s375 + $0x18] sm:$0xff]
        %v380 = vld [vmem:[%s375 + $0x20] sm:$0xff]
        %v381 = vld [vmem:[%s375 + $0x28] sm:$0x3]
        %v382 = vld [vmem:[%s375 + $0x30] sm:$0x3]
        %v383 = vld [vmem:[%s375 + $0x38] sm:$0x3]
        %v384 = vld [vmem:[%s375 + $0x40] sm:$0x3]
        %v385 = vld [vmem:[%s375 + $0x48] sm:$0x3]
        %v387 = vperm.slane %v374, 0
        %v388 = vperm.slane %v374, 1
        %v389 = vperm.slane %v374, 2
        %v390 = vperm.slane %v374, 3
        %v391 = vperm.slane %v374, 4
        %v397 = vmul.f32 %v387, %v376
        %v398 = vmul.f32 %v388, %v377
        %v399 = vmul.f32 %v389, %v378
        %v400 = vmul.f32 %v390, %v379
        %v401 = vmul.f32 %v391, %v380
        %v402 = vmul.f32 %v387, %v381
        %v403 = vmul.f32 %v388, %v382
        %v404 = vmul.f32 %v389, %v383
        %v405 = vmul.f32 %v390, %v384
        %v406 = vmul.f32 %v391, %v385
        %v407 = vadd.f32 %v361, %v397
        %v408 = vadd.f32 %v362, %v398
        %v409 = vadd.f32 %v363, %v399
        %v410 = vadd.f32 %v364, %v400
        %v411 = vadd.f32 %v365, %v401
        %v412 = vadd.f32 %v366, %v402
        %v413 = vadd.f32 %v367, %v403
        %v414 = vadd.f32 %v368, %v404
        %v415 = vadd.f32 %v369, %v405
        %v416 = vadd.f32 %v370, %v406
        %s417 = scalar_lea.vmem %s310, 2
        %v418 = vld [vmem:[%s417] ss:$8 sm:$0xf]
        %v419 = vld [vmem:[%s417] ss:$8 sm:$0x10]
        %v420 = vor.u32 %v418, %v419
        %s421 = scalar_lea.vmem %s1, 160
        %v422 = vld [vmem:[%s421] sm:$0xff]
        %v423 = vld [vmem:[%s421 + $0x8] sm:$0xff]
        %v424 = vld [vmem:[%s421 + $0x10] sm:$0xff]
        %v425 = vld [vmem:[%s421 + $0x18] sm:$0xff]
        %v426 = vld [vmem:[%s421 + $0x20] sm:$0xff]
        %v427 = vld [vmem:[%s421 + $0x28] sm:$0x3]
        %v428 = vld [vmem:[%s421 + $0x30] sm:$0x3]
        %v429 = vld [vmem:[%s421 + $0x38] sm:$0x3]
        %v430 = vld [vmem:[%s421 + $0x40] sm:$0x3]
        %v431 = vld [vmem:[%s421 + $0x48] sm:$0x3]
        %v433 = vperm.slane %v420, 0
        %v434 = vperm.slane %v420, 1
        %v435 = vperm.slane %v420, 2
        %v436 = vperm.slane %v420, 3
        %v437 = vperm.slane %v420, 4
        %v443 = vmul.f32 %v433, %v422
        %v444 = vmul.f32 %v434, %v423
        %v445 = vmul.f32 %v435, %v424
        %v446 = vmul.f32 %v436, %v425
        %v447 = vmul.f32 %v437, %v426
        %v448 = vmul.f32 %v433, %v427
        %v449 = vmul.f32 %v434, %v428
        %v450 = vmul.f32 %v435, %v429
        %v451 = vmul.f32 %v436, %v430
        %v452 = vmul.f32 %v437, %v431
        %v453 = vadd.f32 %v407, %v443
        %v454 = vadd.f32 %v408, %v444
        %v455 = vadd.f32 %v409, %v445
        %v456 = vadd.f32 %v410, %v446
        %v457 = vadd.f32 %v411, %v447
        %v458 = vadd.f32 %v412, %v448
        %v459 = vadd.f32 %v413, %v449
        %v460 = vadd.f32 %v414, %v450
        %v461 = vadd.f32 %v415, %v451
        %v462 = vadd.f32 %v416, %v452
        %s463 = scalar_lea.vmem %s310, 3
        %v464 = vld [vmem:[%s463] ss:$8 sm:$0xf]
        %v465 = vld [vmem:[%s463] ss:$8 sm:$0x10]
        %v466 = vor.u32 %v464, %v465
        %s467 = scalar_lea.vmem %s1, 240
        %v468 = vld [vmem:[%s467] sm:$0xff]
        %v469 = vld [vmem:[%s467 + $0x8] sm:$0xff]
        %v470 = vld [vmem:[%s467 + $0x10] sm:$0xff]
        %v471 = vld [vmem:[%s467 + $0x18] sm:$0xff]
        %v472 = vld [vmem:[%s467 + $0x20] sm:$0xff]
        %v473 = vld [vmem:[%s467 + $0x28] sm:$0x3]
        %v474 = vld [vmem:[%s467 + $0x30] sm:$0x3]
        %v475 = vld [vmem:[%s467 + $0x38] sm:$0x3]
        %v476 = vld [vmem:[%s467 + $0x40] sm:$0x3]
        %v477 = vld [vmem:[%s467 + $0x48] sm:$0x3]
        %v479 = vperm.slane %v466, 0
        %v480 = vperm.slane %v466, 1
        %v481 = vperm.slane %v466, 2
        %v482 = vperm.slane %v466, 3
        %v483 = vperm.slane %v466, 4
        %v489 = vmul.f32 %v479, %v468
        %v490 = vmul.f32 %v480, %v469
        %v491 = vmul.f32 %v481, %v470
        %v492 = vmul.f32 %v482, %v471
        %v493 = vmul.f32 %v483, %v472
        %v494 = vmul.f32 %v479, %v473
        %v495 = vmul.f32 %v480, %v474
        %v496 = vmul.f32 %v481, %v475
        %v497 = vmul.f32 %v482, %v476
        %v498 = vmul.f32 %v483, %v477
        %v499 = vadd.f32 %v453, %v489
        %v500 = vadd.f32 %v454, %v490
        %v501 = vadd.f32 %v455, %v491
        %v502 = vadd.f32 %v456, %v492
        %v503 = vadd.f32 %v457, %v493
        %v504 = vadd.f32 %v458, %v494
        %v505 = vadd.f32 %v459, %v495
        %v506 = vadd.f32 %v460, %v496
        %v507 = vadd.f32 %v461, %v497
        %v508 = vadd.f32 %v462, %v498
        %s509 = scalar_lea.vmem %s310, 4
        %v510 = vld [vmem:[%s509] ss:$8 sm:$0xf]
        %v511 = vld [vmem:[%s509] ss:$8 sm:$0x10]
        %v512 = vor.u32 %v510, %v511
        %s513 = scalar_lea.vmem %s1, 320
        %v514 = vld [vmem:[%s513] sm:$0xff]
        %v515 = vld [vmem:[%s513 + $0x8] sm:$0xff]
        %v516 = vld [vmem:[%s513 + $0x10] sm:$0xff]
        %v517 = vld [vmem:[%s513 + $0x18] sm:$0xff]
        %v518 = vld [vmem:[%s513 + $0x20] sm:$0xff]
        %v519 = vld [vmem:[%s513 + $0x28] sm:$0x3]
        %v520 = vld [vmem:[%s513 + $0x30] sm:$0x3]
        %v521 = vld [vmem:[%s513 + $0x38] sm:$0x3]
        %v522 = vld [vmem:[%s513 + $0x40] sm:$0x3]
        %v523 = vld [vmem:[%s513 + $0x48] sm:$0x3]
        %v525 = vperm.slane %v512, 0
        %v526 = vperm.slane %v512, 1
        %v527 = vperm.slane %v512, 2
        %v528 = vperm.slane %v512, 3
        %v529 = vperm.slane %v512, 4
        %v535 = vmul.f32 %v525, %v514
        %v536 = vmul.f32 %v526, %v515
        %v537 = vmul.f32 %v527, %v516
        %v538 = vmul.f32 %v528, %v517
        %v539 = vmul.f32 %v529, %v518
        %v540 = vmul.f32 %v525, %v519
        %v541 = vmul.f32 %v526, %v520
        %v542 = vmul.f32 %v527, %v521
        %v543 = vmul.f32 %v528, %v522
        %v544 = vmul.f32 %v529, %v523
        %v545 = vadd.f32 %v499, %v535
        %v546 = vadd.f32 %v500, %v536
        %v547 = vadd.f32 %v501, %v537
        %v548 = vadd.f32 %v502, %v538
        %v549 = vadd.f32 %v503, %v539
        %v550 = vadd.f32 %v504, %v540
        %v551 = vadd.f32 %v505, %v541
        %v552 = vadd.f32 %v506, %v542
        %v553 = vadd.f32 %v507, %v543
        %v554 = vadd.f32 %v508, %v544
        %s555 = scalar_lea.vmem %s310, 5
        %v556 = vld [vmem:[%s555] ss:$8 sm:$0xf]
        %v557 = vld [vmem:[%s555] ss:$8 sm:$0x10]
        %v558 = vor.u32 %v556, %v557
        %s559 = scalar_lea.vmem %s1, 400
        %v560 = vld [vmem:[%s559] sm:$0xff]
        %v561 = vld [vmem:[%s559 + $0x8] sm:$0xff]
        %v562 = vld [vmem:[%s559 + $0x10] sm:$0xff]
        %v563 = vld [vmem:[%s559 + $0x18] sm:$0xff]
        %v564 = vld [vmem:[%s559 + $0x20] sm:$0xff]
        %v565 = vld [vmem:[%s559 + $0x28] sm:$0x3]
        %v566 = vld [vmem:[%s559 + $0x30] sm:$0x3]
        %v567 = vld [vmem:[%s559 + $0x38] sm:$0x3]
        %v568 = vld [vmem:[%s559 + $0x40] sm:$0x3]
        %v569 = vld [vmem:[%s559 + $0x48] sm:$0x3]
        %v571 = vperm.slane %v558, 0
        %v572 = vperm.slane %v558, 1
        %v573 = vperm.slane %v558, 2
        %v574 = vperm.slane %v558, 3
        %v575 = vperm.slane %v558, 4
        %v581 = vmul.f32 %v571, %v560
        %v582 = vmul.f32 %v572, %v561
        %v583 = vmul.f32 %v573, %v562
        %v584 = vmul.f32 %v574, %v563
        %v585 = vmul.f32 %v575, %v564
        %v586 = vmul.f32 %v571, %v565
        %v587 = vmul.f32 %v572, %v566
        %v588 = vmul.f32 %v573, %v567
        %v589 = vmul.f32 %v574, %v568
        %v590 = vmul.f32 %v575, %v569
        %v591 = vadd.f32 %v545, %v581
        %v592 = vadd.f32 %v546, %v582
        %v593 = vadd.f32 %v547, %v583
        %v594 = vadd.f32 %v548, %v584
        %v595 = vadd.f32 %v549, %v585
        %v596 = vadd.f32 %v550, %v586
        %v597 = vadd.f32 %v551, %v587
        %v598 = vadd.f32 %v552, %v588
        %v599 = vadd.f32 %v553, %v589
        %v600 = vadd.f32 %v554, %v590
        %s601 = scalar_lea.vmem %s310, 6
        %v602 = vld [vmem:[%s601] ss:$8 sm:$0xf]
        %v603 = vld [vmem:[%s601] ss:$8 sm:$0x10]
        %v604 = vor.u32 %v602, %v603
        %s605 = scalar_lea.vmem %s1, 480
        %v606 = vld [vmem:[%s605] sm:$0xff]
        %v607 = vld [vmem:[%s605 + $0x8] sm:$0xff]
        %v608 = vld [vmem:[%s605 + $0x10] sm:$0xff]
        %v609 = vld [vmem:[%s605 + $0x18] sm:$0xff]
        %v610 = vld [vmem:[%s605 + $0x20] sm:$0xff]
        %v611 = vld [vmem:[%s605 + $0x28] sm:$0x3]
        %v612 = vld [vmem:[%s605 + $0x30] sm:$0x3]
        %v613 = vld [vmem:[%s605 + $0x38] sm:$0x3]
        %v614 = vld [vmem:[%s605 + $0x40] sm:$0x3]
        %v615 = vld [vmem:[%s605 + $0x48] sm:$0x3]
        %v617 = vperm.slane %v604, 0
        %v618 = vperm.slane %v604, 1
        %v619 = vperm.slane %v604, 2
        %v620 = vperm.slane %v604, 3
        %v621 = vperm.slane %v604, 4
        %v627 = vmul.f32 %v617, %v606
        %v628 = vmul.f32 %v618, %v607
        %v629 = vmul.f32 %v619, %v608
        %v630 = vmul.f32 %v620, %v609
        %v631 = vmul.f32 %v621, %v610
        %v632 = vmul.f32 %v617, %v611
        %v633 = vmul.f32 %v618, %v612
        %v634 = vmul.f32 %v619, %v613
        %v635 = vmul.f32 %v620, %v614
        %v636 = vmul.f32 %v621, %v615
        %v637 = vadd.f32 %v591, %v627
        %v638 = vadd.f32 %v592, %v628
        %v639 = vadd.f32 %v593, %v629
        %v640 = vadd.f32 %v594, %v630
        %v641 = vadd.f32 %v595, %v631
        %v642 = vadd.f32 %v596, %v632
        %v643 = vadd.f32 %v597, %v633
        %v644 = vadd.f32 %v598, %v634
        %v645 = vadd.f32 %v599, %v635
        %v646 = vadd.f32 %v600, %v636
        %s647 = scalar_lea.vmem %s310, 7
        %v648 = vld [vmem:[%s647] ss:$8 sm:$0xf]
        %v649 = vld [vmem:[%s647] ss:$8 sm:$0x10]
        %v650 = vor.u32 %v648, %v649
        %s651 = scalar_lea.vmem %s1, 560
        %v652 = vld [vmem:[%s651] sm:$0xff]
        %v653 = vld [vmem:[%s651 + $0x8] sm:$0xff]
        %v654 = vld [vmem:[%s651 + $0x10] sm:$0xff]
        %v655 = vld [vmem:[%s651 + $0x18] sm:$0xff]
        %v656 = vld [vmem:[%s651 + $0x20] sm:$0xff]
        %v657 = vld [vmem:[%s651 + $0x28] sm:$0x3]
        %v658 = vld [vmem:[%s651 + $0x30] sm:$0x3]
        %v659 = vld [vmem:[%s651 + $0x38] sm:$0x3]
        %v660 = vld [vmem:[%s651 + $0x40] sm:$0x3]
        %v661 = vld [vmem:[%s651 + $0x48] sm:$0x3]
        %v663 = vperm.slane %v650, 0
        %v664 = vperm.slane %v650, 1
        %v665 = vperm.slane %v650, 2
        %v666 = vperm.slane %v650, 3
        %v667 = vperm.slane %v650, 4
        %v673 = vmul.f32 %v663, %v652
        %v674 = vmul.f32 %v664, %v653
        %v675 = vmul.f32 %v665, %v654
        %v676 = vmul.f32 %v666, %v655
        %v677 = vmul.f32 %v667, %v656
        %v678 = vmul.f32 %v663, %v657
        %v679 = vmul.f32 %v664, %v658
        %v680 = vmul.f32 %v665, %v659
        %v681 = vmul.f32 %v666, %v660
        %v682 = vmul.f32 %v667, %v661
        %v683 = vadd.f32 %v637, %v673
        %v684 = vadd.f32 %v638, %v674
        %v685 = vadd.f32 %v639, %v675
        %v686 = vadd.f32 %v640, %v676
        %v687 = vadd.f32 %v641, %v677
        %v688 = vadd.f32 %v642, %v678
        %v689 = vadd.f32 %v643, %v679
        %v690 = vadd.f32 %v644, %v680
        %v691 = vadd.f32 %v645, %v681
        %v692 = vadd.f32 %v646, %v682
        %s693 = scalar_lea.vmem %s310, 40
        %v694 = vld [vmem:[%s693] ss:$8 sm:$0xf]
        %v695 = vld [vmem:[%s693] ss:$8 sm:$0x10]
        %v696 = vor.u32 %v694, %v695
        %s697 = scalar_lea.vmem %s1, 640
        %v698 = vld [vmem:[%s697] sm:$0xff]
        %v699 = vld [vmem:[%s697 + $0x8] sm:$0xff]
        %v700 = vld [vmem:[%s697 + $0x10] sm:$0xff]
        %v701 = vld [vmem:[%s697 + $0x18] sm:$0xff]
        %v702 = vld [vmem:[%s697 + $0x20] sm:$0xff]
        %v703 = vld [vmem:[%s697 + $0x28] sm:$0x3]
        %v704 = vld [vmem:[%s697 + $0x30] sm:$0x3]
        %v705 = vld [vmem:[%s697 + $0x38] sm:$0x3]
        %v706 = vld [vmem:[%s697 + $0x40] sm:$0x3]
        %v707 = vld [vmem:[%s697 + $0x48] sm:$0x3]
        %v709 = vperm.slane %v696, 0
        %v710 = vperm.slane %v696, 1
        %v711 = vperm.slane %v696, 2
        %v712 = vperm.slane %v696, 3
        %v713 = vperm.slane %v696, 4
        %v719 = vmul.f32 %v709, %v698
        %v720 = vmul.f32 %v710, %v699
        %v721 = vmul.f32 %v711, %v700
        %v722 = vmul.f32 %v712, %v701
        %v723 = vmul.f32 %v713, %v702
        %v724 = vmul.f32 %v709, %v703
        %v725 = vmul.f32 %v710, %v704
        %v726 = vmul.f32 %v711, %v705
        %v727 = vmul.f32 %v712, %v706
        %v728 = vmul.f32 %v713, %v707
        %v729 = vadd.f32 %v683, %v719
        %v730 = vadd.f32 %v684, %v720
        %v731 = vadd.f32 %v685, %v721
        %v732 = vadd.f32 %v686, %v722
        %v733 = vadd.f32 %v687, %v723
        %v734 = vadd.f32 %v688, %v724
        %v735 = vadd.f32 %v689, %v725
        %v736 = vadd.f32 %v690, %v726
        %v737 = vadd.f32 %v691, %v727
        %v738 = vadd.f32 %v692, %v728
        %s739 = scalar_lea.vmem %s310, 41
        %v740 = vld [vmem:[%s739] ss:$8 sm:$0xf]
        %v741 = vld [vmem:[%s739] ss:$8 sm:$0x10]
        %v742 = vor.u32 %v740, %v741
        %s743 = scalar_lea.vmem %s1, 720
        %v744 = vld [vmem:[%s743] sm:$0xff]
        %v745 = vld [vmem:[%s743 + $0x8] sm:$0xff]
        %v746 = vld [vmem:[%s743 + $0x10] sm:$0xff]
        %v747 = vld [vmem:[%s743 + $0x18] sm:$0xff]
        %v748 = vld [vmem:[%s743 + $0x20] sm:$0xff]
        %v749 = vld [vmem:[%s743 + $0x28] sm:$0x3]
        %v750 = vld [vmem:[%s743 + $0x30] sm:$0x3]
        %v751 = vld [vmem:[%s743 + $0x38] sm:$0x3]
        %v752 = vld [vmem:[%s743 + $0x40] sm:$0x3]
        %v753 = vld [vmem:[%s743 + $0x48] sm:$0x3]
        %v755 = vperm.slane %v742, 0
        %v756 = vperm.slane %v742, 1
        %v757 = vperm.slane %v742, 2
        %v758 = vperm.slane %v742, 3
        %v759 = vperm.slane %v742, 4
        %v765 = vmul.f32 %v755, %v744
        %v766 = vmul.f32 %v756, %v745
        %v767 = vmul.f32 %v757, %v746
        %v768 = vmul.f32 %v758, %v747
        %v769 = vmul.f32 %v759, %v748
        %v770 = vmul.f32 %v755, %v749
        %v771 = vmul.f32 %v756, %v750
        %v772 = vmul.f32 %v757, %v751
        %v773 = vmul.f32 %v758, %v752
        %v774 = vmul.f32 %v759, %v753
        %v775 = vadd.f32 %v729, %v765
        %v776 = vadd.f32 %v730, %v766
        %v777 = vadd.f32 %v731, %v767
        %v778 = vadd.f32 %v732, %v768
        %v779 = vadd.f32 %v733, %v769
        %v780 = vadd.f32 %v734, %v770
        %v781 = vadd.f32 %v735, %v771
        %v782 = vadd.f32 %v736, %v772
        %v783 = vadd.f32 %v737, %v773
        %v784 = vadd.f32 %v738, %v774
        %s785 = scalar_lea.vmem %s310, 42
        %v786 = vld [vmem:[%s785] ss:$8 sm:$0xf]
        %v787 = vld [vmem:[%s785] ss:$8 sm:$0x10]
        %v788 = vor.u32 %v786, %v787
        %s789 = scalar_lea.vmem %s1, 800
        %v790 = vld [vmem:[%s789] sm:$0xff]
        %v791 = vld [vmem:[%s789 + $0x8] sm:$0xff]
        %v792 = vld [vmem:[%s789 + $0x10] sm:$0xff]
        %v793 = vld [vmem:[%s789 + $0x18] sm:$0xff]
        %v794 = vld [vmem:[%s789 + $0x20] sm:$0xff]
        %v795 = vld [vmem:[%s789 + $0x28] sm:$0x3]
        %v796 = vld [vmem:[%s789 + $0x30] sm:$0x3]
        %v797 = vld [vmem:[%s789 + $0x38] sm:$0x3]
        %v798 = vld [vmem:[%s789 + $0x40] sm:$0x3]
        %v799 = vld [vmem:[%s789 + $0x48] sm:$0x3]
        %v801 = vperm.slane %v788, 0
        %v802 = vperm.slane %v788, 1
        %v803 = vperm.slane %v788, 2
        %v804 = vperm.slane %v788, 3
        %v805 = vperm.slane %v788, 4
        %v811 = vmul.f32 %v801, %v790
        %v812 = vmul.f32 %v802, %v791
        %v813 = vmul.f32 %v803, %v792
        %v814 = vmul.f32 %v804, %v793
        %v815 = vmul.f32 %v805, %v794
        %v816 = vmul.f32 %v801, %v795
        %v817 = vmul.f32 %v802, %v796
        %v818 = vmul.f32 %v803, %v797
        %v819 = vmul.f32 %v804, %v798
        %v820 = vmul.f32 %v805, %v799
        %v821 = vadd.f32 %v775, %v811
        %v822 = vadd.f32 %v776, %v812
        %v823 = vadd.f32 %v777, %v813
        %v824 = vadd.f32 %v778, %v814
        %v825 = vadd.f32 %v779, %v815
        %v826 = vadd.f32 %v780, %v816
        %v827 = vadd.f32 %v781, %v817
        %v828 = vadd.f32 %v782, %v818
        %v829 = vadd.f32 %v783, %v819
        %v830 = vadd.f32 %v784, %v820
        %s831 = scalar_lea.vmem %s310, 43
        %v832 = vld [vmem:[%s831] ss:$8 sm:$0xf]
        %v833 = vld [vmem:[%s831] ss:$8 sm:$0x10]
        %v834 = vor.u32 %v832, %v833
        %s835 = scalar_lea.vmem %s1, 880
        %v836 = vld [vmem:[%s835] sm:$0xff]
        %v837 = vld [vmem:[%s835 + $0x8] sm:$0xff]
        %v838 = vld [vmem:[%s835 + $0x10] sm:$0xff]
        %v839 = vld [vmem:[%s835 + $0x18] sm:$0xff]
        %v840 = vld [vmem:[%s835 + $0x20] sm:$0xff]
        %v841 = vld [vmem:[%s835 + $0x28] sm:$0x3]
        %v842 = vld [vmem:[%s835 + $0x30] sm:$0x3]
        %v843 = vld [vmem:[%s835 + $0x38] sm:$0x3]
        %v844 = vld [vmem:[%s835 + $0x40] sm:$0x3]
        %v845 = vld [vmem:[%s835 + $0x48] sm:$0x3]
        %v847 = vperm.slane %v834, 0
        %v848 = vperm.slane %v834, 1
        %v849 = vperm.slane %v834, 2
        %v850 = vperm.slane %v834, 3
        %v851 = vperm.slane %v834, 4
        %v857 = vmul.f32 %v847, %v836
        %v858 = vmul.f32 %v848, %v837
        %v859 = vmul.f32 %v849, %v838
        %v860 = vmul.f32 %v850, %v839
        %v861 = vmul.f32 %v851, %v840
        %v862 = vmul.f32 %v847, %v841
        %v863 = vmul.f32 %v848, %v842
        %v864 = vmul.f32 %v849, %v843
        %v865 = vmul.f32 %v850, %v844
        %v866 = vmul.f32 %v851, %v845
        %v867 = vadd.f32 %v821, %v857
        %v868 = vadd.f32 %v822, %v858
        %v869 = vadd.f32 %v823, %v859
        %v870 = vadd.f32 %v824, %v860
        %v871 = vadd.f32 %v825, %v861
        %v872 = vadd.f32 %v826, %v862
        %v873 = vadd.f32 %v827, %v863
        %v874 = vadd.f32 %v828, %v864
        %v875 = vadd.f32 %v829, %v865
        %v876 = vadd.f32 %v830, %v866
        %s877 = scalar_lea.vmem %s310, 44
        %v878 = vld [vmem:[%s877] ss:$8 sm:$0xf]
        %v879 = vld [vmem:[%s877] ss:$8 sm:$0x10]
        %v880 = vor.u32 %v878, %v879
        %s881 = scalar_lea.vmem %s1, 960
        %v882 = vld [vmem:[%s881] sm:$0xff]
        %v883 = vld [vmem:[%s881 + $0x8] sm:$0xff]
        %v884 = vld [vmem:[%s881 + $0x10] sm:$0xff]
        %v885 = vld [vmem:[%s881 + $0x18] sm:$0xff]
        %v886 = vld [vmem:[%s881 + $0x20] sm:$0xff]
        %v887 = vld [vmem:[%s881 + $0x28] sm:$0x3]
        %v888 = vld [vmem:[%s881 + $0x30] sm:$0x3]
        %v889 = vld [vmem:[%s881 + $0x38] sm:$0x3]
        %v890 = vld [vmem:[%s881 + $0x40] sm:$0x3]
        %v891 = vld [vmem:[%s881 + $0x48] sm:$0x3]
        %v893 = vperm.slane %v880, 0
        %v894 = vperm.slane %v880, 1
        %v895 = vperm.slane %v880, 2
        %v896 = vperm.slane %v880, 3
        %v897 = vperm.slane %v880, 4
        %v903 = vmul.f32 %v893, %v882
        %v904 = vmul.f32 %v894, %v883
        %v905 = vmul.f32 %v895, %v884
        %v906 = vmul.f32 %v896, %v885
        %v907 = vmul.f32 %v897, %v886
        %v908 = vmul.f32 %v893, %v887
        %v909 = vmul.f32 %v894, %v888
        %v910 = vmul.f32 %v895, %v889
        %v911 = vmul.f32 %v896, %v890
        %v912 = vmul.f32 %v897, %v891
        %v913 = vadd.f32 %v867, %v903
        %v914 = vadd.f32 %v868, %v904
        %v915 = vadd.f32 %v869, %v905
        %v916 = vadd.f32 %v870, %v906
        %v917 = vadd.f32 %v871, %v907
        %v918 = vadd.f32 %v872, %v908
        %v919 = vadd.f32 %v873, %v909
        %v920 = vadd.f32 %v874, %v910
        %v921 = vadd.f32 %v875, %v911
        %v922 = vadd.f32 %v876, %v912
        %s923 = scalar_lea.vmem %s310, 45
        %v924 = vld [vmem:[%s923] ss:$8 sm:$0xf]
        %v925 = vld [vmem:[%s923] ss:$8 sm:$0x10]
        %v926 = vor.u32 %v924, %v925
        %s927 = scalar_lea.vmem %s1, 1040
        %v928 = vld [vmem:[%s927] sm:$0xff]
        %v929 = vld [vmem:[%s927 + $0x8] sm:$0xff]
        %v930 = vld [vmem:[%s927 + $0x10] sm:$0xff]
        %v931 = vld [vmem:[%s927 + $0x18] sm:$0xff]
        %v932 = vld [vmem:[%s927 + $0x20] sm:$0xff]
        %v933 = vld [vmem:[%s927 + $0x28] sm:$0x3]
        %v934 = vld [vmem:[%s927 + $0x30] sm:$0x3]
        %v935 = vld [vmem:[%s927 + $0x38] sm:$0x3]
        %v936 = vld [vmem:[%s927 + $0x40] sm:$0x3]
        %v937 = vld [vmem:[%s927 + $0x48] sm:$0x3]
        %v939 = vperm.slane %v926, 0
        %v940 = vperm.slane %v926, 1
        %v941 = vperm.slane %v926, 2
        %v942 = vperm.slane %v926, 3
        %v943 = vperm.slane %v926, 4
        %v949 = vmul.f32 %v939, %v928
        %v950 = vmul.f32 %v940, %v929
        %v951 = vmul.f32 %v941, %v930
        %v952 = vmul.f32 %v942, %v931
        %v953 = vmul.f32 %v943, %v932
        %v954 = vmul.f32 %v939, %v933
        %v955 = vmul.f32 %v940, %v934
        %v956 = vmul.f32 %v941, %v935
        %v957 = vmul.f32 %v942, %v936
        %v958 = vmul.f32 %v943, %v937
        %v959 = vadd.f32 %v913, %v949
        %v960 = vadd.f32 %v914, %v950
        %v961 = vadd.f32 %v915, %v951
        %v962 = vadd.f32 %v916, %v952
        %v963 = vadd.f32 %v917, %v953
        %v964 = vadd.f32 %v918, %v954
        %v965 = vadd.f32 %v919, %v955
        %v966 = vadd.f32 %v920, %v956
        %v967 = vadd.f32 %v921, %v957
        %v968 = vadd.f32 %v922, %v958
        %s969 = scalar_lea.vmem %s310, 46
        %v970 = vld [vmem:[%s969] ss:$8 sm:$0xf]
        %v971 = vld [vmem:[%s969] ss:$8 sm:$0x10]
        %v972 = vor.u32 %v970, %v971
        %s973 = scalar_lea.vmem %s1, 1120
        %v974 = vld [vmem:[%s973] sm:$0xff]
        %v975 = vld [vmem:[%s973 + $0x8] sm:$0xff]
        %v976 = vld [vmem:[%s973 + $0x10] sm:$0xff]
        %v977 = vld [vmem:[%s973 + $0x18] sm:$0xff]
        %v978 = vld [vmem:[%s973 + $0x20] sm:$0xff]
        %v979 = vld [vmem:[%s973 + $0x28] sm:$0x3]
        %v980 = vld [vmem:[%s973 + $0x30] sm:$0x3]
        %v981 = vld [vmem:[%s973 + $0x38] sm:$0x3]
        %v982 = vld [vmem:[%s973 + $0x40] sm:$0x3]
        %v983 = vld [vmem:[%s973 + $0x48] sm:$0x3]
        %v985 = vperm.slane %v972, 0
        %v986 = vperm.slane %v972, 1
        %v987 = vperm.slane %v972, 2
        %v988 = vperm.slane %v972, 3
        %v989 = vperm.slane %v972, 4
        %v995 = vmul.f32 %v985, %v974
        %v996 = vmul.f32 %v986, %v975
        %v997 = vmul.f32 %v987, %v976
        %v998 = vmul.f32 %v988, %v977
        %v999 = vmul.f32 %v989, %v978
        %v1000 = vmul.f32 %v985, %v979
        %v1001 = vmul.f32 %v986, %v980
        %v1002 = vmul.f32 %v987, %v981
        %v1003 = vmul.f32 %v988, %v982
        %v1004 = vmul.f32 %v989, %v983
        %v1005 = vadd.f32 %v959, %v995
        %v1006 = vadd.f32 %v960, %v996
        %v1007 = vadd.f32 %v961, %v997
        %v1008 = vadd.f32 %v962, %v998
        %v1009 = vadd.f32 %v963, %v999
        %v1010 = vadd.f32 %v964, %v1000
        %v1011 = vadd.f32 %v965, %v1001
        %v1012 = vadd.f32 %v966, %v1002
        %v1013 = vadd.f32 %v967, %v1003
        %v1014 = vadd.f32 %v968, %v1004
        %s1015 = scalar_lea.vmem %s310, 47
        %v1016 = vld [vmem:[%s1015] ss:$8 sm:$0xf]
        %v1017 = vld [vmem:[%s1015] ss:$8 sm:$0x10]
        %v1018 = vor.u32 %v1016, %v1017
        %s1019 = scalar_lea.vmem %s1, 1200
        %v1020 = vld [vmem:[%s1019] sm:$0xff]
        %v1021 = vld [vmem:[%s1019 + $0x8] sm:$0xff]
        %v1022 = vld [vmem:[%s1019 + $0x10] sm:$0xff]
        %v1023 = vld [vmem:[%s1019 + $0x18] sm:$0xff]
        %v1024 = vld [vmem:[%s1019 + $0x20] sm:$0xff]
        %v1025 = vld [vmem:[%s1019 + $0x28] sm:$0x3]
        %v1026 = vld [vmem:[%s1019 + $0x30] sm:$0x3]
        %v1027 = vld [vmem:[%s1019 + $0x38] sm:$0x3]
        %v1028 = vld [vmem:[%s1019 + $0x40] sm:$0x3]
        %v1029 = vld [vmem:[%s1019 + $0x48] sm:$0x3]
        %v1031 = vperm.slane %v1018, 0
        %v1032 = vperm.slane %v1018, 1
        %v1033 = vperm.slane %v1018, 2
        %v1034 = vperm.slane %v1018, 3
        %v1035 = vperm.slane %v1018, 4
        %v1041 = vmul.f32 %v1031, %v1020
        %v1042 = vmul.f32 %v1032, %v1021
        %v1043 = vmul.f32 %v1033, %v1022
        %v1044 = vmul.f32 %v1034, %v1023
        %v1045 = vmul.f32 %v1035, %v1024
        %v1046 = vmul.f32 %v1031, %v1025
        %v1047 = vmul.f32 %v1032, %v1026
        %v1048 = vmul.f32 %v1033, %v1027
        %v1049 = vmul.f32 %v1034, %v1028
        %v1050 = vmul.f32 %v1035, %v1029
        %v1051 = vadd.f32 %v1005, %v1041
        %v1052 = vadd.f32 %v1006, %v1042
        %v1053 = vadd.f32 %v1007, %v1043
        %v1054 = vadd.f32 %v1008, %v1044
        %v1055 = vadd.f32 %v1009, %v1045
        %v1056 = vadd.f32 %v1010, %v1046
        %v1057 = vadd.f32 %v1011, %v1047
        %v1058 = vadd.f32 %v1012, %v1048
        %v1059 = vadd.f32 %v1013, %v1049
        %v1060 = vadd.f32 %v1014, %v1050
        %s1061 = scalar_lea.vmem %s310, 80
        %v1062 = vld [vmem:[%s1061] ss:$8 sm:$0xf]
        %v1063 = vld [vmem:[%s1061] ss:$8 sm:$0x10]
        %v1064 = vor.u32 %v1062, %v1063
        %s1065 = scalar_lea.vmem %s1, 1280
        %v1066 = vld [vmem:[%s1065] sm:$0xff]
        %v1067 = vld [vmem:[%s1065 + $0x8] sm:$0xff]
        %v1068 = vld [vmem:[%s1065 + $0x10] sm:$0xff]
        %v1069 = vld [vmem:[%s1065 + $0x18] sm:$0xff]
        %v1070 = vld [vmem:[%s1065 + $0x20] sm:$0xff]
        %v1071 = vld [vmem:[%s1065 + $0x28] sm:$0x3]
        %v1072 = vld [vmem:[%s1065 + $0x30] sm:$0x3]
        %v1073 = vld [vmem:[%s1065 + $0x38] sm:$0x3]
        %v1074 = vld [vmem:[%s1065 + $0x40] sm:$0x3]
        %v1075 = vld [vmem:[%s1065 + $0x48] sm:$0x3]
        %v1077 = vperm.slane %v1064, 0
        %v1078 = vperm.slane %v1064, 1
        %v1079 = vperm.slane %v1064, 2
        %v1080 = vperm.slane %v1064, 3
        %v1081 = vperm.slane %v1064, 4
        %v1087 = vmul.f32 %v1077, %v1066
        %v1088 = vmul.f32 %v1078, %v1067
        %v1089 = vmul.f32 %v1079, %v1068
        %v1090 = vmul.f32 %v1080, %v1069
        %v1091 = vmul.f32 %v1081, %v1070
        %v1092 = vmul.f32 %v1077, %v1071
        %v1093 = vmul.f32 %v1078, %v1072
        %v1094 = vmul.f32 %v1079, %v1073
        %v1095 = vmul.f32 %v1080, %v1074
        %v1096 = vmul.f32 %v1081, %v1075
        %v1097 = vadd.f32 %v1051, %v1087
        %v1098 = vadd.f32 %v1052, %v1088
        %v1099 = vadd.f32 %v1053, %v1089
        %v1100 = vadd.f32 %v1054, %v1090
        %v1101 = vadd.f32 %v1055, %v1091
        %v1102 = vadd.f32 %v1056, %v1092
        %v1103 = vadd.f32 %v1057, %v1093
        %v1104 = vadd.f32 %v1058, %v1094
        %v1105 = vadd.f32 %v1059, %v1095
        %v1106 = vadd.f32 %v1060, %v1096
        %s1107 = scalar_lea.vmem %s310, 81
        %v1108 = vld [vmem:[%s1107] ss:$8 sm:$0xf]
        %v1109 = vld [vmem:[%s1107] ss:$8 sm:$0x10]
        %v1110 = vor.u32 %v1108, %v1109
        %s1111 = scalar_lea.vmem %s1, 1360
        %v1112 = vld [vmem:[%s1111] sm:$0xff]
        %v1113 = vld [vmem:[%s1111 + $0x8] sm:$0xff]
        %v1114 = vld [vmem:[%s1111 + $0x10] sm:$0xff]
        %v1115 = vld [vmem:[%s1111 + $0x18] sm:$0xff]
        %v1116 = vld [vmem:[%s1111 + $0x20] sm:$0xff]
        %v1117 = vld [vmem:[%s1111 + $0x28] sm:$0x3]
        %v1118 = vld [vmem:[%s1111 + $0x30] sm:$0x3]
        %v1119 = vld [vmem:[%s1111 + $0x38] sm:$0x3]
        %v1120 = vld [vmem:[%s1111 + $0x40] sm:$0x3]
        %v1121 = vld [vmem:[%s1111 + $0x48] sm:$0x3]
        %v1123 = vperm.slane %v1110, 0
        %v1124 = vperm.slane %v1110, 1
        %v1125 = vperm.slane %v1110, 2
        %v1126 = vperm.slane %v1110, 3
        %v1127 = vperm.slane %v1110, 4
        %v1133 = vmul.f32 %v1123, %v1112
        %v1134 = vmul.f32 %v1124, %v1113
        %v1135 = vmul.f32 %v1125, %v1114
        %v1136 = vmul.f32 %v1126, %v1115
        %v1137 = vmul.f32 %v1127, %v1116
        %v1138 = vmul.f32 %v1123, %v1117
        %v1139 = vmul.f32 %v1124, %v1118
        %v1140 = vmul.f32 %v1125, %v1119
        %v1141 = vmul.f32 %v1126, %v1120
        %v1142 = vmul.f32 %v1127, %v1121
        %v1143 = vadd.f32 %v1097, %v1133
        %v1144 = vadd.f32 %v1098, %v1134
        %v1145 = vadd.f32 %v1099, %v1135
        %v1146 = vadd.f32 %v1100, %v1136
        %v1147 = vadd.f32 %v1101, %v1137
        %v1148 = vadd.f32 %v1102, %v1138
        %v1149 = vadd.f32 %v1103, %v1139
        %v1150 = vadd.f32 %v1104, %v1140
        %v1151 = vadd.f32 %v1105, %v1141
        %v1152 = vadd.f32 %v1106, %v1142
        %s1153 = scalar_lea.vmem %s310, 82
        %v1154 = vld [vmem:[%s1153] ss:$8 sm:$0xf]
        %v1155 = vld [vmem:[%s1153] ss:$8 sm:$0x10]
        %v1156 = vor.u32 %v1154, %v1155
        %s1157 = scalar_lea.vmem %s1, 1440
        %v1158 = vld [vmem:[%s1157] sm:$0xff]
        %v1159 = vld [vmem:[%s1157 + $0x8] sm:$0xff]
        %v1160 = vld [vmem:[%s1157 + $0x10] sm:$0xff]
        %v1161 = vld [vmem:[%s1157 + $0x18] sm:$0xff]
        %v1162 = vld [vmem:[%s1157 + $0x20] sm:$0xff]
        %v1163 = vld [vmem:[%s1157 + $0x28] sm:$0x3]
        %v1164 = vld [vmem:[%s1157 + $0x30] sm:$0x3]
        %v1165 = vld [vmem:[%s1157 + $0x38] sm:$0x3]
        %v1166 = vld [vmem:[%s1157 + $0x40] sm:$0x3]
        %v1167 = vld [vmem:[%s1157 + $0x48] sm:$0x3]
        %v1169 = vperm.slane %v1156, 0
        %v1170 = vperm.slane %v1156, 1
        %v1171 = vperm.slane %v1156, 2
        %v1172 = vperm.slane %v1156, 3
        %v1173 = vperm.slane %v1156, 4
        %v1179 = vmul.f32 %v1169, %v1158
        %v1180 = vmul.f32 %v1170, %v1159
        %v1181 = vmul.f32 %v1171, %v1160
        %v1182 = vmul.f32 %v1172, %v1161
        %v1183 = vmul.f32 %v1173, %v1162
        %v1184 = vmul.f32 %v1169, %v1163
        %v1185 = vmul.f32 %v1170, %v1164
        %v1186 = vmul.f32 %v1171, %v1165
        %v1187 = vmul.f32 %v1172, %v1166
        %v1188 = vmul.f32 %v1173, %v1167
        %v1189 = vadd.f32 %v1143, %v1179
        %v1190 = vadd.f32 %v1144, %v1180
        %v1191 = vadd.f32 %v1145, %v1181
        %v1192 = vadd.f32 %v1146, %v1182
        %v1193 = vadd.f32 %v1147, %v1183
        %v1194 = vadd.f32 %v1148, %v1184
        %v1195 = vadd.f32 %v1149, %v1185
        %v1196 = vadd.f32 %v1150, %v1186
        %v1197 = vadd.f32 %v1151, %v1187
        %v1198 = vadd.f32 %v1152, %v1188
        %s1199 = scalar_lea.vmem %s310, 83
        %v1200 = vld [vmem:[%s1199] ss:$8 sm:$0xf]
        %v1201 = vld [vmem:[%s1199] ss:$8 sm:$0x10]
        %v1202 = vor.u32 %v1200, %v1201
        %s1203 = scalar_lea.vmem %s1, 1520
        %v1204 = vld [vmem:[%s1203] sm:$0xff]
        %v1205 = vld [vmem:[%s1203 + $0x8] sm:$0xff]
        %v1206 = vld [vmem:[%s1203 + $0x10] sm:$0xff]
        %v1207 = vld [vmem:[%s1203 + $0x18] sm:$0xff]
        %v1208 = vld [vmem:[%s1203 + $0x20] sm:$0xff]
        %v1209 = vld [vmem:[%s1203 + $0x28] sm:$0x3]
        %v1210 = vld [vmem:[%s1203 + $0x30] sm:$0x3]
        %v1211 = vld [vmem:[%s1203 + $0x38] sm:$0x3]
        %v1212 = vld [vmem:[%s1203 + $0x40] sm:$0x3]
        %v1213 = vld [vmem:[%s1203 + $0x48] sm:$0x3]
        %v1215 = vperm.slane %v1202, 0
        %v1216 = vperm.slane %v1202, 1
        %v1217 = vperm.slane %v1202, 2
        %v1218 = vperm.slane %v1202, 3
        %v1219 = vperm.slane %v1202, 4
        %v1225 = vmul.f32 %v1215, %v1204
        %v1226 = vmul.f32 %v1216, %v1205
        %v1227 = vmul.f32 %v1217, %v1206
        %v1228 = vmul.f32 %v1218, %v1207
        %v1229 = vmul.f32 %v1219, %v1208
        %v1230 = vmul.f32 %v1215, %v1209
        %v1231 = vmul.f32 %v1216, %v1210
        %v1232 = vmul.f32 %v1217, %v1211
        %v1233 = vmul.f32 %v1218, %v1212
        %v1234 = vmul.f32 %v1219, %v1213
        %v1235 = vadd.f32 %v1189, %v1225
        %v1236 = vadd.f32 %v1190, %v1226
        %v1237 = vadd.f32 %v1191, %v1227
        %v1238 = vadd.f32 %v1192, %v1228
        %v1239 = vadd.f32 %v1193, %v1229
        %v1240 = vadd.f32 %v1194, %v1230
        %v1241 = vadd.f32 %v1195, %v1231
        %v1242 = vadd.f32 %v1196, %v1232
        %v1243 = vadd.f32 %v1197, %v1233
        %v1244 = vadd.f32 %v1198, %v1234
        %s1245 = scalar_lea.vmem %s310, 84
        %v1246 = vld [vmem:[%s1245] ss:$8 sm:$0xf]
        %v1247 = vld [vmem:[%s1245] ss:$8 sm:$0x10]
        %v1248 = vor.u32 %v1246, %v1247
        %s1249 = scalar_lea.vmem %s1, 1600
        %v1250 = vld [vmem:[%s1249] sm:$0xff]
        %v1251 = vld [vmem:[%s1249 + $0x8] sm:$0xff]
        %v1252 = vld [vmem:[%s1249 + $0x10] sm:$0xff]
        %v1253 = vld [vmem:[%s1249 + $0x18] sm:$0xff]
        %v1254 = vld [vmem:[%s1249 + $0x20] sm:$0xff]
        %v1255 = vld [vmem:[%s1249 + $0x28] sm:$0x3]
        %v1256 = vld [vmem:[%s1249 + $0x30] sm:$0x3]
        %v1257 = vld [vmem:[%s1249 + $0x38] sm:$0x3]
        %v1258 = vld [vmem:[%s1249 + $0x40] sm:$0x3]
        %v1259 = vld [vmem:[%s1249 + $0x48] sm:$0x3]
        %v1261 = vperm.slane %v1248, 0
        %v1262 = vperm.slane %v1248, 1
        %v1263 = vperm.slane %v1248, 2
        %v1264 = vperm.slane %v1248, 3
        %v1265 = vperm.slane %v1248, 4
        %v1271 = vmul.f32 %v1261, %v1250
        %v1272 = vmul.f32 %v1262, %v1251
        %v1273 = vmul.f32 %v1263, %v1252
        %v1274 = vmul.f32 %v1264, %v1253
        %v1275 = vmul.f32 %v1265, %v1254
        %v1276 = vmul.f32 %v1261, %v1255
        %v1277 = vmul.f32 %v1262, %v1256
        %v1278 = vmul.f32 %v1263, %v1257
        %v1279 = vmul.f32 %v1264, %v1258
        %v1280 = vmul.f32 %v1265, %v1259
        %v1281 = vadd.f32 %v1235, %v1271
        %v1282 = vadd.f32 %v1236, %v1272
        %v1283 = vadd.f32 %v1237, %v1273
        %v1284 = vadd.f32 %v1238, %v1274
        %v1285 = vadd.f32 %v1239, %v1275
        %v1286 = vadd.f32 %v1240, %v1276
        %v1287 = vadd.f32 %v1241, %v1277
        %v1288 = vadd.f32 %v1242, %v1278
        %v1289 = vadd.f32 %v1243, %v1279
        %v1290 = vadd.f32 %v1244, %v1280
        %s1291 = scalar_lea.vmem %s310, 85
        %v1292 = vld [vmem:[%s1291] ss:$8 sm:$0xf]
        %v1293 = vld [vmem:[%s1291] ss:$8 sm:$0x10]
        %v1294 = vor.u32 %v1292, %v1293
        %s1295 = scalar_lea.vmem %s1, 1680
        %v1296 = vld [vmem:[%s1295] sm:$0xff]
        %v1297 = vld [vmem:[%s1295 + $0x8] sm:$0xff]
        %v1298 = vld [vmem:[%s1295 + $0x10] sm:$0xff]
        %v1299 = vld [vmem:[%s1295 + $0x18] sm:$0xff]
        %v1300 = vld [vmem:[%s1295 + $0x20] sm:$0xff]
        %v1301 = vld [vmem:[%s1295 + $0x28] sm:$0x3]
        %v1302 = vld [vmem:[%s1295 + $0x30] sm:$0x3]
        %v1303 = vld [vmem:[%s1295 + $0x38] sm:$0x3]
        %v1304 = vld [vmem:[%s1295 + $0x40] sm:$0x3]
        %v1305 = vld [vmem:[%s1295 + $0x48] sm:$0x3]
        %v1307 = vperm.slane %v1294, 0
        %v1308 = vperm.slane %v1294, 1
        %v1309 = vperm.slane %v1294, 2
        %v1310 = vperm.slane %v1294, 3
        %v1311 = vperm.slane %v1294, 4
        %v1317 = vmul.f32 %v1307, %v1296
        %v1318 = vmul.f32 %v1308, %v1297
        %v1319 = vmul.f32 %v1309, %v1298
        %v1320 = vmul.f32 %v1310, %v1299
        %v1321 = vmul.f32 %v1311, %v1300
        %v1322 = vmul.f32 %v1307, %v1301
        %v1323 = vmul.f32 %v1308, %v1302
        %v1324 = vmul.f32 %v1309, %v1303
        %v1325 = vmul.f32 %v1310, %v1304
        %v1326 = vmul.f32 %v1311, %v1305
        %v1327 = vadd.f32 %v1281, %v1317
        %v1328 = vadd.f32 %v1282, %v1318
        %v1329 = vadd.f32 %v1283, %v1319
        %v1330 = vadd.f32 %v1284, %v1320
        %v1331 = vadd.f32 %v1285, %v1321
        %v1332 = vadd.f32 %v1286, %v1322
        %v1333 = vadd.f32 %v1287, %v1323
        %v1334 = vadd.f32 %v1288, %v1324
        %v1335 = vadd.f32 %v1289, %v1325
        %v1336 = vadd.f32 %v1290, %v1326
        %s1337 = scalar_lea.vmem %s310, 86
        %v1338 = vld [vmem:[%s1337] ss:$8 sm:$0xf]
        %v1339 = vld [vmem:[%s1337] ss:$8 sm:$0x10]
        %v1340 = vor.u32 %v1338, %v1339
        %s1341 = scalar_lea.vmem %s1, 1760
        %v1342 = vld [vmem:[%s1341] sm:$0xff]
        %v1343 = vld [vmem:[%s1341 + $0x8] sm:$0xff]
        %v1344 = vld [vmem:[%s1341 + $0x10] sm:$0xff]
        %v1345 = vld [vmem:[%s1341 + $0x18] sm:$0xff]
        %v1346 = vld [vmem:[%s1341 + $0x20] sm:$0xff]
        %v1347 = vld [vmem:[%s1341 + $0x28] sm:$0x3]
        %v1348 = vld [vmem:[%s1341 + $0x30] sm:$0x3]
        %v1349 = vld [vmem:[%s1341 + $0x38] sm:$0x3]
        %v1350 = vld [vmem:[%s1341 + $0x40] sm:$0x3]
        %v1351 = vld [vmem:[%s1341 + $0x48] sm:$0x3]
        %v1353 = vperm.slane %v1340, 0
        %v1354 = vperm.slane %v1340, 1
        %v1355 = vperm.slane %v1340, 2
        %v1356 = vperm.slane %v1340, 3
        %v1357 = vperm.slane %v1340, 4
        %v1363 = vmul.f32 %v1353, %v1342
        %v1364 = vmul.f32 %v1354, %v1343
        %v1365 = vmul.f32 %v1355, %v1344
        %v1366 = vmul.f32 %v1356, %v1345
        %v1367 = vmul.f32 %v1357, %v1346
        %v1368 = vmul.f32 %v1353, %v1347
        %v1369 = vmul.f32 %v1354, %v1348
        %v1370 = vmul.f32 %v1355, %v1349
        %v1371 = vmul.f32 %v1356, %v1350
        %v1372 = vmul.f32 %v1357, %v1351
        %v1373 = vadd.f32 %v1327, %v1363
        %v1374 = vadd.f32 %v1328, %v1364
        %v1375 = vadd.f32 %v1329, %v1365
        %v1376 = vadd.f32 %v1330, %v1366
        %v1377 = vadd.f32 %v1331, %v1367
        %v1378 = vadd.f32 %v1332, %v1368
        %v1379 = vadd.f32 %v1333, %v1369
        %v1380 = vadd.f32 %v1334, %v1370
        %v1381 = vadd.f32 %v1335, %v1371
        %v1382 = vadd.f32 %v1336, %v1372
        %s1383 = scalar_lea.vmem %s310, 87
        %v1384 = vld [vmem:[%s1383] ss:$8 sm:$0xf]
        %v1385 = vld [vmem:[%s1383] ss:$8 sm:$0x10]
        %v1386 = vor.u32 %v1384, %v1385
        %s1387 = scalar_lea.vmem %s1, 1840
        %v1388 = vld [vmem:[%s1387] sm:$0xff]
        %v1389 = vld [vmem:[%s1387 + $0x8] sm:$0xff]
        %v1390 = vld [vmem:[%s1387 + $0x10] sm:$0xff]
        %v1391 = vld [vmem:[%s1387 + $0x18] sm:$0xff]
        %v1392 = vld [vmem:[%s1387 + $0x20] sm:$0xff]
        %v1393 = vld [vmem:[%s1387 + $0x28] sm:$0x3]
        %v1394 = vld [vmem:[%s1387 + $0x30] sm:$0x3]
        %v1395 = vld [vmem:[%s1387 + $0x38] sm:$0x3]
        %v1396 = vld [vmem:[%s1387 + $0x40] sm:$0x3]
        %v1397 = vld [vmem:[%s1387 + $0x48] sm:$0x3]
        %v1399 = vperm.slane %v1386, 0
        %v1400 = vperm.slane %v1386, 1
        %v1401 = vperm.slane %v1386, 2
        %v1402 = vperm.slane %v1386, 3
        %v1403 = vperm.slane %v1386, 4
        %v1409 = vmul.f32 %v1399, %v1388
        %v1410 = vmul.f32 %v1400, %v1389
        %v1411 = vmul.f32 %v1401, %v1390
        %v1412 = vmul.f32 %v1402, %v1391
        %v1413 = vmul.f32 %v1403, %v1392
        %v1414 = vmul.f32 %v1399, %v1393
        %v1415 = vmul.f32 %v1400, %v1394
        %v1416 = vmul.f32 %v1401, %v1395
        %v1417 = vmul.f32 %v1402, %v1396
        %v1418 = vmul.f32 %v1403, %v1397
        %v1419 = vadd.f32 %v1373, %v1409
        %v1420 = vadd.f32 %v1374, %v1410
        %v1421 = vadd.f32 %v1375, %v1411
        %v1422 = vadd.f32 %v1376, %v1412
        %v1423 = vadd.f32 %v1377, %v1413
        %v1424 = vadd.f32 %v1378, %v1414
        %v1425 = vadd.f32 %v1379, %v1415
        %v1426 = vadd.f32 %v1380, %v1416
        %v1427 = vadd.f32 %v1381, %v1417
        %v1428 = vadd.f32 %v1382, %v1418
        %s1429 = scalar_lea.vmem %s310, 120
        %v1430 = vld [vmem:[%s1429] ss:$8 sm:$0xf]
        %v1431 = vld [vmem:[%s1429] ss:$8 sm:$0x10]
        %v1432 = vor.u32 %v1430, %v1431
        %s1433 = scalar_lea.vmem %s1, 1920
        %v1434 = vld [vmem:[%s1433] sm:$0xff]
        %v1435 = vld [vmem:[%s1433 + $0x8] sm:$0xff]
        %v1436 = vld [vmem:[%s1433 + $0x10] sm:$0xff]
        %v1437 = vld [vmem:[%s1433 + $0x18] sm:$0xff]
        %v1438 = vld [vmem:[%s1433 + $0x20] sm:$0xff]
        %v1439 = vld [vmem:[%s1433 + $0x28] sm:$0x3]
        %v1440 = vld [vmem:[%s1433 + $0x30] sm:$0x3]
        %v1441 = vld [vmem:[%s1433 + $0x38] sm:$0x3]
        %v1442 = vld [vmem:[%s1433 + $0x40] sm:$0x3]
        %v1443 = vld [vmem:[%s1433 + $0x48] sm:$0x3]
        %v1445 = vperm.slane %v1432, 0
        %v1446 = vperm.slane %v1432, 1
        %v1447 = vperm.slane %v1432, 2
        %v1448 = vperm.slane %v1432, 3
        %v1449 = vperm.slane %v1432, 4
        %v1455 = vmul.f32 %v1445, %v1434
        %v1456 = vmul.f32 %v1446, %v1435
        %v1457 = vmul.f32 %v1447, %v1436
        %v1458 = vmul.f32 %v1448, %v1437
        %v1459 = vmul.f32 %v1449, %v1438
        %v1460 = vmul.f32 %v1445, %v1439
        %v1461 = vmul.f32 %v1446, %v1440
        %v1462 = vmul.f32 %v1447, %v1441
        %v1463 = vmul.f32 %v1448, %v1442
        %v1464 = vmul.f32 %v1449, %v1443
        %v1465 = vadd.f32 %v1419, %v1455
        %v1466 = vadd.f32 %v1420, %v1456
        %v1467 = vadd.f32 %v1421, %v1457
        %v1468 = vadd.f32 %v1422, %v1458
        %v1469 = vadd.f32 %v1423, %v1459
        %v1470 = vadd.f32 %v1424, %v1460
        %v1471 = vadd.f32 %v1425, %v1461
        %v1472 = vadd.f32 %v1426, %v1462
        %v1473 = vadd.f32 %v1427, %v1463
        %v1474 = vadd.f32 %v1428, %v1464
        %1475 = vst [vmem:[%s315] sm:$0xff] %v1465
        %1476 = vst [vmem:[%s315 + $0x8] sm:$0xff] %v1466
        %1477 = vst [vmem:[%s315 + $0x10] sm:$0xff] %v1467
        %1478 = vst [vmem:[%s315 + $0x18] sm:$0xff] %v1468
        %vm1479 = vcmask 523264
        %1480 = vst.msk [vmem:[%s315 + $0x20] sm:$0xff] %vm1479, %v1469
        %1481 = vst [vmem:[%s315 + $0x28] sm:$0x3] %v1470
        %1482 = vst [vmem:[%s315 + $0x30] sm:$0x3] %v1471
        %1483 = vst [vmem:[%s315 + $0x38] sm:$0x3] %v1472
        %1484 = vst [vmem:[%s315 + $0x40] sm:$0x3] %v1473
        %vm1485 = vcmask 517120
        %1486 = vst.msk [vmem:[%s315 + $0x48] sm:$0x3] %vm1485, %v1474
        %v1487 = vld [vmem:[%s4] sm:$0x1]
        %v1488 = vmax.f32 %v1465, 0.0
        %v1489 = vmax.f32 %v1466, 0.0
        %v1490 = vmax.f32 %v1467, 0.0
        %v1491 = vmax.f32 %v1468, 0.0
        %v1492 = vmax.f32 %v1469, 0.0
        %v1493 = vpack.c.bf16 %v1489, %v1488
        %v1494 = vpack.c.bf16 %v1491, %v1490
        %v1495 = vpack.c.bf16 %v1492, %v1492
        %v1496 = vld [vmem:[%s3] sm:$0xf]
        %v1497 = vld [vmem:[%s3 + $0x4] sm:$0xf]
        %v1498 = vld [vmem:[%s3 + $0x8] sm:$0xf]
        %v1499 = vld [vmem:[%s3 + $0xc] sm:$0xf]
        %v1500 = vld [vmem:[%s3 + $0x10] sm:$0xf]
        %v1501 = vld [vmem:[%s3 + $0x14] sm:$0xf]
        %v1502 = vld [vmem:[%s3 + $0x18] sm:$0xf]
        %v1503 = vld [vmem:[%s3 + $0x1c] sm:$0xf]
        %v1504 = vld [vmem:[%s3 + $0x20] sm:$0xf]
        %v1505 = vld [vmem:[%s3 + $0x24] sm:$0xf]
        %v1506 = vld [vmem:[%s3 + $0x28] sm:$0xf]
        %v1507 = vld [vmem:[%s3 + $0x2c] sm:$0xf]
        %v1508 = vld [vmem:[%s3 + $0x30] sm:$0xf]
        %v1509 = vld [vmem:[%s3 + $0x34] sm:$0xf]
        %v1510 = vld [vmem:[%s3 + $0x38] sm:$0xf]
        %v1511 = vld [vmem:[%s3 + $0x3c] sm:$0xf]
        %v1512 = vld [vmem:[%s3 + $0x40] sm:$0xf]
        %v1513 = vld [vmem:[%s3 + $0x44] sm:$0xf]
        %v1514 = vld [vmem:[%s3 + $0x48] sm:$0xf]
        %v1515 = vld [vmem:[%s3 + $0x4c] sm:$0xf]
        %v1516 = vld [vmem:[%s3 + $0x50] sm:$0xf]
        %v1517 = vld [vmem:[%s3 + $0x54] sm:$0xf]
        %v1518 = vld [vmem:[%s3 + $0x58] sm:$0xf]
        %v1519 = vld [vmem:[%s3 + $0x5c] sm:$0xf]
        %v1520 = vld [vmem:[%s3 + $0x60] sm:$0xf]
        %v1521 = vld [vmem:[%s3 + $0x64] sm:$0xf]
        %v1522 = vld [vmem:[%s3 + $0x68] sm:$0xf]
        %v1523 = vld [vmem:[%s3 + $0x6c] sm:$0xf]
        %v1524 = vld [vmem:[%s3 + $0x70] sm:$0xf]
        %v1525 = vld [vmem:[%s3 + $0x74] sm:$0xf]
        %v1526 = vld [vmem:[%s3 + $0x78] sm:$0xf]
        %v1527 = vld [vmem:[%s3 + $0x7c] sm:$0xf]
        %v1528 = vld [vmem:[%s3 + $0x80] sm:$0xf]
        %v1529 = vld [vmem:[%s3 + $0x84] sm:$0xf]
        %v1530 = vld [vmem:[%s3 + $0x88] sm:$0xf]
        %v1531 = vld [vmem:[%s3 + $0x8c] sm:$0xf]
        %v1532 = vld [vmem:[%s3 + $0x90] sm:$0xf]
        %v1533 = vld [vmem:[%s3 + $0x94] sm:$0xf]
        %v1534 = vld [vmem:[%s3 + $0x98] sm:$0xf]
        %v1535 = vld [vmem:[%s3 + $0x9c] sm:$0xf]
        %v1536 = vld [vmem:[%s3 + $0xa0] sm:$0xf]
        %v1537 = vld [vmem:[%s3 + $0xa4] sm:$0xf]
        %v1538 = vld [vmem:[%s3 + $0xa8] sm:$0xf]
        %v1539 = vld [vmem:[%s3 + $0xac] sm:$0xf]
        %v1540 = vld [vmem:[%s3 + $0xb0] sm:$0xf]
        %v1541 = vld [vmem:[%s3 + $0xb4] sm:$0xf]
        %v1542 = vld [vmem:[%s3 + $0xb8] sm:$0xf]
        %v1543 = vld [vmem:[%s3 + $0xbc] sm:$0xf]
        %v1544 = vld [vmem:[%s3 + $0xc0] sm:$0xf]
        %v1545 = vld [vmem:[%s3 + $0xc4] sm:$0xf]
        %v1546 = vld [vmem:[%s3 + $0xc8] sm:$0xf]
        %v1547 = vld [vmem:[%s3 + $0xcc] sm:$0xf]
        %v1548 = vld [vmem:[%s3 + $0xd0] sm:$0xf]
        %v1549 = vld [vmem:[%s3 + $0xd4] sm:$0xf]
        %v1550 = vld [vmem:[%s3 + $0xd8] sm:$0xf]
        %v1551 = vld [vmem:[%s3 + $0xdc] sm:$0xf]
        %v1552 = vld [vmem:[%s3 + $0xe0] sm:$0xf]
        %v1553 = vld [vmem:[%s3 + $0xe4] sm:$0xf]
        %v1554 = vld [vmem:[%s3 + $0xe8] sm:$0xf]
        %v1555 = vld [vmem:[%s3 + $0xec] sm:$0xf]
        %v1556 = vld [vmem:[%s3 + $0xf0] sm:$0xf]
        %v1557 = vld [vmem:[%s3 + $0xf4] sm:$0xf]
        %v1558 = vld [vmem:[%s3 + $0xf8] sm:$0xf]
        %v1559 = vld [vmem:[%s3 + $0xfc] sm:$0xf]
        %v1560 = vld [vmem:[%s3 + $0x100] sm:$0xf]
        %v1561 = vld [vmem:[%s3 + $0x104] sm:$0xf]
        %v1562 = vld [vmem:[%s3 + $0x108] sm:$0xf]
        %v1563 = vld [vmem:[%s3 + $0x10c] sm:$0xf]
        %v1564 = vld [vmem:[%s3 + $0x110] sm:$0xf]
        %v1565 = vld [vmem:[%s3 + $0x114] sm:$0xf]
        %v1566 = vld [vmem:[%s3 + $0x118] sm:$0xf]
        %v1567 = vld [vmem:[%s3 + $0x11c] sm:$0xf]
        %v1571 = vunpack.c.l.b16 %v1493
        %v1572 = vunpack.c.h.b16 %v1493
        %v1573 = vunpack.c.l.b16 %v1494
        %v1574 = vunpack.c.h.b16 %v1494
        %v1575 = vunpack.c.l.b16 %v1495
        %v1576 = vpack.c.b16 %v1571, %v1571
        %v1577 = vpack.c.b16 %v1572, %v1572
        %v1578 = vpack.c.b16 %v1573, %v1573
        %v1579 = vpack.c.b16 %v1574, %v1574
        %v1580 = vpack.c.b16 %v1575, %v1575
        %v1657 = vunpack.c.l.b16 %v1496
        %v1658 = vunpack.c.l.b16 %v1497
        %v1659 = vunpack.c.l.b16 %v1498
        %v1660 = vunpack.c.l.b16 %v1499
        %v1661 = vunpack.c.l.b16 %v1500
        %v1662 = vunpack.c.l.b16 %v1501
        %v1663 = vunpack.c.l.b16 %v1502
        %v1664 = vunpack.c.l.b16 %v1503
        %v1665 = vunpack.c.l.b16 %v1504
        %v1666 = vunpack.c.l.b16 %v1505
        %v1667 = vunpack.c.l.b16 %v1506
        %v1668 = vunpack.c.l.b16 %v1507
        %v1669 = vunpack.c.l.b16 %v1508
        %v1670 = vunpack.c.l.b16 %v1509
        %v1671 = vunpack.c.l.b16 %v1510
        %v1672 = vunpack.c.l.b16 %v1511
        %v1673 = vunpack.c.l.b16 %v1512
        %v1674 = vunpack.c.l.b16 %v1513
        %v1675 = vunpack.c.l.b16 %v1514
        %v1676 = vunpack.c.l.b16 %v1515
        %v1677 = vunpack.c.l.b16 %v1516
        %v1678 = vunpack.c.l.b16 %v1517
        %v1679 = vunpack.c.l.b16 %v1518
        %v1680 = vunpack.c.l.b16 %v1519
        %v1681 = vunpack.c.l.b16 %v1520
        %v1682 = vunpack.c.l.b16 %v1521
        %v1683 = vunpack.c.l.b16 %v1522
        %v1684 = vunpack.c.l.b16 %v1523
        %v1685 = vunpack.c.l.b16 %v1524
        %v1686 = vunpack.c.l.b16 %v1525
        %v1687 = vunpack.c.l.b16 %v1526
        %v1688 = vunpack.c.l.b16 %v1527
        %v1689 = vunpack.c.l.b16 %v1528
        %v1690 = vunpack.c.l.b16 %v1529
        %v1691 = vunpack.c.l.b16 %v1530
        %v1692 = vunpack.c.l.b16 %v1531
        %v1693 = vunpack.c.l.b16 %v1532
        %v1694 = vunpack.c.l.b16 %v1533
        %v1695 = vunpack.c.l.b16 %v1534
        %v1696 = vunpack.c.l.b16 %v1535
        %v1697 = vunpack.c.l.b16 %v1536
        %v1698 = vunpack.c.l.b16 %v1537
        %v1699 = vunpack.c.l.b16 %v1538
        %v1700 = vunpack.c.l.b16 %v1539
        %v1701 = vunpack.c.l.b16 %v1540
        %v1702 = vunpack.c.l.b16 %v1541
        %v1703 = vunpack.c.l.b16 %v1542
        %v1704 = vunpack.c.l.b16 %v1543
        %v1705 = vunpack.c.l.b16 %v1544
        %v1706 = vunpack.c.l.b16 %v1545
        %v1707 = vunpack.c.l.b16 %v1546
        %v1708 = vunpack.c.l.b16 %v1547
        %v1709 = vunpack.c.l.b16 %v1548
        %v1710 = vunpack.c.l.b16 %v1549
        %v1711 = vunpack.c.l.b16 %v1550
        %v1712 = vunpack.c.l.b16 %v1551
        %v1713 = vunpack.c.l.b16 %v1552
        %v1714 = vunpack.c.l.b16 %v1553
        %v1715 = vunpack.c.l.b16 %v1554
        %v1716 = vunpack.c.l.b16 %v1555
        %v1717 = vunpack.c.l.b16 %v1556
        %v1718 = vunpack.c.l.b16 %v1557
        %v1719 = vunpack.c.l.b16 %v1558
        %v1720 = vunpack.c.l.b16 %v1559
        %v1721 = vunpack.c.l.b16 %v1560
        %v1722 = vunpack.c.l.b16 %v1561
        %v1723 = vunpack.c.l.b16 %v1562
        %v1724 = vunpack.c.l.b16 %v1563
        %v1725 = vunpack.c.l.b16 %v1564
        %v1726 = vunpack.c.l.b16 %v1565
        %v1727 = vunpack.c.l.b16 %v1566
        %v1728 = vunpack.c.l.b16 %v1567
        %v1729 = vpack.c.b16 %v1658, %v1657
        %v1730 = vpack.c.b16 %v1660, %v1659
        %v1731 = vpack.c.b16 %v1662, %v1661
        %v1732 = vpack.c.b16 %v1664, %v1663
        %v1733 = vpack.c.b16 %v1666, %v1665
        %v1734 = vpack.c.b16 %v1668, %v1667
        %v1735 = vpack.c.b16 %v1670, %v1669
        %v1736 = vpack.c.b16 %v1672, %v1671
        %v1737 = vpack.c.b16 %v1674, %v1673
        %v1738 = vpack.c.b16 %v1676, %v1675
        %v1739 = vpack.c.b16 %v1678, %v1677
        %v1740 = vpack.c.b16 %v1680, %v1679
        %v1741 = vpack.c.b16 %v1682, %v1681
        %v1742 = vpack.c.b16 %v1684, %v1683
        %v1743 = vpack.c.b16 %v1686, %v1685
        %v1744 = vpack.c.b16 %v1688, %v1687
        %v1745 = vpack.c.b16 %v1690, %v1689
        %v1746 = vpack.c.b16 %v1692, %v1691
        %v1747 = vpack.c.b16 %v1694, %v1693
        %v1748 = vpack.c.b16 %v1696, %v1695
        %v1749 = vpack.c.b16 %v1698, %v1697
        %v1750 = vpack.c.b16 %v1700, %v1699
        %v1751 = vpack.c.b16 %v1702, %v1701
        %v1752 = vpack.c.b16 %v1704, %v1703
        %v1753 = vpack.c.b16 %v1706, %v1705
        %v1754 = vpack.c.b16 %v1708, %v1707
        %v1755 = vpack.c.b16 %v1710, %v1709
        %v1756 = vpack.c.b16 %v1712, %v1711
        %v1757 = vpack.c.b16 %v1714, %v1713
        %v1758 = vpack.c.b16 %v1716, %v1715
        %v1759 = vpack.c.b16 %v1718, %v1717
        %v1760 = vpack.c.b16 %v1720, %v1719
        %v1761 = vpack.c.b16 %v1722, %v1721
        %v1762 = vpack.c.b16 %v1724, %v1723
        %v1763 = vpack.c.b16 %v1726, %v1725
        %v1764 = vpack.c.b16 %v1728, %v1727
        %v1802 = vsel %vm1479, %v1580, 0
        %1804 = vmatpush.bf16.msra.mxu0 %v1736
        %1805 = vmatpush.bf16.msra.mxu0 %v1735
        %1806 = vmatpush.bf16.msra.mxu0 %v1734
        %1807 = vmatpush.bf16.msra.mxu0 %v1733
        %1808 = vmatpush.bf16.msra.mxu0 %v1732
        %1809 = vmatpush.bf16.msra.mxu0 %v1731
        %1810 = vmatpush.bf16.msra.mxu0 %v1730
        %1811 = vmatpush.bf16.msra.mxu0 %v1729
        %1812 = vmatmul.bf16.gmra.mxu0 %v1576
        %v1813 = vpop.f32.mrf.mxu0
        %v1814 = vadd.f32 0.0, %v1813
        %v1815 = vpop.f32.mrf.mxu0
        %1816 = vdwg.mxu0
        %1817 = vmatpush.bf16.msra.mxu0 %v1744
        %1818 = vmatpush.bf16.msra.mxu0 %v1743
        %1819 = vmatpush.bf16.msra.mxu0 %v1742
        %1820 = vmatpush.bf16.msra.mxu0 %v1741
        %1821 = vmatpush.bf16.msra.mxu0 %v1740
        %1822 = vmatpush.bf16.msra.mxu0 %v1739
        %1823 = vmatpush.bf16.msra.mxu0 %v1738
        %1824 = vmatpush.bf16.msra.mxu0 %v1737
        %1825 = vmatmul.bf16.gmra.mxu0 %v1577
        %v1826 = vpop.f32.mrf.mxu0
        %v1827 = vadd.f32 %v1814, %v1826
        %v1828 = vpop.f32.mrf.mxu0
        %1829 = vdwg.mxu0
        %1830 = vmatpush.bf16.msra.mxu0 %v1752
        %1831 = vmatpush.bf16.msra.mxu0 %v1751
        %1832 = vmatpush.bf16.msra.mxu0 %v1750
        %1833 = vmatpush.bf16.msra.mxu0 %v1749
        %1834 = vmatpush.bf16.msra.mxu0 %v1748
        %1835 = vmatpush.bf16.msra.mxu0 %v1747
        %1836 = vmatpush.bf16.msra.mxu0 %v1746
        %1837 = vmatpush.bf16.msra.mxu0 %v1745
        %1838 = vmatmul.bf16.gmra.mxu0 %v1578
        %v1839 = vpop.f32.mrf.mxu0
        %v1840 = vadd.f32 %v1827, %v1839
        %v1841 = vpop.f32.mrf.mxu0
        %1842 = vdwg.mxu0
        %1843 = vmatpush.bf16.msra.mxu0 %v1760
        %1844 = vmatpush.bf16.msra.mxu0 %v1759
        %1845 = vmatpush.bf16.msra.mxu0 %v1758
        %1846 = vmatpush.bf16.msra.mxu0 %v1757
        %1847 = vmatpush.bf16.msra.mxu0 %v1756
        %1848 = vmatpush.bf16.msra.mxu0 %v1755
        %1849 = vmatpush.bf16.msra.mxu0 %v1754
        %1850 = vmatpush.bf16.msra.mxu0 %v1753
        %1851 = vmatmul.bf16.gmra.mxu0 %v1579
        %v1852 = vpop.f32.mrf.mxu0
        %v1853 = vadd.f32 %v1840, %v1852
        %v1854 = vpop.f32.mrf.mxu0
        %1855 = vdwg.mxu0
        %1856 = vmatpush.bf16.msra.mxu0 0
        %1857 = vmatpush.bf16.msra.mxu0 0
        %1858 = vmatpush.bf16.msra.mxu0 0
        %1859 = vmatpush.bf16.msra.mxu0 0
        %1860 = vmatpush.bf16.msra.mxu0 %v1764
        %1861 = vmatpush.bf16.msra.mxu0 %v1763
        %1862 = vmatpush.bf16.msra.mxu0 %v1762
        %1863 = vmatpush.bf16.msra.mxu0 %v1761
        %1864 = vmatmul.bf16.gmra.mxu0 %v1802
        %v1865 = vpop.f32.mrf.mxu0
        %v1866 = vadd.f32 %v1853, %v1865
        %v1867 = vpop.f32.mrf.mxu0
        %1868 = vdwg.mxu0
        %v1869 = vadd.f32 %v1487, %v1866
        %s1870 = scalar_lea.vmem %s3, 288
        %v1871 = vld [vmem:[%s1870] sm:$0xf]
        %v1872 = vld [vmem:[%s1870 + $0x4] sm:$0xf]
        %v1873 = vld [vmem:[%s1870 + $0x8] sm:$0xf]
        %v1874 = vld [vmem:[%s1870 + $0xc] sm:$0xf]
        %v1875 = vld [vmem:[%s1870 + $0x10] sm:$0xf]
        %v1876 = vld [vmem:[%s1870 + $0x14] sm:$0xf]
        %v1877 = vld [vmem:[%s1870 + $0x18] sm:$0xf]
        %v1878 = vld [vmem:[%s1870 + $0x1c] sm:$0xf]
        %v1879 = vld [vmem:[%s1870 + $0x20] sm:$0xf]
        %v1880 = vld [vmem:[%s1870 + $0x24] sm:$0xf]
        %v1881 = vld [vmem:[%s1870 + $0x28] sm:$0xf]
        %v1882 = vld [vmem:[%s1870 + $0x2c] sm:$0xf]
        %v1883 = vld [vmem:[%s1870 + $0x30] sm:$0xf]
        %v1884 = vld [vmem:[%s1870 + $0x34] sm:$0xf]
        %v1885 = vld [vmem:[%s1870 + $0x38] sm:$0xf]
        %v1886 = vld [vmem:[%s1870 + $0x3c] sm:$0xf]
        %v1887 = vld [vmem:[%s1870 + $0x40] sm:$0xf]
        %v1888 = vld [vmem:[%s1870 + $0x44] sm:$0xf]
        %v1889 = vld [vmem:[%s1870 + $0x48] sm:$0xf]
        %v1890 = vld [vmem:[%s1870 + $0x4c] sm:$0xf]
        %v1891 = vld [vmem:[%s1870 + $0x50] sm:$0xf]
        %v1892 = vld [vmem:[%s1870 + $0x54] sm:$0xf]
        %v1893 = vld [vmem:[%s1870 + $0x58] sm:$0xf]
        %v1894 = vld [vmem:[%s1870 + $0x5c] sm:$0xf]
        %v1895 = vld [vmem:[%s1870 + $0x60] sm:$0xf]
        %v1896 = vld [vmem:[%s1870 + $0x64] sm:$0xf]
        %v1897 = vld [vmem:[%s1870 + $0x68] sm:$0xf]
        %v1898 = vld [vmem:[%s1870 + $0x6c] sm:$0xf]
        %v1899 = vld [vmem:[%s1870 + $0x70] sm:$0xf]
        %v1900 = vld [vmem:[%s1870 + $0x74] sm:$0xf]
        %v1901 = vld [vmem:[%s1870 + $0x78] sm:$0xf]
        %v1902 = vld [vmem:[%s1870 + $0x7c] sm:$0xf]
        %v1903 = vld [vmem:[%s1870 + $0x80] sm:$0xf]
        %v1904 = vld [vmem:[%s1870 + $0x84] sm:$0xf]
        %v1905 = vld [vmem:[%s1870 + $0x88] sm:$0xf]
        %v1906 = vld [vmem:[%s1870 + $0x8c] sm:$0xf]
        %v1907 = vld [vmem:[%s1870 + $0x90] sm:$0xf]
        %v1908 = vld [vmem:[%s1870 + $0x94] sm:$0xf]
        %v1909 = vld [vmem:[%s1870 + $0x98] sm:$0xf]
        %v1910 = vld [vmem:[%s1870 + $0x9c] sm:$0xf]
        %v1911 = vld [vmem:[%s1870 + $0xa0] sm:$0xf]
        %v1912 = vld [vmem:[%s1870 + $0xa4] sm:$0xf]
        %v1913 = vld [vmem:[%s1870 + $0xa8] sm:$0xf]
        %v1914 = vld [vmem:[%s1870 + $0xac] sm:$0xf]
        %v1915 = vld [vmem:[%s1870 + $0xb0] sm:$0xf]
        %v1916 = vld [vmem:[%s1870 + $0xb4] sm:$0xf]
        %v1917 = vld [vmem:[%s1870 + $0xb8] sm:$0xf]
        %v1918 = vld [vmem:[%s1870 + $0xbc] sm:$0xf]
        %v1919 = vld [vmem:[%s1870 + $0xc0] sm:$0xf]
        %v1920 = vld [vmem:[%s1870 + $0xc4] sm:$0xf]
        %v1921 = vld [vmem:[%s1870 + $0xc8] sm:$0xf]
        %v1922 = vld [vmem:[%s1870 + $0xcc] sm:$0xf]
        %v1923 = vld [vmem:[%s1870 + $0xd0] sm:$0xf]
        %v1924 = vld [vmem:[%s1870 + $0xd4] sm:$0xf]
        %v1925 = vld [vmem:[%s1870 + $0xd8] sm:$0xf]
        %v1926 = vld [vmem:[%s1870 + $0xdc] sm:$0xf]
        %v1927 = vld [vmem:[%s1870 + $0xe0] sm:$0xf]
        %v1928 = vld [vmem:[%s1870 + $0xe4] sm:$0xf]
        %v1929 = vld [vmem:[%s1870 + $0xe8] sm:$0xf]
        %v1930 = vld [vmem:[%s1870 + $0xec] sm:$0xf]
        %v1931 = vld [vmem:[%s1870 + $0xf0] sm:$0xf]
        %v1932 = vld [vmem:[%s1870 + $0xf4] sm:$0xf]
        %v1933 = vld [vmem:[%s1870 + $0xf8] sm:$0xf]
        %v1934 = vld [vmem:[%s1870 + $0xfc] sm:$0xf]
        %v1935 = vld [vmem:[%s1870 + $0x100] sm:$0xf]
        %v1936 = vld [vmem:[%s1870 + $0x104] sm:$0xf]
        %v1937 = vld [vmem:[%s1870 + $0x108] sm:$0xf]
        %v1938 = vld [vmem:[%s1870 + $0x10c] sm:$0xf]
        %v1939 = vld [vmem:[%s1870 + $0x110] sm:$0xf]
        %v1940 = vld [vmem:[%s1870 + $0x114] sm:$0xf]
        %v1941 = vld [vmem:[%s1870 + $0x118] sm:$0xf]
        %v1942 = vld [vmem:[%s1870 + $0x11c] sm:$0xf]
        %v1944 = vshrl.u32 %v1576, 16
        %v1947 = vshrl.u32 %v1577, 16
        %v1950 = vshrl.u32 %v1578, 16
        %v1953 = vshrl.u32 %v1579, 16
        %v1955 = vshrl.u32 %v1580, 16
        %v2033 = vunpack.c.l.b16 %v1871
        %v2034 = vunpack.c.l.b16 %v1872
        %v2035 = vunpack.c.l.b16 %v1873
        %v2036 = vunpack.c.l.b16 %v1874
        %v2037 = vunpack.c.l.b16 %v1875
        %v2038 = vunpack.c.l.b16 %v1876
        %v2039 = vunpack.c.l.b16 %v1877
        %v2040 = vunpack.c.l.b16 %v1878
        %v2041 = vunpack.c.l.b16 %v1879
        %v2042 = vunpack.c.l.b16 %v1880
        %v2043 = vunpack.c.l.b16 %v1881
        %v2044 = vunpack.c.l.b16 %v1882
        %v2045 = vunpack.c.l.b16 %v1883
        %v2046 = vunpack.c.l.b16 %v1884
        %v2047 = vunpack.c.l.b16 %v1885
        %v2048 = vunpack.c.l.b16 %v1886
        %v2049 = vunpack.c.l.b16 %v1887
        %v2050 = vunpack.c.l.b16 %v1888
        %v2051 = vunpack.c.l.b16 %v1889
        %v2052 = vunpack.c.l.b16 %v1890
        %v2053 = vunpack.c.l.b16 %v1891
        %v2054 = vunpack.c.l.b16 %v1892
        %v2055 = vunpack.c.l.b16 %v1893
        %v2056 = vunpack.c.l.b16 %v1894
        %v2057 = vunpack.c.l.b16 %v1895
        %v2058 = vunpack.c.l.b16 %v1896
        %v2059 = vunpack.c.l.b16 %v1897
        %v2060 = vunpack.c.l.b16 %v1898
        %v2061 = vunpack.c.l.b16 %v1899
        %v2062 = vunpack.c.l.b16 %v1900
        %v2063 = vunpack.c.l.b16 %v1901
        %v2064 = vunpack.c.l.b16 %v1902
        %v2065 = vunpack.c.l.b16 %v1903
        %v2066 = vunpack.c.l.b16 %v1904
        %v2067 = vunpack.c.l.b16 %v1905
        %v2068 = vunpack.c.l.b16 %v1906
        %v2069 = vunpack.c.l.b16 %v1907
        %v2070 = vunpack.c.l.b16 %v1908
        %v2071 = vunpack.c.l.b16 %v1909
        %v2072 = vunpack.c.l.b16 %v1910
        %v2073 = vunpack.c.l.b16 %v1911
        %v2074 = vunpack.c.l.b16 %v1912
        %v2075 = vunpack.c.l.b16 %v1913
        %v2076 = vunpack.c.l.b16 %v1914
        %v2077 = vunpack.c.l.b16 %v1915
        %v2078 = vunpack.c.l.b16 %v1916
        %v2079 = vunpack.c.l.b16 %v1917
        %v2080 = vunpack.c.l.b16 %v1918
        %v2081 = vunpack.c.l.b16 %v1919
        %v2082 = vunpack.c.l.b16 %v1920
        %v2083 = vunpack.c.l.b16 %v1921
        %v2084 = vunpack.c.l.b16 %v1922
        %v2085 = vunpack.c.l.b16 %v1923
        %v2086 = vunpack.c.l.b16 %v1924
        %v2087 = vunpack.c.l.b16 %v1925
        %v2088 = vunpack.c.l.b16 %v1926
        %v2089 = vunpack.c.l.b16 %v1927
        %v2090 = vunpack.c.l.b16 %v1928
        %v2091 = vunpack.c.l.b16 %v1929
        %v2092 = vunpack.c.l.b16 %v1930
        %v2093 = vunpack.c.l.b16 %v1931
        %v2094 = vunpack.c.l.b16 %v1932
        %v2095 = vunpack.c.l.b16 %v1933
        %v2096 = vunpack.c.l.b16 %v1934
        %v2097 = vunpack.c.l.b16 %v1935
        %v2098 = vunpack.c.l.b16 %v1936
        %v2099 = vunpack.c.l.b16 %v1937
        %v2100 = vunpack.c.l.b16 %v1938
        %v2101 = vunpack.c.l.b16 %v1939
        %v2102 = vunpack.c.l.b16 %v1940
        %v2103 = vunpack.c.l.b16 %v1941
        %v2104 = vunpack.c.l.b16 %v1942
        %v2105 = vpack.c.b16 %v2034, %v2033
        %v2106 = vpack.c.b16 %v2036, %v2035
        %v2107 = vpack.c.b16 %v2038, %v2037
        %v2108 = vpack.c.b16 %v2040, %v2039
        %v2109 = vpack.c.b16 %v2042, %v2041
        %v2110 = vpack.c.b16 %v2044, %v2043
        %v2111 = vpack.c.b16 %v2046, %v2045
        %v2112 = vpack.c.b16 %v2048, %v2047
        %v2113 = vpack.c.b16 %v2050, %v2049
        %v2114 = vpack.c.b16 %v2052, %v2051
        %v2115 = vpack.c.b16 %v2054, %v2053
        %v2116 = vpack.c.b16 %v2056, %v2055
        %v2117 = vpack.c.b16 %v2058, %v2057
        %v2118 = vpack.c.b16 %v2060, %v2059
        %v2119 = vpack.c.b16 %v2062, %v2061
        %v2120 = vpack.c.b16 %v2064, %v2063
        %v2121 = vpack.c.b16 %v2066, %v2065
        %v2122 = vpack.c.b16 %v2068, %v2067
        %v2123 = vpack.c.b16 %v2070, %v2069
        %v2124 = vpack.c.b16 %v2072, %v2071
        %v2125 = vpack.c.b16 %v2074, %v2073
        %v2126 = vpack.c.b16 %v2076, %v2075
        %v2127 = vpack.c.b16 %v2078, %v2077
        %v2128 = vpack.c.b16 %v2080, %v2079
        %v2129 = vpack.c.b16 %v2082, %v2081
        %v2130 = vpack.c.b16 %v2084, %v2083
        %v2131 = vpack.c.b16 %v2086, %v2085
        %v2132 = vpack.c.b16 %v2088, %v2087
        %v2133 = vpack.c.b16 %v2090, %v2089
        %v2134 = vpack.c.b16 %v2092, %v2091
        %v2135 = vpack.c.b16 %v2094, %v2093
        %v2136 = vpack.c.b16 %v2096, %v2095
        %v2137 = vpack.c.b16 %v2098, %v2097
        %v2138 = vpack.c.b16 %v2100, %v2099
        %v2139 = vpack.c.b16 %v2102, %v2101
        %v2140 = vpack.c.b16 %v2104, %v2103
        %v2178 = vsel %vm1479, %v1955, 0
        %2180 = vmatpush.bf16.msra.mxu0 %v2112
        %2181 = vmatpush.bf16.msra.mxu0 %v2111
        %2182 = vmatpush.bf16.msra.mxu0 %v2110
        %2183 = vmatpush.bf16.msra.mxu0 %v2109
        %2184 = vmatpush.bf16.msra.mxu0 %v2108
        %2185 = vmatpush.bf16.msra.mxu0 %v2107
        %2186 = vmatpush.bf16.msra.mxu0 %v2106
        %2187 = vmatpush.bf16.msra.mxu0 %v2105
        %2188 = vmatmul.bf16.gmra.mxu0 %v1944
        %v2189 = vpop.f32.mrf.mxu0
        %v2190 = vadd.f32 0.0, %v2189
        %v2191 = vpop.f32.mrf.mxu0
        %2192 = vdwg.mxu0
        %2193 = vmatpush.bf16.msra.mxu0 %v2120
        %2194 = vmatpush.bf16.msra.mxu0 %v2119
        %2195 = vmatpush.bf16.msra.mxu0 %v2118
        %2196 = vmatpush.bf16.msra.mxu0 %v2117
        %2197 = vmatpush.bf16.msra.mxu0 %v2116
        %2198 = vmatpush.bf16.msra.mxu0 %v2115
        %2199 = vmatpush.bf16.msra.mxu0 %v2114
        %2200 = vmatpush.bf16.msra.mxu0 %v2113
        %2201 = vmatmul.bf16.gmra.mxu0 %v1947
        %v2202 = vpop.f32.mrf.mxu0
        %v2203 = vadd.f32 %v2190, %v2202
        %v2204 = vpop.f32.mrf.mxu0
        %2205 = vdwg.mxu0
        %2206 = vmatpush.bf16.msra.mxu0 %v2128
        %2207 = vmatpush.bf16.msra.mxu0 %v2127
        %2208 = vmatpush.bf16.msra.mxu0 %v2126
        %2209 = vmatpush.bf16.msra.mxu0 %v2125
        %2210 = vmatpush.bf16.msra.mxu0 %v2124
        %2211 = vmatpush.bf16.msra.mxu0 %v2123
        %2212 = vmatpush.bf16.msra.mxu0 %v2122
        %2213 = vmatpush.bf16.msra.mxu0 %v2121
        %2214 = vmatmul.bf16.gmra.mxu0 %v1950
        %v2215 = vpop.f32.mrf.mxu0
        %v2216 = vadd.f32 %v2203, %v2215
        %v2217 = vpop.f32.mrf.mxu0
        %2218 = vdwg.mxu0
        %2219 = vmatpush.bf16.msra.mxu0 %v2136
        %2220 = vmatpush.bf16.msra.mxu0 %v2135
        %2221 = vmatpush.bf16.msra.mxu0 %v2134
        %2222 = vmatpush.bf16.msra.mxu0 %v2133
        %2223 = vmatpush.bf16.msra.mxu0 %v2132
        %2224 = vmatpush.bf16.msra.mxu0 %v2131
        %2225 = vmatpush.bf16.msra.mxu0 %v2130
        %2226 = vmatpush.bf16.msra.mxu0 %v2129
        %2227 = vmatmul.bf16.gmra.mxu0 %v1953
        %v2228 = vpop.f32.mrf.mxu0
        %v2229 = vadd.f32 %v2216, %v2228
        %v2230 = vpop.f32.mrf.mxu0
        %2231 = vdwg.mxu0
        %2232 = vmatpush.bf16.msra.mxu0 0
        %2233 = vmatpush.bf16.msra.mxu0 0
        %2234 = vmatpush.bf16.msra.mxu0 0
        %2235 = vmatpush.bf16.msra.mxu0 0
        %2236 = vmatpush.bf16.msra.mxu0 %v2140
        %2237 = vmatpush.bf16.msra.mxu0 %v2139
        %2238 = vmatpush.bf16.msra.mxu0 %v2138
        %2239 = vmatpush.bf16.msra.mxu0 %v2137
        %2240 = vmatmul.bf16.gmra.mxu0 %v2178
        %v2241 = vpop.f32.mrf.mxu0
        %v2242 = vadd.f32 %v2229, %v2241
        %v2243 = vpop.f32.mrf.mxu0
        %2244 = vdwg.mxu0
        %v2245 = vadd.f32 %v1869, %v2242
        %s2246 = scalar_lea.vmem %s3, 576
        %v2247 = vld [vmem:[%s2246] sm:$0xf]
        %v2248 = vld [vmem:[%s2246 + $0x4] sm:$0xf]
        %v2249 = vld [vmem:[%s2246 + $0x8] sm:$0xf]
        %v2250 = vld [vmem:[%s2246 + $0xc] sm:$0xf]
        %v2251 = vld [vmem:[%s2246 + $0x10] sm:$0xf]
        %v2252 = vld [vmem:[%s2246 + $0x14] sm:$0xf]
        %v2253 = vld [vmem:[%s2246 + $0x18] sm:$0xf]
        %v2254 = vld [vmem:[%s2246 + $0x1c] sm:$0xf]
        %v2255 = vld [vmem:[%s2246 + $0x20] sm:$0xf]
        %v2256 = vld [vmem:[%s2246 + $0x24] sm:$0xf]
        %v2257 = vld [vmem:[%s2246 + $0x28] sm:$0xf]
        %v2258 = vld [vmem:[%s2246 + $0x2c] sm:$0xf]
        %v2259 = vld [vmem:[%s2246 + $0x30] sm:$0xf]
        %v2260 = vld [vmem:[%s2246 + $0x34] sm:$0xf]
        %v2261 = vld [vmem:[%s2246 + $0x38] sm:$0xf]
        %v2262 = vld [vmem:[%s2246 + $0x3c] sm:$0xf]
        %v2263 = vld [vmem:[%s2246 + $0x40] sm:$0xf]
        %v2264 = vld [vmem:[%s2246 + $0x44] sm:$0xf]
        %v2265 = vld [vmem:[%s2246 + $0x48] sm:$0xf]
        %v2266 = vld [vmem:[%s2246 + $0x4c] sm:$0xf]
        %v2267 = vld [vmem:[%s2246 + $0x50] sm:$0xf]
        %v2268 = vld [vmem:[%s2246 + $0x54] sm:$0xf]
        %v2269 = vld [vmem:[%s2246 + $0x58] sm:$0xf]
        %v2270 = vld [vmem:[%s2246 + $0x5c] sm:$0xf]
        %v2271 = vld [vmem:[%s2246 + $0x60] sm:$0xf]
        %v2272 = vld [vmem:[%s2246 + $0x64] sm:$0xf]
        %v2273 = vld [vmem:[%s2246 + $0x68] sm:$0xf]
        %v2274 = vld [vmem:[%s2246 + $0x6c] sm:$0xf]
        %v2275 = vld [vmem:[%s2246 + $0x70] sm:$0xf]
        %v2276 = vld [vmem:[%s2246 + $0x74] sm:$0xf]
        %v2277 = vld [vmem:[%s2246 + $0x78] sm:$0xf]
        %v2278 = vld [vmem:[%s2246 + $0x7c] sm:$0xf]
        %v2279 = vld [vmem:[%s2246 + $0x80] sm:$0xf]
        %v2280 = vld [vmem:[%s2246 + $0x84] sm:$0xf]
        %v2281 = vld [vmem:[%s2246 + $0x88] sm:$0xf]
        %v2282 = vld [vmem:[%s2246 + $0x8c] sm:$0xf]
        %v2283 = vld [vmem:[%s2246 + $0x90] sm:$0xf]
        %v2284 = vld [vmem:[%s2246 + $0x94] sm:$0xf]
        %v2285 = vld [vmem:[%s2246 + $0x98] sm:$0xf]
        %v2286 = vld [vmem:[%s2246 + $0x9c] sm:$0xf]
        %v2287 = vld [vmem:[%s2246 + $0xa0] sm:$0xf]
        %v2288 = vld [vmem:[%s2246 + $0xa4] sm:$0xf]
        %v2289 = vld [vmem:[%s2246 + $0xa8] sm:$0xf]
        %v2290 = vld [vmem:[%s2246 + $0xac] sm:$0xf]
        %v2291 = vld [vmem:[%s2246 + $0xb0] sm:$0xf]
        %v2292 = vld [vmem:[%s2246 + $0xb4] sm:$0xf]
        %v2293 = vld [vmem:[%s2246 + $0xb8] sm:$0xf]
        %v2294 = vld [vmem:[%s2246 + $0xbc] sm:$0xf]
        %v2295 = vld [vmem:[%s2246 + $0xc0] sm:$0xf]
        %v2296 = vld [vmem:[%s2246 + $0xc4] sm:$0xf]
        %v2297 = vld [vmem:[%s2246 + $0xc8] sm:$0xf]
        %v2298 = vld [vmem:[%s2246 + $0xcc] sm:$0xf]
        %v2299 = vld [vmem:[%s2246 + $0xd0] sm:$0xf]
        %v2300 = vld [vmem:[%s2246 + $0xd4] sm:$0xf]
        %v2301 = vld [vmem:[%s2246 + $0xd8] sm:$0xf]
        %v2302 = vld [vmem:[%s2246 + $0xdc] sm:$0xf]
        %v2303 = vld [vmem:[%s2246 + $0xe0] sm:$0xf]
        %v2304 = vld [vmem:[%s2246 + $0xe4] sm:$0xf]
        %v2305 = vld [vmem:[%s2246 + $0xe8] sm:$0xf]
        %v2306 = vld [vmem:[%s2246 + $0xec] sm:$0xf]
        %v2307 = vld [vmem:[%s2246 + $0xf0] sm:$0xf]
        %v2308 = vld [vmem:[%s2246 + $0xf4] sm:$0xf]
        %v2309 = vld [vmem:[%s2246 + $0xf8] sm:$0xf]
        %v2310 = vld [vmem:[%s2246 + $0xfc] sm:$0xf]
        %v2311 = vld [vmem:[%s2246 + $0x100] sm:$0xf]
        %v2312 = vld [vmem:[%s2246 + $0x104] sm:$0xf]
        %v2313 = vld [vmem:[%s2246 + $0x108] sm:$0xf]
        %v2314 = vld [vmem:[%s2246 + $0x10c] sm:$0xf]
        %v2315 = vld [vmem:[%s2246 + $0x110] sm:$0xf]
        %v2316 = vld [vmem:[%s2246 + $0x114] sm:$0xf]
        %v2317 = vld [vmem:[%s2246 + $0x118] sm:$0xf]
        %v2318 = vld [vmem:[%s2246 + $0x11c] sm:$0xf]
        %v2319 = vrot.slane %v1576, 1
        %v2320 = vrot.slane %v1577, 1
        %v2321 = vrot.slane %v1578, 1
        %v2322 = vrot.slane %v1579, 1
        %v2323 = vrot.slane %v1580, 1
        %v2400 = vunpack.c.l.b16 %v2247
        %v2401 = vunpack.c.l.b16 %v2248
        %v2402 = vunpack.c.l.b16 %v2249
        %v2403 = vunpack.c.l.b16 %v2250
        %v2404 = vunpack.c.l.b16 %v2251
        %v2405 = vunpack.c.l.b16 %v2252
        %v2406 = vunpack.c.l.b16 %v2253
        %v2407 = vunpack.c.l.b16 %v2254
        %v2408 = vunpack.c.l.b16 %v2255
        %v2409 = vunpack.c.l.b16 %v2256
        %v2410 = vunpack.c.l.b16 %v2257
        %v2411 = vunpack.c.l.b16 %v2258
        %v2412 = vunpack.c.l.b16 %v2259
        %v2413 = vunpack.c.l.b16 %v2260
        %v2414 = vunpack.c.l.b16 %v2261
        %v2415 = vunpack.c.l.b16 %v2262
        %v2416 = vunpack.c.l.b16 %v2263
        %v2417 = vunpack.c.l.b16 %v2264
        %v2418 = vunpack.c.l.b16 %v2265
        %v2419 = vunpack.c.l.b16 %v2266
        %v2420 = vunpack.c.l.b16 %v2267
        %v2421 = vunpack.c.l.b16 %v2268
        %v2422 = vunpack.c.l.b16 %v2269
        %v2423 = vunpack.c.l.b16 %v2270
        %v2424 = vunpack.c.l.b16 %v2271
        %v2425 = vunpack.c.l.b16 %v2272
        %v2426 = vunpack.c.l.b16 %v2273
        %v2427 = vunpack.c.l.b16 %v2274
        %v2428 = vunpack.c.l.b16 %v2275
        %v2429 = vunpack.c.l.b16 %v2276
        %v2430 = vunpack.c.l.b16 %v2277
        %v2431 = vunpack.c.l.b16 %v2278
        %v2432 = vunpack.c.l.b16 %v2279
        %v2433 = vunpack.c.l.b16 %v2280
        %v2434 = vunpack.c.l.b16 %v2281
        %v2435 = vunpack.c.l.b16 %v2282
        %v2436 = vunpack.c.l.b16 %v2283
        %v2437 = vunpack.c.l.b16 %v2284
        %v2438 = vunpack.c.l.b16 %v2285
        %v2439 = vunpack.c.l.b16 %v2286
        %v2440 = vunpack.c.l.b16 %v2287
        %v2441 = vunpack.c.l.b16 %v2288
        %v2442 = vunpack.c.l.b16 %v2289
        %v2443 = vunpack.c.l.b16 %v2290
        %v2444 = vunpack.c.l.b16 %v2291
        %v2445 = vunpack.c.l.b16 %v2292
        %v2446 = vunpack.c.l.b16 %v2293
        %v2447 = vunpack.c.l.b16 %v2294
        %v2448 = vunpack.c.l.b16 %v2295
        %v2449 = vunpack.c.l.b16 %v2296
        %v2450 = vunpack.c.l.b16 %v2297
        %v2451 = vunpack.c.l.b16 %v2298
        %v2452 = vunpack.c.l.b16 %v2299
        %v2453 = vunpack.c.l.b16 %v2300
        %v2454 = vunpack.c.l.b16 %v2301
        %v2455 = vunpack.c.l.b16 %v2302
        %v2456 = vunpack.c.l.b16 %v2303
        %v2457 = vunpack.c.l.b16 %v2304
        %v2458 = vunpack.c.l.b16 %v2305
        %v2459 = vunpack.c.l.b16 %v2306
        %v2460 = vunpack.c.l.b16 %v2307
        %v2461 = vunpack.c.l.b16 %v2308
        %v2462 = vunpack.c.l.b16 %v2309
        %v2463 = vunpack.c.l.b16 %v2310
        %v2464 = vunpack.c.l.b16 %v2311
        %v2465 = vunpack.c.l.b16 %v2312
        %v2466 = vunpack.c.l.b16 %v2313
        %v2467 = vunpack.c.l.b16 %v2314
        %v2468 = vunpack.c.l.b16 %v2315
        %v2469 = vunpack.c.l.b16 %v2316
        %v2470 = vunpack.c.l.b16 %v2317
        %v2471 = vunpack.c.l.b16 %v2318
        %v2472 = vpack.c.b16 %v2401, %v2400
        %v2473 = vpack.c.b16 %v2403, %v2402
        %v2474 = vpack.c.b16 %v2405, %v2404
        %v2475 = vpack.c.b16 %v2407, %v2406
        %v2476 = vpack.c.b16 %v2409, %v2408
        %v2477 = vpack.c.b16 %v2411, %v2410
        %v2478 = vpack.c.b16 %v2413, %v2412
        %v2479 = vpack.c.b16 %v2415, %v2414
        %v2480 = vpack.c.b16 %v2417, %v2416
        %v2481 = vpack.c.b16 %v2419, %v2418
        %v2482 = vpack.c.b16 %v2421, %v2420
        %v2483 = vpack.c.b16 %v2423, %v2422
        %v2484 = vpack.c.b16 %v2425, %v2424
        %v2485 = vpack.c.b16 %v2427, %v2426
        %v2486 = vpack.c.b16 %v2429, %v2428
        %v2487 = vpack.c.b16 %v2431, %v2430
        %v2488 = vpack.c.b16 %v2433, %v2432
        %v2489 = vpack.c.b16 %v2435, %v2434
        %v2490 = vpack.c.b16 %v2437, %v2436
        %v2491 = vpack.c.b16 %v2439, %v2438
        %v2492 = vpack.c.b16 %v2441, %v2440
        %v2493 = vpack.c.b16 %v2443, %v2442
        %v2494 = vpack.c.b16 %v2445, %v2444
        %v2495 = vpack.c.b16 %v2447, %v2446
        %v2496 = vpack.c.b16 %v2449, %v2448
        %v2497 = vpack.c.b16 %v2451, %v2450
        %v2498 = vpack.c.b16 %v2453, %v2452
        %v2499 = vpack.c.b16 %v2455, %v2454
        %v2500 = vpack.c.b16 %v2457, %v2456
        %v2501 = vpack.c.b16 %v2459, %v2458
        %v2502 = vpack.c.b16 %v2461, %v2460
        %v2503 = vpack.c.b16 %v2463, %v2462
        %v2504 = vpack.c.b16 %v2465, %v2464
        %v2505 = vpack.c.b16 %v2467, %v2466
        %v2506 = vpack.c.b16 %v2469, %v2468
        %v2507 = vpack.c.b16 %v2471, %v2470
        %v2545 = vsel %vm1479, %v2323, 0
        %2547 = vmatpush.bf16.msra.mxu0 %v2479
        %2548 = vmatpush.bf16.msra.mxu0 %v2478
        %2549 = vmatpush.bf16.msra.mxu0 %v2477
        %2550 = vmatpush.bf16.msra.mxu0 %v2476
        %2551 = vmatpush.bf16.msra.mxu0 %v2475
        %2552 = vmatpush.bf16.msra.mxu0 %v2474
        %2553 = vmatpush.bf16.msra.mxu0 %v2473
        %2554 = vmatpush.bf16.msra.mxu0 %v2472
        %2555 = vmatmul.bf16.gmra.mxu0 %v2319
        %v2556 = vpop.f32.mrf.mxu0
        %v2557 = vadd.f32 0.0, %v2556
        %v2558 = vpop.f32.mrf.mxu0
        %2559 = vdwg.mxu0
        %2560 = vmatpush.bf16.msra.mxu0 %v2487
        %2561 = vmatpush.bf16.msra.mxu0 %v2486
        %2562 = vmatpush.bf16.msra.mxu0 %v2485
        %2563 = vmatpush.bf16.msra.mxu0 %v2484
        %2564 = vmatpush.bf16.msra.mxu0 %v2483
        %2565 = vmatpush.bf16.msra.mxu0 %v2482
        %2566 = vmatpush.bf16.msra.mxu0 %v2481
        %2567 = vmatpush.bf16.msra.mxu0 %v2480
        %2568 = vmatmul.bf16.gmra.mxu0 %v2320
        %v2569 = vpop.f32.mrf.mxu0
        %v2570 = vadd.f32 %v2557, %v2569
        %v2571 = vpop.f32.mrf.mxu0
        %2572 = vdwg.mxu0
        %2573 = vmatpush.bf16.msra.mxu0 %v2495
        %2574 = vmatpush.bf16.msra.mxu0 %v2494
        %2575 = vmatpush.bf16.msra.mxu0 %v2493
        %2576 = vmatpush.bf16.msra.mxu0 %v2492
        %2577 = vmatpush.bf16.msra.mxu0 %v2491
        %2578 = vmatpush.bf16.msra.mxu0 %v2490
        %2579 = vmatpush.bf16.msra.mxu0 %v2489
        %2580 = vmatpush.bf16.msra.mxu0 %v2488
        %2581 = vmatmul.bf16.gmra.mxu0 %v2321
        %v2582 = vpop.f32.mrf.mxu0
        %v2583 = vadd.f32 %v2570, %v2582
        %v2584 = vpop.f32.mrf.mxu0
        %2585 = vdwg.mxu0
        %2586 = vmatpush.bf16.msra.mxu0 %v2503
        %2587 = vmatpush.bf16.msra.mxu0 %v2502
        %2588 = vmatpush.bf16.msra.mxu0 %v2501
        %2589 = vmatpush.bf16.msra.mxu0 %v2500
        %2590 = vmatpush.bf16.msra.mxu0 %v2499
        %2591 = vmatpush.bf16.msra.mxu0 %v2498
        %2592 = vmatpush.bf16.msra.mxu0 %v2497
        %2593 = vmatpush.bf16.msra.mxu0 %v2496
        %2594 = vmatmul.bf16.gmra.mxu0 %v2322
        %v2595 = vpop.f32.mrf.mxu0
        %v2596 = vadd.f32 %v2583, %v2595
        %v2597 = vpop.f32.mrf.mxu0
        %2598 = vdwg.mxu0
        %2599 = vmatpush.bf16.msra.mxu0 0
        %2600 = vmatpush.bf16.msra.mxu0 0
        %2601 = vmatpush.bf16.msra.mxu0 0
        %2602 = vmatpush.bf16.msra.mxu0 0
        %2603 = vmatpush.bf16.msra.mxu0 %v2507
        %2604 = vmatpush.bf16.msra.mxu0 %v2506
        %2605 = vmatpush.bf16.msra.mxu0 %v2505
        %2606 = vmatpush.bf16.msra.mxu0 %v2504
        %2607 = vmatmul.bf16.gmra.mxu0 %v2545
        %v2608 = vpop.f32.mrf.mxu0
        %v2609 = vadd.f32 %v2596, %v2608
        %v2610 = vpop.f32.mrf.mxu0
        %2611 = vdwg.mxu0
        %v2612 = vadd.f32 %v2245, %v2609
        %s2613 = scalar_lea.vmem %s3, 864
        %v2614 = vld [vmem:[%s2613] sm:$0xf]
        %v2615 = vld [vmem:[%s2613 + $0x4] sm:$0xf]
        %v2616 = vld [vmem:[%s2613 + $0x8] sm:$0xf]
        %v2617 = vld [vmem:[%s2613 + $0xc] sm:$0xf]
        %v2618 = vld [vmem:[%s2613 + $0x10] sm:$0xf]
        %v2619 = vld [vmem:[%s2613 + $0x14] sm:$0xf]
        %v2620 = vld [vmem:[%s2613 + $0x18] sm:$0xf]
        %v2621 = vld [vmem:[%s2613 + $0x1c] sm:$0xf]
        %v2622 = vld [vmem:[%s2613 + $0x20] sm:$0xf]
        %v2623 = vld [vmem:[%s2613 + $0x24] sm:$0xf]
        %v2624 = vld [vmem:[%s2613 + $0x28] sm:$0xf]
        %v2625 = vld [vmem:[%s2613 + $0x2c] sm:$0xf]
        %v2626 = vld [vmem:[%s2613 + $0x30] sm:$0xf]
        %v2627 = vld [vmem:[%s2613 + $0x34] sm:$0xf]
        %v2628 = vld [vmem:[%s2613 + $0x38] sm:$0xf]
        %v2629 = vld [vmem:[%s2613 + $0x3c] sm:$0xf]
        %v2630 = vld [vmem:[%s2613 + $0x40] sm:$0xf]
        %v2631 = vld [vmem:[%s2613 + $0x44] sm:$0xf]
        %v2632 = vld [vmem:[%s2613 + $0x48] sm:$0xf]
        %v2633 = vld [vmem:[%s2613 + $0x4c] sm:$0xf]
        %v2634 = vld [vmem:[%s2613 + $0x50] sm:$0xf]
        %v2635 = vld [vmem:[%s2613 + $0x54] sm:$0xf]
        %v2636 = vld [vmem:[%s2613 + $0x58] sm:$0xf]
        %v2637 = vld [vmem:[%s2613 + $0x5c] sm:$0xf]
        %v2638 = vld [vmem:[%s2613 + $0x60] sm:$0xf]
        %v2639 = vld [vmem:[%s2613 + $0x64] sm:$0xf]
        %v2640 = vld [vmem:[%s2613 + $0x68] sm:$0xf]
        %v2641 = vld [vmem:[%s2613 + $0x6c] sm:$0xf]
        %v2642 = vld [vmem:[%s2613 + $0x70] sm:$0xf]
        %v2643 = vld [vmem:[%s2613 + $0x74] sm:$0xf]
        %v2644 = vld [vmem:[%s2613 + $0x78] sm:$0xf]
        %v2645 = vld [vmem:[%s2613 + $0x7c] sm:$0xf]
        %v2646 = vld [vmem:[%s2613 + $0x80] sm:$0xf]
        %v2647 = vld [vmem:[%s2613 + $0x84] sm:$0xf]
        %v2648 = vld [vmem:[%s2613 + $0x88] sm:$0xf]
        %v2649 = vld [vmem:[%s2613 + $0x8c] sm:$0xf]
        %v2650 = vld [vmem:[%s2613 + $0x90] sm:$0xf]
        %v2651 = vld [vmem:[%s2613 + $0x94] sm:$0xf]
        %v2652 = vld [vmem:[%s2613 + $0x98] sm:$0xf]
        %v2653 = vld [vmem:[%s2613 + $0x9c] sm:$0xf]
        %v2654 = vld [vmem:[%s2613 + $0xa0] sm:$0xf]
        %v2655 = vld [vmem:[%s2613 + $0xa4] sm:$0xf]
        %v2656 = vld [vmem:[%s2613 + $0xa8] sm:$0xf]
        %v2657 = vld [vmem:[%s2613 + $0xac] sm:$0xf]
        %v2658 = vld [vmem:[%s2613 + $0xb0] sm:$0xf]
        %v2659 = vld [vmem:[%s2613 + $0xb4] sm:$0xf]
        %v2660 = vld [vmem:[%s2613 + $0xb8] sm:$0xf]
        %v2661 = vld [vmem:[%s2613 + $0xbc] sm:$0xf]
        %v2662 = vld [vmem:[%s2613 + $0xc0] sm:$0xf]
        %v2663 = vld [vmem:[%s2613 + $0xc4] sm:$0xf]
        %v2664 = vld [vmem:[%s2613 + $0xc8] sm:$0xf]
        %v2665 = vld [vmem:[%s2613 + $0xcc] sm:$0xf]
        %v2666 = vld [vmem:[%s2613 + $0xd0] sm:$0xf]
        %v2667 = vld [vmem:[%s2613 + $0xd4] sm:$0xf]
        %v2668 = vld [vmem:[%s2613 + $0xd8] sm:$0xf]
        %v2669 = vld [vmem:[%s2613 + $0xdc] sm:$0xf]
        %v2670 = vld [vmem:[%s2613 + $0xe0] sm:$0xf]
        %v2671 = vld [vmem:[%s2613 + $0xe4] sm:$0xf]
        %v2672 = vld [vmem:[%s2613 + $0xe8] sm:$0xf]
        %v2673 = vld [vmem:[%s2613 + $0xec] sm:$0xf]
        %v2674 = vld [vmem:[%s2613 + $0xf0] sm:$0xf]
        %v2675 = vld [vmem:[%s2613 + $0xf4] sm:$0xf]
        %v2676 = vld [vmem:[%s2613 + $0xf8] sm:$0xf]
        %v2677 = vld [vmem:[%s2613 + $0xfc] sm:$0xf]
        %v2678 = vld [vmem:[%s2613 + $0x100] sm:$0xf]
        %v2679 = vld [vmem:[%s2613 + $0x104] sm:$0xf]
        %v2680 = vld [vmem:[%s2613 + $0x108] sm:$0xf]
        %v2681 = vld [vmem:[%s2613 + $0x10c] sm:$0xf]
        %v2682 = vld [vmem:[%s2613 + $0x110] sm:$0xf]
        %v2683 = vld [vmem:[%s2613 + $0x114] sm:$0xf]
        %v2684 = vld [vmem:[%s2613 + $0x118] sm:$0xf]
        %v2685 = vld [vmem:[%s2613 + $0x11c] sm:$0xf]
        %v2686 = vrot.slane %v1944, 1
        %v2687 = vrot.slane %v1947, 1
        %v2688 = vrot.slane %v1950, 1
        %v2689 = vrot.slane %v1953, 1
        %v2690 = vrot.slane %v1955, 1
        %v2767 = vunpack.c.l.b16 %v2614
        %v2768 = vunpack.c.l.b16 %v2615
        %v2769 = vunpack.c.l.b16 %v2616
        %v2770 = vunpack.c.l.b16 %v2617
        %v2771 = vunpack.c.l.b16 %v2618
        %v2772 = vunpack.c.l.b16 %v2619
        %v2773 = vunpack.c.l.b16 %v2620
        %v2774 = vunpack.c.l.b16 %v2621
        %v2775 = vunpack.c.l.b16 %v2622
        %v2776 = vunpack.c.l.b16 %v2623
        %v2777 = vunpack.c.l.b16 %v2624
        %v2778 = vunpack.c.l.b16 %v2625
        %v2779 = vunpack.c.l.b16 %v2626
        %v2780 = vunpack.c.l.b16 %v2627
        %v2781 = vunpack.c.l.b16 %v2628
        %v2782 = vunpack.c.l.b16 %v2629
        %v2783 = vunpack.c.l.b16 %v2630
        %v2784 = vunpack.c.l.b16 %v2631
        %v2785 = vunpack.c.l.b16 %v2632
        %v2786 = vunpack.c.l.b16 %v2633
        %v2787 = vunpack.c.l.b16 %v2634
        %v2788 = vunpack.c.l.b16 %v2635
        %v2789 = vunpack.c.l.b16 %v2636
        %v2790 = vunpack.c.l.b16 %v2637
        %v2791 = vunpack.c.l.b16 %v2638
        %v2792 = vunpack.c.l.b16 %v2639
        %v2793 = vunpack.c.l.b16 %v2640
        %v2794 = vunpack.c.l.b16 %v2641
        %v2795 = vunpack.c.l.b16 %v2642
        %v2796 = vunpack.c.l.b16 %v2643
        %v2797 = vunpack.c.l.b16 %v2644
        %v2798 = vunpack.c.l.b16 %v2645
        %v2799 = vunpack.c.l.b16 %v2646
        %v2800 = vunpack.c.l.b16 %v2647
        %v2801 = vunpack.c.l.b16 %v2648
        %v2802 = vunpack.c.l.b16 %v2649
        %v2803 = vunpack.c.l.b16 %v2650
        %v2804 = vunpack.c.l.b16 %v2651
        %v2805 = vunpack.c.l.b16 %v2652
        %v2806 = vunpack.c.l.b16 %v2653
        %v2807 = vunpack.c.l.b16 %v2654
        %v2808 = vunpack.c.l.b16 %v2655
        %v2809 = vunpack.c.l.b16 %v2656
        %v2810 = vunpack.c.l.b16 %v2657
        %v2811 = vunpack.c.l.b16 %v2658
        %v2812 = vunpack.c.l.b16 %v2659
        %v2813 = vunpack.c.l.b16 %v2660
        %v2814 = vunpack.c.l.b16 %v2661
        %v2815 = vunpack.c.l.b16 %v2662
        %v2816 = vunpack.c.l.b16 %v2663
        %v2817 = vunpack.c.l.b16 %v2664
        %v2818 = vunpack.c.l.b16 %v2665
        %v2819 = vunpack.c.l.b16 %v2666
        %v2820 = vunpack.c.l.b16 %v2667
        %v2821 = vunpack.c.l.b16 %v2668
        %v2822 = vunpack.c.l.b16 %v2669
        %v2823 = vunpack.c.l.b16 %v2670
        %v2824 = vunpack.c.l.b16 %v2671
        %v2825 = vunpack.c.l.b16 %v2672
        %v2826 = vunpack.c.l.b16 %v2673
        %v2827 = vunpack.c.l.b16 %v2674
        %v2828 = vunpack.c.l.b16 %v2675
        %v2829 = vunpack.c.l.b16 %v2676
        %v2830 = vunpack.c.l.b16 %v2677
        %v2831 = vunpack.c.l.b16 %v2678
        %v2832 = vunpack.c.l.b16 %v2679
        %v2833 = vunpack.c.l.b16 %v2680
        %v2834 = vunpack.c.l.b16 %v2681
        %v2835 = vunpack.c.l.b16 %v2682
        %v2836 = vunpack.c.l.b16 %v2683
        %v2837 = vunpack.c.l.b16 %v2684
        %v2838 = vunpack.c.l.b16 %v2685
        %v2839 = vpack.c.b16 %v2768, %v2767
        %v2840 = vpack.c.b16 %v2770, %v2769
        %v2841 = vpack.c.b16 %v2772, %v2771
        %v2842 = vpack.c.b16 %v2774, %v2773
        %v2843 = vpack.c.b16 %v2776, %v2775
        %v2844 = vpack.c.b16 %v2778, %v2777
        %v2845 = vpack.c.b16 %v2780, %v2779
        %v2846 = vpack.c.b16 %v2782, %v2781
        %v2847 = vpack.c.b16 %v2784, %v2783
        %v2848 = vpack.c.b16 %v2786, %v2785
        %v2849 = vpack.c.b16 %v2788, %v2787
        %v2850 = vpack.c.b16 %v2790, %v2789
        %v2851 = vpack.c.b16 %v2792, %v2791
        %v2852 = vpack.c.b16 %v2794, %v2793
        %v2853 = vpack.c.b16 %v2796, %v2795
        %v2854 = vpack.c.b16 %v2798, %v2797
        %v2855 = vpack.c.b16 %v2800, %v2799
        %v2856 = vpack.c.b16 %v2802, %v2801
        %v2857 = vpack.c.b16 %v2804, %v2803
        %v2858 = vpack.c.b16 %v2806, %v2805
        %v2859 = vpack.c.b16 %v2808, %v2807
        %v2860 = vpack.c.b16 %v2810, %v2809
        %v2861 = vpack.c.b16 %v2812, %v2811
        %v2862 = vpack.c.b16 %v2814, %v2813
        %v2863 = vpack.c.b16 %v2816, %v2815
        %v2864 = vpack.c.b16 %v2818, %v2817
        %v2865 = vpack.c.b16 %v2820, %v2819
        %v2866 = vpack.c.b16 %v2822, %v2821
        %v2867 = vpack.c.b16 %v2824, %v2823
        %v2868 = vpack.c.b16 %v2826, %v2825
        %v2869 = vpack.c.b16 %v2828, %v2827
        %v2870 = vpack.c.b16 %v2830, %v2829
        %v2871 = vpack.c.b16 %v2832, %v2831
        %v2872 = vpack.c.b16 %v2834, %v2833
        %v2873 = vpack.c.b16 %v2836, %v2835
        %v2874 = vpack.c.b16 %v2838, %v2837
        %v2912 = vsel %vm1479, %v2690, 0
        %2914 = vmatpush.bf16.msra.mxu0 %v2846
        %2915 = vmatpush.bf16.msra.mxu0 %v2845
        %2916 = vmatpush.bf16.msra.mxu0 %v2844
        %2917 = vmatpush.bf16.msra.mxu0 %v2843
        %2918 = vmatpush.bf16.msra.mxu0 %v2842
        %2919 = vmatpush.bf16.msra.mxu0 %v2841
        %2920 = vmatpush.bf16.msra.mxu0 %v2840
        %2921 = vmatpush.bf16.msra.mxu0 %v2839
        %2922 = vmatmul.bf16.gmra.mxu0 %v2686
        %v2923 = vpop.f32.mrf.mxu0
        %v2924 = vadd.f32 0.0, %v2923
        %v2925 = vpop.f32.mrf.mxu0
        %2926 = vdwg.mxu0
        %2927 = vmatpush.bf16.msra.mxu0 %v2854
        %2928 = vmatpush.bf16.msra.mxu0 %v2853
        %2929 = vmatpush.bf16.msra.mxu0 %v2852
        %2930 = vmatpush.bf16.msra.mxu0 %v2851
        %2931 = vmatpush.bf16.msra.mxu0 %v2850
        %2932 = vmatpush.bf16.msra.mxu0 %v2849
        %2933 = vmatpush.bf16.msra.mxu0 %v2848
        %2934 = vmatpush.bf16.msra.mxu0 %v2847
        %2935 = vmatmul.bf16.gmra.mxu0 %v2687
        %v2936 = vpop.f32.mrf.mxu0
        %v2937 = vadd.f32 %v2924, %v2936
        %v2938 = vpop.f32.mrf.mxu0
        %2939 = vdwg.mxu0
        %2940 = vmatpush.bf16.msra.mxu0 %v2862
        %2941 = vmatpush.bf16.msra.mxu0 %v2861
        %2942 = vmatpush.bf16.msra.mxu0 %v2860
        %2943 = vmatpush.bf16.msra.mxu0 %v2859
        %2944 = vmatpush.bf16.msra.mxu0 %v2858
        %2945 = vmatpush.bf16.msra.mxu0 %v2857
        %2946 = vmatpush.bf16.msra.mxu0 %v2856
        %2947 = vmatpush.bf16.msra.mxu0 %v2855
        %2948 = vmatmul.bf16.gmra.mxu0 %v2688
        %v2949 = vpop.f32.mrf.mxu0
        %v2950 = vadd.f32 %v2937, %v2949
        %v2951 = vpop.f32.mrf.mxu0
        %2952 = vdwg.mxu0
        %2953 = vmatpush.bf16.msra.mxu0 %v2870
        %2954 = vmatpush.bf16.msra.mxu0 %v2869
        %2955 = vmatpush.bf16.msra.mxu0 %v2868
        %2956 = vmatpush.bf16.msra.mxu0 %v2867
        %2957 = vmatpush.bf16.msra.mxu0 %v2866
        %2958 = vmatpush.bf16.msra.mxu0 %v2865
        %2959 = vmatpush.bf16.msra.mxu0 %v2864
        %2960 = vmatpush.bf16.msra.mxu0 %v2863
        %2961 = vmatmul.bf16.gmra.mxu0 %v2689
        %v2962 = vpop.f32.mrf.mxu0
        %v2963 = vadd.f32 %v2950, %v2962
        %v2964 = vpop.f32.mrf.mxu0
        %2965 = vdwg.mxu0
        %2966 = vmatpush.bf16.msra.mxu0 0
        %2967 = vmatpush.bf16.msra.mxu0 0
        %2968 = vmatpush.bf16.msra.mxu0 0
        %2969 = vmatpush.bf16.msra.mxu0 0
        %2970 = vmatpush.bf16.msra.mxu0 %v2874
        %2971 = vmatpush.bf16.msra.mxu0 %v2873
        %2972 = vmatpush.bf16.msra.mxu0 %v2872
        %2973 = vmatpush.bf16.msra.mxu0 %v2871
        %2974 = vmatmul.bf16.gmra.mxu0 %v2912
        %v2975 = vpop.f32.mrf.mxu0
        %v2976 = vadd.f32 %v2963, %v2975
        %v2977 = vpop.f32.mrf.mxu0
        %2978 = vdwg.mxu0
        %v2979 = vadd.f32 %v2612, %v2976
        %s2980 = scalar_lea.vmem %s3, 1152
        %v2981 = vld [vmem:[%s2980] sm:$0xf]
        %v2982 = vld [vmem:[%s2980 + $0x4] sm:$0xf]
        %v2983 = vld [vmem:[%s2980 + $0x8] sm:$0xf]
        %v2984 = vld [vmem:[%s2980 + $0xc] sm:$0xf]
        %v2985 = vld [vmem:[%s2980 + $0x10] sm:$0xf]
        %v2986 = vld [vmem:[%s2980 + $0x14] sm:$0xf]
        %v2987 = vld [vmem:[%s2980 + $0x18] sm:$0xf]
        %v2988 = vld [vmem:[%s2980 + $0x1c] sm:$0xf]
        %v2989 = vld [vmem:[%s2980 + $0x20] sm:$0xf]
        %v2990 = vld [vmem:[%s2980 + $0x24] sm:$0xf]
        %v2991 = vld [vmem:[%s2980 + $0x28] sm:$0xf]
        %v2992 = vld [vmem:[%s2980 + $0x2c] sm:$0xf]
        %v2993 = vld [vmem:[%s2980 + $0x30] sm:$0xf]
        %v2994 = vld [vmem:[%s2980 + $0x34] sm:$0xf]
        %v2995 = vld [vmem:[%s2980 + $0x38] sm:$0xf]
        %v2996 = vld [vmem:[%s2980 + $0x3c] sm:$0xf]
        %v2997 = vld [vmem:[%s2980 + $0x40] sm:$0xf]
        %v2998 = vld [vmem:[%s2980 + $0x44] sm:$0xf]
        %v2999 = vld [vmem:[%s2980 + $0x48] sm:$0xf]
        %v3000 = vld [vmem:[%s2980 + $0x4c] sm:$0xf]
        %v3001 = vld [vmem:[%s2980 + $0x50] sm:$0xf]
        %v3002 = vld [vmem:[%s2980 + $0x54] sm:$0xf]
        %v3003 = vld [vmem:[%s2980 + $0x58] sm:$0xf]
        %v3004 = vld [vmem:[%s2980 + $0x5c] sm:$0xf]
        %v3005 = vld [vmem:[%s2980 + $0x60] sm:$0xf]
        %v3006 = vld [vmem:[%s2980 + $0x64] sm:$0xf]
        %v3007 = vld [vmem:[%s2980 + $0x68] sm:$0xf]
        %v3008 = vld [vmem:[%s2980 + $0x6c] sm:$0xf]
        %v3009 = vld [vmem:[%s2980 + $0x70] sm:$0xf]
        %v3010 = vld [vmem:[%s2980 + $0x74] sm:$0xf]
        %v3011 = vld [vmem:[%s2980 + $0x78] sm:$0xf]
        %v3012 = vld [vmem:[%s2980 + $0x7c] sm:$0xf]
        %v3013 = vld [vmem:[%s2980 + $0x80] sm:$0xf]
        %v3014 = vld [vmem:[%s2980 + $0x84] sm:$0xf]
        %v3015 = vld [vmem:[%s2980 + $0x88] sm:$0xf]
        %v3016 = vld [vmem:[%s2980 + $0x8c] sm:$0xf]
        %v3017 = vld [vmem:[%s2980 + $0x90] sm:$0xf]
        %v3018 = vld [vmem:[%s2980 + $0x94] sm:$0xf]
        %v3019 = vld [vmem:[%s2980 + $0x98] sm:$0xf]
        %v3020 = vld [vmem:[%s2980 + $0x9c] sm:$0xf]
        %v3021 = vld [vmem:[%s2980 + $0xa0] sm:$0xf]
        %v3022 = vld [vmem:[%s2980 + $0xa4] sm:$0xf]
        %v3023 = vld [vmem:[%s2980 + $0xa8] sm:$0xf]
        %v3024 = vld [vmem:[%s2980 + $0xac] sm:$0xf]
        %v3025 = vld [vmem:[%s2980 + $0xb0] sm:$0xf]
        %v3026 = vld [vmem:[%s2980 + $0xb4] sm:$0xf]
        %v3027 = vld [vmem:[%s2980 + $0xb8] sm:$0xf]
        %v3028 = vld [vmem:[%s2980 + $0xbc] sm:$0xf]
        %v3029 = vld [vmem:[%s2980 + $0xc0] sm:$0xf]
        %v3030 = vld [vmem:[%s2980 + $0xc4] sm:$0xf]
        %v3031 = vld [vmem:[%s2980 + $0xc8] sm:$0xf]
        %v3032 = vld [vmem:[%s2980 + $0xcc] sm:$0xf]
        %v3033 = vld [vmem:[%s2980 + $0xd0] sm:$0xf]
        %v3034 = vld [vmem:[%s2980 + $0xd4] sm:$0xf]
        %v3035 = vld [vmem:[%s2980 + $0xd8] sm:$0xf]
        %v3036 = vld [vmem:[%s2980 + $0xdc] sm:$0xf]
        %v3037 = vld [vmem:[%s2980 + $0xe0] sm:$0xf]
        %v3038 = vld [vmem:[%s2980 + $0xe4] sm:$0xf]
        %v3039 = vld [vmem:[%s2980 + $0xe8] sm:$0xf]
        %v3040 = vld [vmem:[%s2980 + $0xec] sm:$0xf]
        %v3041 = vld [vmem:[%s2980 + $0xf0] sm:$0xf]
        %v3042 = vld [vmem:[%s2980 + $0xf4] sm:$0xf]
        %v3043 = vld [vmem:[%s2980 + $0xf8] sm:$0xf]
        %v3044 = vld [vmem:[%s2980 + $0xfc] sm:$0xf]
        %v3045 = vld [vmem:[%s2980 + $0x100] sm:$0xf]
        %v3046 = vld [vmem:[%s2980 + $0x104] sm:$0xf]
        %v3047 = vld [vmem:[%s2980 + $0x108] sm:$0xf]
        %v3048 = vld [vmem:[%s2980 + $0x10c] sm:$0xf]
        %v3049 = vld [vmem:[%s2980 + $0x110] sm:$0xf]
        %v3050 = vld [vmem:[%s2980 + $0x114] sm:$0xf]
        %v3051 = vld [vmem:[%s2980 + $0x118] sm:$0xf]
        %v3052 = vld [vmem:[%s2980 + $0x11c] sm:$0xf]
        %v3053 = vrot.slane %v1576, 2
        %v3054 = vrot.slane %v1577, 2
        %v3055 = vrot.slane %v1578, 2
        %v3056 = vrot.slane %v1579, 2
        %v3057 = vrot.slane %v1580, 2
        %v3134 = vunpack.c.l.b16 %v2981
        %v3135 = vunpack.c.l.b16 %v2982
        %v3136 = vunpack.c.l.b16 %v2983
        %v3137 = vunpack.c.l.b16 %v2984
        %v3138 = vunpack.c.l.b16 %v2985
        %v3139 = vunpack.c.l.b16 %v2986
        %v3140 = vunpack.c.l.b16 %v2987
        %v3141 = vunpack.c.l.b16 %v2988
        %v3142 = vunpack.c.l.b16 %v2989
        %v3143 = vunpack.c.l.b16 %v2990
        %v3144 = vunpack.c.l.b16 %v2991
        %v3145 = vunpack.c.l.b16 %v2992
        %v3146 = vunpack.c.l.b16 %v2993
        %v3147 = vunpack.c.l.b16 %v2994
        %v3148 = vunpack.c.l.b16 %v2995
        %v3149 = vunpack.c.l.b16 %v2996
        %v3150 = vunpack.c.l.b16 %v2997
        %v3151 = vunpack.c.l.b16 %v2998
        %v3152 = vunpack.c.l.b16 %v2999
        %v3153 = vunpack.c.l.b16 %v3000
        %v3154 = vunpack.c.l.b16 %v3001
        %v3155 = vunpack.c.l.b16 %v3002
        %v3156 = vunpack.c.l.b16 %v3003
        %v3157 = vunpack.c.l.b16 %v3004
        %v3158 = vunpack.c.l.b16 %v3005
        %v3159 = vunpack.c.l.b16 %v3006
        %v3160 = vunpack.c.l.b16 %v3007
        %v3161 = vunpack.c.l.b16 %v3008
        %v3162 = vunpack.c.l.b16 %v3009
        %v3163 = vunpack.c.l.b16 %v3010
        %v3164 = vunpack.c.l.b16 %v3011
        %v3165 = vunpack.c.l.b16 %v3012
        %v3166 = vunpack.c.l.b16 %v3013
        %v3167 = vunpack.c.l.b16 %v3014
        %v3168 = vunpack.c.l.b16 %v3015
        %v3169 = vunpack.c.l.b16 %v3016
        %v3170 = vunpack.c.l.b16 %v3017
        %v3171 = vunpack.c.l.b16 %v3018
        %v3172 = vunpack.c.l.b16 %v3019
        %v3173 = vunpack.c.l.b16 %v3020
        %v3174 = vunpack.c.l.b16 %v3021
        %v3175 = vunpack.c.l.b16 %v3022
        %v3176 = vunpack.c.l.b16 %v3023
        %v3177 = vunpack.c.l.b16 %v3024
        %v3178 = vunpack.c.l.b16 %v3025
        %v3179 = vunpack.c.l.b16 %v3026
        %v3180 = vunpack.c.l.b16 %v3027
        %v3181 = vunpack.c.l.b16 %v3028
        %v3182 = vunpack.c.l.b16 %v3029
        %v3183 = vunpack.c.l.b16 %v3030
        %v3184 = vunpack.c.l.b16 %v3031
        %v3185 = vunpack.c.l.b16 %v3032
        %v3186 = vunpack.c.l.b16 %v3033
        %v3187 = vunpack.c.l.b16 %v3034
        %v3188 = vunpack.c.l.b16 %v3035
        %v3189 = vunpack.c.l.b16 %v3036
        %v3190 = vunpack.c.l.b16 %v3037
        %v3191 = vunpack.c.l.b16 %v3038
        %v3192 = vunpack.c.l.b16 %v3039
        %v3193 = vunpack.c.l.b16 %v3040
        %v3194 = vunpack.c.l.b16 %v3041
        %v3195 = vunpack.c.l.b16 %v3042
        %v3196 = vunpack.c.l.b16 %v3043
        %v3197 = vunpack.c.l.b16 %v3044
        %v3198 = vunpack.c.l.b16 %v3045
        %v3199 = vunpack.c.l.b16 %v3046
        %v3200 = vunpack.c.l.b16 %v3047
        %v3201 = vunpack.c.l.b16 %v3048
        %v3202 = vunpack.c.l.b16 %v3049
        %v3203 = vunpack.c.l.b16 %v3050
        %v3204 = vunpack.c.l.b16 %v3051
        %v3205 = vunpack.c.l.b16 %v3052
        %v3206 = vpack.c.b16 %v3135, %v3134
        %v3207 = vpack.c.b16 %v3137, %v3136
        %v3208 = vpack.c.b16 %v3139, %v3138
        %v3209 = vpack.c.b16 %v3141, %v3140
        %v3210 = vpack.c.b16 %v3143, %v3142
        %v3211 = vpack.c.b16 %v3145, %v3144
        %v3212 = vpack.c.b16 %v3147, %v3146
        %v3213 = vpack.c.b16 %v3149, %v3148
        %v3214 = vpack.c.b16 %v3151, %v3150
        %v3215 = vpack.c.b16 %v3153, %v3152
        %v3216 = vpack.c.b16 %v3155, %v3154
        %v3217 = vpack.c.b16 %v3157, %v3156
        %v3218 = vpack.c.b16 %v3159, %v3158
        %v3219 = vpack.c.b16 %v3161, %v3160
        %v3220 = vpack.c.b16 %v3163, %v3162
        %v3221 = vpack.c.b16 %v3165, %v3164
        %v3222 = vpack.c.b16 %v3167, %v3166
        %v3223 = vpack.c.b16 %v3169, %v3168
        %v3224 = vpack.c.b16 %v3171, %v3170
        %v3225 = vpack.c.b16 %v3173, %v3172
        %v3226 = vpack.c.b16 %v3175, %v3174
        %v3227 = vpack.c.b16 %v3177, %v3176
        %v3228 = vpack.c.b16 %v3179, %v3178
        %v3229 = vpack.c.b16 %v3181, %v3180
        %v3230 = vpack.c.b16 %v3183, %v3182
        %v3231 = vpack.c.b16 %v3185, %v3184
        %v3232 = vpack.c.b16 %v3187, %v3186
        %v3233 = vpack.c.b16 %v3189, %v3188
        %v3234 = vpack.c.b16 %v3191, %v3190
        %v3235 = vpack.c.b16 %v3193, %v3192
        %v3236 = vpack.c.b16 %v3195, %v3194
        %v3237 = vpack.c.b16 %v3197, %v3196
        %v3238 = vpack.c.b16 %v3199, %v3198
        %v3239 = vpack.c.b16 %v3201, %v3200
        %v3240 = vpack.c.b16 %v3203, %v3202
        %v3241 = vpack.c.b16 %v3205, %v3204
        %v3279 = vsel %vm1479, %v3057, 0
        %3281 = vmatpush.bf16.msra.mxu0 %v3213
        %3282 = vmatpush.bf16.msra.mxu0 %v3212
        %3283 = vmatpush.bf16.msra.mxu0 %v3211
        %3284 = vmatpush.bf16.msra.mxu0 %v3210
        %3285 = vmatpush.bf16.msra.mxu0 %v3209
        %3286 = vmatpush.bf16.msra.mxu0 %v3208
        %3287 = vmatpush.bf16.msra.mxu0 %v3207
        %3288 = vmatpush.bf16.msra.mxu0 %v3206
        %3289 = vmatmul.bf16.gmra.mxu0 %v3053
        %v3290 = vpop.f32.mrf.mxu0
        %v3291 = vadd.f32 0.0, %v3290
        %v3292 = vpop.f32.mrf.mxu0
        %3293 = vdwg.mxu0
        %3294 = vmatpush.bf16.msra.mxu0 %v3221
        %3295 = vmatpush.bf16.msra.mxu0 %v3220
        %3296 = vmatpush.bf16.msra.mxu0 %v3219
        %3297 = vmatpush.bf16.msra.mxu0 %v3218
        %3298 = vmatpush.bf16.msra.mxu0 %v3217
        %3299 = vmatpush.bf16.msra.mxu0 %v3216
        %3300 = vmatpush.bf16.msra.mxu0 %v3215
        %3301 = vmatpush.bf16.msra.mxu0 %v3214
        %3302 = vmatmul.bf16.gmra.mxu0 %v3054
        %v3303 = vpop.f32.mrf.mxu0
        %v3304 = vadd.f32 %v3291, %v3303
        %v3305 = vpop.f32.mrf.mxu0
        %3306 = vdwg.mxu0
        %3307 = vmatpush.bf16.msra.mxu0 %v3229
        %3308 = vmatpush.bf16.msra.mxu0 %v3228
        %3309 = vmatpush.bf16.msra.mxu0 %v3227
        %3310 = vmatpush.bf16.msra.mxu0 %v3226
        %3311 = vmatpush.bf16.msra.mxu0 %v3225
        %3312 = vmatpush.bf16.msra.mxu0 %v3224
        %3313 = vmatpush.bf16.msra.mxu0 %v3223
        %3314 = vmatpush.bf16.msra.mxu0 %v3222
        %3315 = vmatmul.bf16.gmra.mxu0 %v3055
        %v3316 = vpop.f32.mrf.mxu0
        %v3317 = vadd.f32 %v3304, %v3316
        %v3318 = vpop.f32.mrf.mxu0
        %3319 = vdwg.mxu0
        %3320 = vmatpush.bf16.msra.mxu0 %v3237
        %3321 = vmatpush.bf16.msra.mxu0 %v3236
        %3322 = vmatpush.bf16.msra.mxu0 %v3235
        %3323 = vmatpush.bf16.msra.mxu0 %v3234
        %3324 = vmatpush.bf16.msra.mxu0 %v3233
        %3325 = vmatpush.bf16.msra.mxu0 %v3232
        %3326 = vmatpush.bf16.msra.mxu0 %v3231
        %3327 = vmatpush.bf16.msra.mxu0 %v3230
        %3328 = vmatmul.bf16.gmra.mxu0 %v3056
        %v3329 = vpop.f32.mrf.mxu0
        %v3330 = vadd.f32 %v3317, %v3329
        %v3331 = vpop.f32.mrf.mxu0
        %3332 = vdwg.mxu0
        %3333 = vmatpush.bf16.msra.mxu0 0
        %3334 = vmatpush.bf16.msra.mxu0 0
        %3335 = vmatpush.bf16.msra.mxu0 0
        %3336 = vmatpush.bf16.msra.mxu0 0
        %3337 = vmatpush.bf16.msra.mxu0 %v3241
        %3338 = vmatpush.bf16.msra.mxu0 %v3240
        %3339 = vmatpush.bf16.msra.mxu0 %v3239
        %3340 = vmatpush.bf16.msra.mxu0 %v3238
        %3341 = vmatmul.bf16.gmra.mxu0 %v3279
        %v3342 = vpop.f32.mrf.mxu0
        %v3343 = vadd.f32 %v3330, %v3342
        %v3344 = vpop.f32.mrf.mxu0
        %3345 = vdwg.mxu0
        %v3346 = vadd.f32 %v2979, %v3343
        %s3347 = scalar_lea.vmem %s3, 1440
        %v3348 = vld [vmem:[%s3347] sm:$0xf]
        %v3349 = vld [vmem:[%s3347 + $0x4] sm:$0xf]
        %v3350 = vld [vmem:[%s3347 + $0x8] sm:$0xf]
        %v3351 = vld [vmem:[%s3347 + $0xc] sm:$0xf]
        %v3352 = vld [vmem:[%s3347 + $0x10] sm:$0xf]
        %v3353 = vld [vmem:[%s3347 + $0x14] sm:$0xf]
        %v3354 = vld [vmem:[%s3347 + $0x18] sm:$0xf]
        %v3355 = vld [vmem:[%s3347 + $0x1c] sm:$0xf]
        %v3356 = vld [vmem:[%s3347 + $0x20] sm:$0xf]
        %v3357 = vld [vmem:[%s3347 + $0x24] sm:$0xf]
        %v3358 = vld [vmem:[%s3347 + $0x28] sm:$0xf]
        %v3359 = vld [vmem:[%s3347 + $0x2c] sm:$0xf]
        %v3360 = vld [vmem:[%s3347 + $0x30] sm:$0xf]
        %v3361 = vld [vmem:[%s3347 + $0x34] sm:$0xf]
        %v3362 = vld [vmem:[%s3347 + $0x38] sm:$0xf]
        %v3363 = vld [vmem:[%s3347 + $0x3c] sm:$0xf]
        %v3364 = vld [vmem:[%s3347 + $0x40] sm:$0xf]
        %v3365 = vld [vmem:[%s3347 + $0x44] sm:$0xf]
        %v3366 = vld [vmem:[%s3347 + $0x48] sm:$0xf]
        %v3367 = vld [vmem:[%s3347 + $0x4c] sm:$0xf]
        %v3368 = vld [vmem:[%s3347 + $0x50] sm:$0xf]
        %v3369 = vld [vmem:[%s3347 + $0x54] sm:$0xf]
        %v3370 = vld [vmem:[%s3347 + $0x58] sm:$0xf]
        %v3371 = vld [vmem:[%s3347 + $0x5c] sm:$0xf]
        %v3372 = vld [vmem:[%s3347 + $0x60] sm:$0xf]
        %v3373 = vld [vmem:[%s3347 + $0x64] sm:$0xf]
        %v3374 = vld [vmem:[%s3347 + $0x68] sm:$0xf]
        %v3375 = vld [vmem:[%s3347 + $0x6c] sm:$0xf]
        %v3376 = vld [vmem:[%s3347 + $0x70] sm:$0xf]
        %v3377 = vld [vmem:[%s3347 + $0x74] sm:$0xf]
        %v3378 = vld [vmem:[%s3347 + $0x78] sm:$0xf]
        %v3379 = vld [vmem:[%s3347 + $0x7c] sm:$0xf]
        %v3380 = vld [vmem:[%s3347 + $0x80] sm:$0xf]
        %v3381 = vld [vmem:[%s3347 + $0x84] sm:$0xf]
        %v3382 = vld [vmem:[%s3347 + $0x88] sm:$0xf]
        %v3383 = vld [vmem:[%s3347 + $0x8c] sm:$0xf]
        %v3384 = vld [vmem:[%s3347 + $0x90] sm:$0xf]
        %v3385 = vld [vmem:[%s3347 + $0x94] sm:$0xf]
        %v3386 = vld [vmem:[%s3347 + $0x98] sm:$0xf]
        %v3387 = vld [vmem:[%s3347 + $0x9c] sm:$0xf]
        %v3388 = vld [vmem:[%s3347 + $0xa0] sm:$0xf]
        %v3389 = vld [vmem:[%s3347 + $0xa4] sm:$0xf]
        %v3390 = vld [vmem:[%s3347 + $0xa8] sm:$0xf]
        %v3391 = vld [vmem:[%s3347 + $0xac] sm:$0xf]
        %v3392 = vld [vmem:[%s3347 + $0xb0] sm:$0xf]
        %v3393 = vld [vmem:[%s3347 + $0xb4] sm:$0xf]
        %v3394 = vld [vmem:[%s3347 + $0xb8] sm:$0xf]
        %v3395 = vld [vmem:[%s3347 + $0xbc] sm:$0xf]
        %v3396 = vld [vmem:[%s3347 + $0xc0] sm:$0xf]
        %v3397 = vld [vmem:[%s3347 + $0xc4] sm:$0xf]
        %v3398 = vld [vmem:[%s3347 + $0xc8] sm:$0xf]
        %v3399 = vld [vmem:[%s3347 + $0xcc] sm:$0xf]
        %v3400 = vld [vmem:[%s3347 + $0xd0] sm:$0xf]
        %v3401 = vld [vmem:[%s3347 + $0xd4] sm:$0xf]
        %v3402 = vld [vmem:[%s3347 + $0xd8] sm:$0xf]
        %v3403 = vld [vmem:[%s3347 + $0xdc] sm:$0xf]
        %v3404 = vld [vmem:[%s3347 + $0xe0] sm:$0xf]
        %v3405 = vld [vmem:[%s3347 + $0xe4] sm:$0xf]
        %v3406 = vld [vmem:[%s3347 + $0xe8] sm:$0xf]
        %v3407 = vld [vmem:[%s3347 + $0xec] sm:$0xf]
        %v3408 = vld [vmem:[%s3347 + $0xf0] sm:$0xf]
        %v3409 = vld [vmem:[%s3347 + $0xf4] sm:$0xf]
        %v3410 = vld [vmem:[%s3347 + $0xf8] sm:$0xf]
        %v3411 = vld [vmem:[%s3347 + $0xfc] sm:$0xf]
        %v3412 = vld [vmem:[%s3347 + $0x100] sm:$0xf]
        %v3413 = vld [vmem:[%s3347 + $0x104] sm:$0xf]
        %v3414 = vld [vmem:[%s3347 + $0x108] sm:$0xf]
        %v3415 = vld [vmem:[%s3347 + $0x10c] sm:$0xf]
        %v3416 = vld [vmem:[%s3347 + $0x110] sm:$0xf]
        %v3417 = vld [vmem:[%s3347 + $0x114] sm:$0xf]
        %v3418 = vld [vmem:[%s3347 + $0x118] sm:$0xf]
        %v3419 = vld [vmem:[%s3347 + $0x11c] sm:$0xf]
        %v3420 = vrot.slane %v1944, 2
        %v3421 = vrot.slane %v1947, 2
        %v3422 = vrot.slane %v1950, 2
        %v3423 = vrot.slane %v1953, 2
        %v3424 = vrot.slane %v1955, 2
        %v3501 = vunpack.c.l.b16 %v3348
        %v3502 = vunpack.c.l.b16 %v3349
        %v3503 = vunpack.c.l.b16 %v3350
        %v3504 = vunpack.c.l.b16 %v3351
        %v3505 = vunpack.c.l.b16 %v3352
        %v3506 = vunpack.c.l.b16 %v3353
        %v3507 = vunpack.c.l.b16 %v3354
        %v3508 = vunpack.c.l.b16 %v3355
        %v3509 = vunpack.c.l.b16 %v3356
        %v3510 = vunpack.c.l.b16 %v3357
        %v3511 = vunpack.c.l.b16 %v3358
        %v3512 = vunpack.c.l.b16 %v3359
        %v3513 = vunpack.c.l.b16 %v3360
        %v3514 = vunpack.c.l.b16 %v3361
        %v3515 = vunpack.c.l.b16 %v3362
        %v3516 = vunpack.c.l.b16 %v3363
        %v3517 = vunpack.c.l.b16 %v3364
        %v3518 = vunpack.c.l.b16 %v3365
        %v3519 = vunpack.c.l.b16 %v3366
        %v3520 = vunpack.c.l.b16 %v3367
        %v3521 = vunpack.c.l.b16 %v3368
        %v3522 = vunpack.c.l.b16 %v3369
        %v3523 = vunpack.c.l.b16 %v3370
        %v3524 = vunpack.c.l.b16 %v3371
        %v3525 = vunpack.c.l.b16 %v3372
        %v3526 = vunpack.c.l.b16 %v3373
        %v3527 = vunpack.c.l.b16 %v3374
        %v3528 = vunpack.c.l.b16 %v3375
        %v3529 = vunpack.c.l.b16 %v3376
        %v3530 = vunpack.c.l.b16 %v3377
        %v3531 = vunpack.c.l.b16 %v3378
        %v3532 = vunpack.c.l.b16 %v3379
        %v3533 = vunpack.c.l.b16 %v3380
        %v3534 = vunpack.c.l.b16 %v3381
        %v3535 = vunpack.c.l.b16 %v3382
        %v3536 = vunpack.c.l.b16 %v3383
        %v3537 = vunpack.c.l.b16 %v3384
        %v3538 = vunpack.c.l.b16 %v3385
        %v3539 = vunpack.c.l.b16 %v3386
        %v3540 = vunpack.c.l.b16 %v3387
        %v3541 = vunpack.c.l.b16 %v3388
        %v3542 = vunpack.c.l.b16 %v3389
        %v3543 = vunpack.c.l.b16 %v3390
        %v3544 = vunpack.c.l.b16 %v3391
        %v3545 = vunpack.c.l.b16 %v3392
        %v3546 = vunpack.c.l.b16 %v3393
        %v3547 = vunpack.c.l.b16 %v3394
        %v3548 = vunpack.c.l.b16 %v3395
        %v3549 = vunpack.c.l.b16 %v3396
        %v3550 = vunpack.c.l.b16 %v3397
        %v3551 = vunpack.c.l.b16 %v3398
        %v3552 = vunpack.c.l.b16 %v3399
        %v3553 = vunpack.c.l.b16 %v3400
        %v3554 = vunpack.c.l.b16 %v3401
        %v3555 = vunpack.c.l.b16 %v3402
        %v3556 = vunpack.c.l.b16 %v3403
        %v3557 = vunpack.c.l.b16 %v3404
        %v3558 = vunpack.c.l.b16 %v3405
        %v3559 = vunpack.c.l.b16 %v3406
        %v3560 = vunpack.c.l.b16 %v3407
        %v3561 = vunpack.c.l.b16 %v3408
        %v3562 = vunpack.c.l.b16 %v3409
        %v3563 = vunpack.c.l.b16 %v3410
        %v3564 = vunpack.c.l.b16 %v3411
        %v3565 = vunpack.c.l.b16 %v3412
        %v3566 = vunpack.c.l.b16 %v3413
        %v3567 = vunpack.c.l.b16 %v3414
        %v3568 = vunpack.c.l.b16 %v3415
        %v3569 = vunpack.c.l.b16 %v3416
        %v3570 = vunpack.c.l.b16 %v3417
        %v3571 = vunpack.c.l.b16 %v3418
        %v3572 = vunpack.c.l.b16 %v3419
        %v3573 = vpack.c.b16 %v3502, %v3501
        %v3574 = vpack.c.b16 %v3504, %v3503
        %v3575 = vpack.c.b16 %v3506, %v3505
        %v3576 = vpack.c.b16 %v3508, %v3507
        %v3577 = vpack.c.b16 %v3510, %v3509
        %v3578 = vpack.c.b16 %v3512, %v3511
        %v3579 = vpack.c.b16 %v3514, %v3513
        %v3580 = vpack.c.b16 %v3516, %v3515
        %v3581 = vpack.c.b16 %v3518, %v3517
        %v3582 = vpack.c.b16 %v3520, %v3519
        %v3583 = vpack.c.b16 %v3522, %v3521
        %v3584 = vpack.c.b16 %v3524, %v3523
        %v3585 = vpack.c.b16 %v3526, %v3525
        %v3586 = vpack.c.b16 %v3528, %v3527
        %v3587 = vpack.c.b16 %v3530, %v3529
        %v3588 = vpack.c.b16 %v3532, %v3531
        %v3589 = vpack.c.b16 %v3534, %v3533
        %v3590 = vpack.c.b16 %v3536, %v3535
        %v3591 = vpack.c.b16 %v3538, %v3537
        %v3592 = vpack.c.b16 %v3540, %v3539
        %v3593 = vpack.c.b16 %v3542, %v3541
        %v3594 = vpack.c.b16 %v3544, %v3543
        %v3595 = vpack.c.b16 %v3546, %v3545
        %v3596 = vpack.c.b16 %v3548, %v3547
        %v3597 = vpack.c.b16 %v3550, %v3549
        %v3598 = vpack.c.b16 %v3552, %v3551
        %v3599 = vpack.c.b16 %v3554, %v3553
        %v3600 = vpack.c.b16 %v3556, %v3555
        %v3601 = vpack.c.b16 %v3558, %v3557
        %v3602 = vpack.c.b16 %v3560, %v3559
        %v3603 = vpack.c.b16 %v3562, %v3561
        %v3604 = vpack.c.b16 %v3564, %v3563
        %v3605 = vpack.c.b16 %v3566, %v3565
        %v3606 = vpack.c.b16 %v3568, %v3567
        %v3607 = vpack.c.b16 %v3570, %v3569
        %v3608 = vpack.c.b16 %v3572, %v3571
        %v3646 = vsel %vm1479, %v3424, 0
        %3648 = vmatpush.bf16.msra.mxu0 %v3580
        %3649 = vmatpush.bf16.msra.mxu0 %v3579
        %3650 = vmatpush.bf16.msra.mxu0 %v3578
        %3651 = vmatpush.bf16.msra.mxu0 %v3577
        %3652 = vmatpush.bf16.msra.mxu0 %v3576
        %3653 = vmatpush.bf16.msra.mxu0 %v3575
        %3654 = vmatpush.bf16.msra.mxu0 %v3574
        %3655 = vmatpush.bf16.msra.mxu0 %v3573
        %3656 = vmatmul.bf16.gmra.mxu0 %v3420
        %v3657 = vpop.f32.mrf.mxu0
        %v3658 = vadd.f32 0.0, %v3657
        %v3659 = vpop.f32.mrf.mxu0
        %3660 = vdwg.mxu0
        %3661 = vmatpush.bf16.msra.mxu0 %v3588
        %3662 = vmatpush.bf16.msra.mxu0 %v3587
        %3663 = vmatpush.bf16.msra.mxu0 %v3586
        %3664 = vmatpush.bf16.msra.mxu0 %v3585
        %3665 = vmatpush.bf16.msra.mxu0 %v3584
        %3666 = vmatpush.bf16.msra.mxu0 %v3583
        %3667 = vmatpush.bf16.msra.mxu0 %v3582
        %3668 = vmatpush.bf16.msra.mxu0 %v3581
        %3669 = vmatmul.bf16.gmra.mxu0 %v3421
        %v3670 = vpop.f32.mrf.mxu0
        %v3671 = vadd.f32 %v3658, %v3670
        %v3672 = vpop.f32.mrf.mxu0
        %3673 = vdwg.mxu0
        %3674 = vmatpush.bf16.msra.mxu0 %v3596
        %3675 = vmatpush.bf16.msra.mxu0 %v3595
        %3676 = vmatpush.bf16.msra.mxu0 %v3594
        %3677 = vmatpush.bf16.msra.mxu0 %v3593
        %3678 = vmatpush.bf16.msra.mxu0 %v3592
        %3679 = vmatpush.bf16.msra.mxu0 %v3591
        %3680 = vmatpush.bf16.msra.mxu0 %v3590
        %3681 = vmatpush.bf16.msra.mxu0 %v3589
        %3682 = vmatmul.bf16.gmra.mxu0 %v3422
        %v3683 = vpop.f32.mrf.mxu0
        %v3684 = vadd.f32 %v3671, %v3683
        %v3685 = vpop.f32.mrf.mxu0
        %3686 = vdwg.mxu0
        %3687 = vmatpush.bf16.msra.mxu0 %v3604
        %3688 = vmatpush.bf16.msra.mxu0 %v3603
        %3689 = vmatpush.bf16.msra.mxu0 %v3602
        %3690 = vmatpush.bf16.msra.mxu0 %v3601
        %3691 = vmatpush.bf16.msra.mxu0 %v3600
        %3692 = vmatpush.bf16.msra.mxu0 %v3599
        %3693 = vmatpush.bf16.msra.mxu0 %v3598
        %3694 = vmatpush.bf16.msra.mxu0 %v3597
        %3695 = vmatmul.bf16.gmra.mxu0 %v3423
        %v3696 = vpop.f32.mrf.mxu0
        %v3697 = vadd.f32 %v3684, %v3696
        %v3698 = vpop.f32.mrf.mxu0
        %3699 = vdwg.mxu0
        %3700 = vmatpush.bf16.msra.mxu0 0
        %3701 = vmatpush.bf16.msra.mxu0 0
        %3702 = vmatpush.bf16.msra.mxu0 0
        %3703 = vmatpush.bf16.msra.mxu0 0
        %3704 = vmatpush.bf16.msra.mxu0 %v3608
        %3705 = vmatpush.bf16.msra.mxu0 %v3607
        %3706 = vmatpush.bf16.msra.mxu0 %v3606
        %3707 = vmatpush.bf16.msra.mxu0 %v3605
        %3708 = vmatmul.bf16.gmra.mxu0 %v3646
        %v3709 = vpop.f32.mrf.mxu0
        %v3710 = vadd.f32 %v3697, %v3709
        %v3711 = vpop.f32.mrf.mxu0
        %3712 = vdwg.mxu0
        %v3713 = vadd.f32 %v3346, %v3710
        %s3714 = scalar_lea.vmem %s3, 1728
        %v3715 = vld [vmem:[%s3714] sm:$0xf]
        %v3716 = vld [vmem:[%s3714 + $0x4] sm:$0xf]
        %v3717 = vld [vmem:[%s3714 + $0x8] sm:$0xf]
        %v3718 = vld [vmem:[%s3714 + $0xc] sm:$0xf]
        %v3719 = vld [vmem:[%s3714 + $0x10] sm:$0xf]
        %v3720 = vld [vmem:[%s3714 + $0x14] sm:$0xf]
        %v3721 = vld [vmem:[%s3714 + $0x18] sm:$0xf]
        %v3722 = vld [vmem:[%s3714 + $0x1c] sm:$0xf]
        %v3723 = vld [vmem:[%s3714 + $0x20] sm:$0xf]
        %v3724 = vld [vmem:[%s3714 + $0x24] sm:$0xf]
        %v3725 = vld [vmem:[%s3714 + $0x28] sm:$0xf]
        %v3726 = vld [vmem:[%s3714 + $0x2c] sm:$0xf]
        %v3727 = vld [vmem:[%s3714 + $0x30] sm:$0xf]
        %v3728 = vld [vmem:[%s3714 + $0x34] sm:$0xf]
        %v3729 = vld [vmem:[%s3714 + $0x38] sm:$0xf]
        %v3730 = vld [vmem:[%s3714 + $0x3c] sm:$0xf]
        %v3731 = vld [vmem:[%s3714 + $0x40] sm:$0xf]
        %v3732 = vld [vmem:[%s3714 + $0x44] sm:$0xf]
        %v3733 = vld [vmem:[%s3714 + $0x48] sm:$0xf]
        %v3734 = vld [vmem:[%s3714 + $0x4c] sm:$0xf]
        %v3735 = vld [vmem:[%s3714 + $0x50] sm:$0xf]
        %v3736 = vld [vmem:[%s3714 + $0x54] sm:$0xf]
        %v3737 = vld [vmem:[%s3714 + $0x58] sm:$0xf]
        %v3738 = vld [vmem:[%s3714 + $0x5c] sm:$0xf]
        %v3739 = vld [vmem:[%s3714 + $0x60] sm:$0xf]
        %v3740 = vld [vmem:[%s3714 + $0x64] sm:$0xf]
        %v3741 = vld [vmem:[%s3714 + $0x68] sm:$0xf]
        %v3742 = vld [vmem:[%s3714 + $0x6c] sm:$0xf]
        %v3743 = vld [vmem:[%s3714 + $0x70] sm:$0xf]
        %v3744 = vld [vmem:[%s3714 + $0x74] sm:$0xf]
        %v3745 = vld [vmem:[%s3714 + $0x78] sm:$0xf]
        %v3746 = vld [vmem:[%s3714 + $0x7c] sm:$0xf]
        %v3747 = vld [vmem:[%s3714 + $0x80] sm:$0xf]
        %v3748 = vld [vmem:[%s3714 + $0x84] sm:$0xf]
        %v3749 = vld [vmem:[%s3714 + $0x88] sm:$0xf]
        %v3750 = vld [vmem:[%s3714 + $0x8c] sm:$0xf]
        %v3751 = vld [vmem:[%s3714 + $0x90] sm:$0xf]
        %v3752 = vld [vmem:[%s3714 + $0x94] sm:$0xf]
        %v3753 = vld [vmem:[%s3714 + $0x98] sm:$0xf]
        %v3754 = vld [vmem:[%s3714 + $0x9c] sm:$0xf]
        %v3755 = vld [vmem:[%s3714 + $0xa0] sm:$0xf]
        %v3756 = vld [vmem:[%s3714 + $0xa4] sm:$0xf]
        %v3757 = vld [vmem:[%s3714 + $0xa8] sm:$0xf]
        %v3758 = vld [vmem:[%s3714 + $0xac] sm:$0xf]
        %v3759 = vld [vmem:[%s3714 + $0xb0] sm:$0xf]
        %v3760 = vld [vmem:[%s3714 + $0xb4] sm:$0xf]
        %v3761 = vld [vmem:[%s3714 + $0xb8] sm:$0xf]
        %v3762 = vld [vmem:[%s3714 + $0xbc] sm:$0xf]
        %v3763 = vld [vmem:[%s3714 + $0xc0] sm:$0xf]
        %v3764 = vld [vmem:[%s3714 + $0xc4] sm:$0xf]
        %v3765 = vld [vmem:[%s3714 + $0xc8] sm:$0xf]
        %v3766 = vld [vmem:[%s3714 + $0xcc] sm:$0xf]
        %v3767 = vld [vmem:[%s3714 + $0xd0] sm:$0xf]
        %v3768 = vld [vmem:[%s3714 + $0xd4] sm:$0xf]
        %v3769 = vld [vmem:[%s3714 + $0xd8] sm:$0xf]
        %v3770 = vld [vmem:[%s3714 + $0xdc] sm:$0xf]
        %v3771 = vld [vmem:[%s3714 + $0xe0] sm:$0xf]
        %v3772 = vld [vmem:[%s3714 + $0xe4] sm:$0xf]
        %v3773 = vld [vmem:[%s3714 + $0xe8] sm:$0xf]
        %v3774 = vld [vmem:[%s3714 + $0xec] sm:$0xf]
        %v3775 = vld [vmem:[%s3714 + $0xf0] sm:$0xf]
        %v3776 = vld [vmem:[%s3714 + $0xf4] sm:$0xf]
        %v3777 = vld [vmem:[%s3714 + $0xf8] sm:$0xf]
        %v3778 = vld [vmem:[%s3714 + $0xfc] sm:$0xf]
        %v3779 = vld [vmem:[%s3714 + $0x100] sm:$0xf]
        %v3780 = vld [vmem:[%s3714 + $0x104] sm:$0xf]
        %v3781 = vld [vmem:[%s3714 + $0x108] sm:$0xf]
        %v3782 = vld [vmem:[%s3714 + $0x10c] sm:$0xf]
        %v3783 = vld [vmem:[%s3714 + $0x110] sm:$0xf]
        %v3784 = vld [vmem:[%s3714 + $0x114] sm:$0xf]
        %v3785 = vld [vmem:[%s3714 + $0x118] sm:$0xf]
        %v3786 = vld [vmem:[%s3714 + $0x11c] sm:$0xf]
        %v3787 = vrot.slane %v1576, 3
        %v3788 = vrot.slane %v1577, 3
        %v3789 = vrot.slane %v1578, 3
        %v3790 = vrot.slane %v1579, 3
        %v3791 = vrot.slane %v1580, 3
        %v3868 = vunpack.c.l.b16 %v3715
        %v3869 = vunpack.c.l.b16 %v3716
        %v3870 = vunpack.c.l.b16 %v3717
        %v3871 = vunpack.c.l.b16 %v3718
        %v3872 = vunpack.c.l.b16 %v3719
        %v3873 = vunpack.c.l.b16 %v3720
        %v3874 = vunpack.c.l.b16 %v3721
        %v3875 = vunpack.c.l.b16 %v3722
        %v3876 = vunpack.c.l.b16 %v3723
        %v3877 = vunpack.c.l.b16 %v3724
        %v3878 = vunpack.c.l.b16 %v3725
        %v3879 = vunpack.c.l.b16 %v3726
        %v3880 = vunpack.c.l.b16 %v3727
        %v3881 = vunpack.c.l.b16 %v3728
        %v3882 = vunpack.c.l.b16 %v3729
        %v3883 = vunpack.c.l.b16 %v3730
        %v3884 = vunpack.c.l.b16 %v3731
        %v3885 = vunpack.c.l.b16 %v3732
        %v3886 = vunpack.c.l.b16 %v3733
        %v3887 = vunpack.c.l.b16 %v3734
        %v3888 = vunpack.c.l.b16 %v3735
        %v3889 = vunpack.c.l.b16 %v3736
        %v3890 = vunpack.c.l.b16 %v3737
        %v3891 = vunpack.c.l.b16 %v3738
        %v3892 = vunpack.c.l.b16 %v3739
        %v3893 = vunpack.c.l.b16 %v3740
        %v3894 = vunpack.c.l.b16 %v3741
        %v3895 = vunpack.c.l.b16 %v3742
        %v3896 = vunpack.c.l.b16 %v3743
        %v3897 = vunpack.c.l.b16 %v3744
        %v3898 = vunpack.c.l.b16 %v3745
        %v3899 = vunpack.c.l.b16 %v3746
        %v3900 = vunpack.c.l.b16 %v3747
        %v3901 = vunpack.c.l.b16 %v3748
        %v3902 = vunpack.c.l.b16 %v3749
        %v3903 = vunpack.c.l.b16 %v3750
        %v3904 = vunpack.c.l.b16 %v3751
        %v3905 = vunpack.c.l.b16 %v3752
        %v3906 = vunpack.c.l.b16 %v3753
        %v3907 = vunpack.c.l.b16 %v3754
        %v3908 = vunpack.c.l.b16 %v3755
        %v3909 = vunpack.c.l.b16 %v3756
        %v3910 = vunpack.c.l.b16 %v3757
        %v3911 = vunpack.c.l.b16 %v3758
        %v3912 = vunpack.c.l.b16 %v3759
        %v3913 = vunpack.c.l.b16 %v3760
        %v3914 = vunpack.c.l.b16 %v3761
        %v3915 = vunpack.c.l.b16 %v3762
        %v3916 = vunpack.c.l.b16 %v3763
        %v3917 = vunpack.c.l.b16 %v3764
        %v3918 = vunpack.c.l.b16 %v3765
        %v3919 = vunpack.c.l.b16 %v3766
        %v3920 = vunpack.c.l.b16 %v3767
        %v3921 = vunpack.c.l.b16 %v3768
        %v3922 = vunpack.c.l.b16 %v3769
        %v3923 = vunpack.c.l.b16 %v3770
        %v3924 = vunpack.c.l.b16 %v3771
        %v3925 = vunpack.c.l.b16 %v3772
        %v3926 = vunpack.c.l.b16 %v3773
        %v3927 = vunpack.c.l.b16 %v3774
        %v3928 = vunpack.c.l.b16 %v3775
        %v3929 = vunpack.c.l.b16 %v3776
        %v3930 = vunpack.c.l.b16 %v3777
        %v3931 = vunpack.c.l.b16 %v3778
        %v3932 = vunpack.c.l.b16 %v3779
        %v3933 = vunpack.c.l.b16 %v3780
        %v3934 = vunpack.c.l.b16 %v3781
        %v3935 = vunpack.c.l.b16 %v3782
        %v3936 = vunpack.c.l.b16 %v3783
        %v3937 = vunpack.c.l.b16 %v3784
        %v3938 = vunpack.c.l.b16 %v3785
        %v3939 = vunpack.c.l.b16 %v3786
        %v3940 = vpack.c.b16 %v3869, %v3868
        %v3941 = vpack.c.b16 %v3871, %v3870
        %v3942 = vpack.c.b16 %v3873, %v3872
        %v3943 = vpack.c.b16 %v3875, %v3874
        %v3944 = vpack.c.b16 %v3877, %v3876
        %v3945 = vpack.c.b16 %v3879, %v3878
        %v3946 = vpack.c.b16 %v3881, %v3880
        %v3947 = vpack.c.b16 %v3883, %v3882
        %v3948 = vpack.c.b16 %v3885, %v3884
        %v3949 = vpack.c.b16 %v3887, %v3886
        %v3950 = vpack.c.b16 %v3889, %v3888
        %v3951 = vpack.c.b16 %v3891, %v3890
        %v3952 = vpack.c.b16 %v3893, %v3892
        %v3953 = vpack.c.b16 %v3895, %v3894
        %v3954 = vpack.c.b16 %v3897, %v3896
        %v3955 = vpack.c.b16 %v3899, %v3898
        %v3956 = vpack.c.b16 %v3901, %v3900
        %v3957 = vpack.c.b16 %v3903, %v3902
        %v3958 = vpack.c.b16 %v3905, %v3904
        %v3959 = vpack.c.b16 %v3907, %v3906
        %v3960 = vpack.c.b16 %v3909, %v3908
        %v3961 = vpack.c.b16 %v3911, %v3910
        %v3962 = vpack.c.b16 %v3913, %v3912
        %v3963 = vpack.c.b16 %v3915, %v3914
        %v3964 = vpack.c.b16 %v3917, %v3916
        %v3965 = vpack.c.b16 %v3919, %v3918
        %v3966 = vpack.c.b16 %v3921, %v3920
        %v3967 = vpack.c.b16 %v3923, %v3922
        %v3968 = vpack.c.b16 %v3925, %v3924
        %v3969 = vpack.c.b16 %v3927, %v3926
        %v3970 = vpack.c.b16 %v3929, %v3928
        %v3971 = vpack.c.b16 %v3931, %v3930
        %v3972 = vpack.c.b16 %v3933, %v3932
        %v3973 = vpack.c.b16 %v3935, %v3934
        %v3974 = vpack.c.b16 %v3937, %v3936
        %v3975 = vpack.c.b16 %v3939, %v3938
        %v4013 = vsel %vm1479, %v3791, 0
        %4015 = vmatpush.bf16.msra.mxu0 %v3947
        %4016 = vmatpush.bf16.msra.mxu0 %v3946
        %4017 = vmatpush.bf16.msra.mxu0 %v3945
        %4018 = vmatpush.bf16.msra.mxu0 %v3944
        %4019 = vmatpush.bf16.msra.mxu0 %v3943
        %4020 = vmatpush.bf16.msra.mxu0 %v3942
        %4021 = vmatpush.bf16.msra.mxu0 %v3941
        %4022 = vmatpush.bf16.msra.mxu0 %v3940
        %4023 = vmatmul.bf16.gmra.mxu0 %v3787
        %v4024 = vpop.f32.mrf.mxu0
        %v4025 = vadd.f32 0.0, %v4024
        %v4026 = vpop.f32.mrf.mxu0
        %4027 = vdwg.mxu0
        %4028 = vmatpush.bf16.msra.mxu0 %v3955
        %4029 = vmatpush.bf16.msra.mxu0 %v3954
        %4030 = vmatpush.bf16.msra.mxu0 %v3953
        %4031 = vmatpush.bf16.msra.mxu0 %v3952
        %4032 = vmatpush.bf16.msra.mxu0 %v3951
        %4033 = vmatpush.bf16.msra.mxu0 %v3950
        %4034 = vmatpush.bf16.msra.mxu0 %v3949
        %4035 = vmatpush.bf16.msra.mxu0 %v3948
        %4036 = vmatmul.bf16.gmra.mxu0 %v3788
        %v4037 = vpop.f32.mrf.mxu0
        %v4038 = vadd.f32 %v4025, %v4037
        %v4039 = vpop.f32.mrf.mxu0
        %4040 = vdwg.mxu0
        %4041 = vmatpush.bf16.msra.mxu0 %v3963
        %4042 = vmatpush.bf16.msra.mxu0 %v3962
        %4043 = vmatpush.bf16.msra.mxu0 %v3961
        %4044 = vmatpush.bf16.msra.mxu0 %v3960
        %4045 = vmatpush.bf16.msra.mxu0 %v3959
        %4046 = vmatpush.bf16.msra.mxu0 %v3958
        %4047 = vmatpush.bf16.msra.mxu0 %v3957
        %4048 = vmatpush.bf16.msra.mxu0 %v3956
        %4049 = vmatmul.bf16.gmra.mxu0 %v3789
        %v4050 = vpop.f32.mrf.mxu0
        %v4051 = vadd.f32 %v4038, %v4050
        %v4052 = vpop.f32.mrf.mxu0
        %4053 = vdwg.mxu0
        %4054 = vmatpush.bf16.msra.mxu0 %v3971
        %4055 = vmatpush.bf16.msra.mxu0 %v3970
        %4056 = vmatpush.bf16.msra.mxu0 %v3969
        %4057 = vmatpush.bf16.msra.mxu0 %v3968
        %4058 = vmatpush.bf16.msra.mxu0 %v3967
        %4059 = vmatpush.bf16.msra.mxu0 %v3966
        %4060 = vmatpush.bf16.msra.mxu0 %v3965
        %4061 = vmatpush.bf16.msra.mxu0 %v3964
        %4062 = vmatmul.bf16.gmra.mxu0 %v3790
        %v4063 = vpop.f32.mrf.mxu0
        %v4064 = vadd.f32 %v4051, %v4063
        %v4065 = vpop.f32.mrf.mxu0
        %4066 = vdwg.mxu0
        %4067 = vmatpush.bf16.msra.mxu0 0
        %4068 = vmatpush.bf16.msra.mxu0 0
        %4069 = vmatpush.bf16.msra.mxu0 0
        %4070 = vmatpush.bf16.msra.mxu0 0
        %4071 = vmatpush.bf16.msra.mxu0 %v3975
        %4072 = vmatpush.bf16.msra.mxu0 %v3974
        %4073 = vmatpush.bf16.msra.mxu0 %v3973
        %4074 = vmatpush.bf16.msra.mxu0 %v3972
        %4075 = vmatmul.bf16.gmra.mxu0 %v4013
        %v4076 = vpop.f32.mrf.mxu0
        %v4077 = vadd.f32 %v4064, %v4076
        %v4078 = vpop.f32.mrf.mxu0
        %4079 = vdwg.mxu0
        %v4080 = vadd.f32 %v3713, %v4077
        %s4081 = scalar_lea.vmem %s3, 2016
        %v4082 = vld [vmem:[%s4081] sm:$0xf]
        %v4083 = vld [vmem:[%s4081 + $0x4] sm:$0xf]
        %v4084 = vld [vmem:[%s4081 + $0x8] sm:$0xf]
        %v4085 = vld [vmem:[%s4081 + $0xc] sm:$0xf]
        %v4086 = vld [vmem:[%s4081 + $0x10] sm:$0xf]
        %v4087 = vld [vmem:[%s4081 + $0x14] sm:$0xf]
        %v4088 = vld [vmem:[%s4081 + $0x18] sm:$0xf]
        %v4089 = vld [vmem:[%s4081 + $0x1c] sm:$0xf]
        %v4090 = vld [vmem:[%s4081 + $0x20] sm:$0xf]
        %v4091 = vld [vmem:[%s4081 + $0x24] sm:$0xf]
        %v4092 = vld [vmem:[%s4081 + $0x28] sm:$0xf]
        %v4093 = vld [vmem:[%s4081 + $0x2c] sm:$0xf]
        %v4094 = vld [vmem:[%s4081 + $0x30] sm:$0xf]
        %v4095 = vld [vmem:[%s4081 + $0x34] sm:$0xf]
        %v4096 = vld [vmem:[%s4081 + $0x38] sm:$0xf]
        %v4097 = vld [vmem:[%s4081 + $0x3c] sm:$0xf]
        %v4098 = vld [vmem:[%s4081 + $0x40] sm:$0xf]
        %v4099 = vld [vmem:[%s4081 + $0x44] sm:$0xf]
        %v4100 = vld [vmem:[%s4081 + $0x48] sm:$0xf]
        %v4101 = vld [vmem:[%s4081 + $0x4c] sm:$0xf]
        %v4102 = vld [vmem:[%s4081 + $0x50] sm:$0xf]
        %v4103 = vld [vmem:[%s4081 + $0x54] sm:$0xf]
        %v4104 = vld [vmem:[%s4081 + $0x58] sm:$0xf]
        %v4105 = vld [vmem:[%s4081 + $0x5c] sm:$0xf]
        %v4106 = vld [vmem:[%s4081 + $0x60] sm:$0xf]
        %v4107 = vld [vmem:[%s4081 + $0x64] sm:$0xf]
        %v4108 = vld [vmem:[%s4081 + $0x68] sm:$0xf]
        %v4109 = vld [vmem:[%s4081 + $0x6c] sm:$0xf]
        %v4110 = vld [vmem:[%s4081 + $0x70] sm:$0xf]
        %v4111 = vld [vmem:[%s4081 + $0x74] sm:$0xf]
        %v4112 = vld [vmem:[%s4081 + $0x78] sm:$0xf]
        %v4113 = vld [vmem:[%s4081 + $0x7c] sm:$0xf]
        %v4114 = vld [vmem:[%s4081 + $0x80] sm:$0xf]
        %v4115 = vld [vmem:[%s4081 + $0x84] sm:$0xf]
        %v4116 = vld [vmem:[%s4081 + $0x88] sm:$0xf]
        %v4117 = vld [vmem:[%s4081 + $0x8c] sm:$0xf]
        %v4118 = vld [vmem:[%s4081 + $0x90] sm:$0xf]
        %v4119 = vld [vmem:[%s4081 + $0x94] sm:$0xf]
        %v4120 = vld [vmem:[%s4081 + $0x98] sm:$0xf]
        %v4121 = vld [vmem:[%s4081 + $0x9c] sm:$0xf]
        %v4122 = vld [vmem:[%s4081 + $0xa0] sm:$0xf]
        %v4123 = vld [vmem:[%s4081 + $0xa4] sm:$0xf]
        %v4124 = vld [vmem:[%s4081 + $0xa8] sm:$0xf]
        %v4125 = vld [vmem:[%s4081 + $0xac] sm:$0xf]
        %v4126 = vld [vmem:[%s4081 + $0xb0] sm:$0xf]
        %v4127 = vld [vmem:[%s4081 + $0xb4] sm:$0xf]
        %v4128 = vld [vmem:[%s4081 + $0xb8] sm:$0xf]
        %v4129 = vld [vmem:[%s4081 + $0xbc] sm:$0xf]
        %v4130 = vld [vmem:[%s4081 + $0xc0] sm:$0xf]
        %v4131 = vld [vmem:[%s4081 + $0xc4] sm:$0xf]
        %v4132 = vld [vmem:[%s4081 + $0xc8] sm:$0xf]
        %v4133 = vld [vmem:[%s4081 + $0xcc] sm:$0xf]
        %v4134 = vld [vmem:[%s4081 + $0xd0] sm:$0xf]
        %v4135 = vld [vmem:[%s4081 + $0xd4] sm:$0xf]
        %v4136 = vld [vmem:[%s4081 + $0xd8] sm:$0xf]
        %v4137 = vld [vmem:[%s4081 + $0xdc] sm:$0xf]
        %v4138 = vld [vmem:[%s4081 + $0xe0] sm:$0xf]
        %v4139 = vld [vmem:[%s4081 + $0xe4] sm:$0xf]
        %v4140 = vld [vmem:[%s4081 + $0xe8] sm:$0xf]
        %v4141 = vld [vmem:[%s4081 + $0xec] sm:$0xf]
        %v4142 = vld [vmem:[%s4081 + $0xf0] sm:$0xf]
        %v4143 = vld [vmem:[%s4081 + $0xf4] sm:$0xf]
        %v4144 = vld [vmem:[%s4081 + $0xf8] sm:$0xf]
        %v4145 = vld [vmem:[%s4081 + $0xfc] sm:$0xf]
        %v4146 = vld [vmem:[%s4081 + $0x100] sm:$0xf]
        %v4147 = vld [vmem:[%s4081 + $0x104] sm:$0xf]
        %v4148 = vld [vmem:[%s4081 + $0x108] sm:$0xf]
        %v4149 = vld [vmem:[%s4081 + $0x10c] sm:$0xf]
        %v4150 = vld [vmem:[%s4081 + $0x110] sm:$0xf]
        %v4151 = vld [vmem:[%s4081 + $0x114] sm:$0xf]
        %v4152 = vld [vmem:[%s4081 + $0x118] sm:$0xf]
        %v4153 = vld [vmem:[%s4081 + $0x11c] sm:$0xf]
        %v4154 = vrot.slane %v1944, 3
        %v4155 = vrot.slane %v1947, 3
        %v4156 = vrot.slane %v1950, 3
        %v4157 = vrot.slane %v1953, 3
        %v4158 = vrot.slane %v1955, 3
        %v4235 = vunpack.c.l.b16 %v4082
        %v4236 = vunpack.c.l.b16 %v4083
        %v4237 = vunpack.c.l.b16 %v4084
        %v4238 = vunpack.c.l.b16 %v4085
        %v4239 = vunpack.c.l.b16 %v4086
        %v4240 = vunpack.c.l.b16 %v4087
        %v4241 = vunpack.c.l.b16 %v4088
        %v4242 = vunpack.c.l.b16 %v4089
        %v4243 = vunpack.c.l.b16 %v4090
        %v4244 = vunpack.c.l.b16 %v4091
        %v4245 = vunpack.c.l.b16 %v4092
        %v4246 = vunpack.c.l.b16 %v4093
        %v4247 = vunpack.c.l.b16 %v4094
        %v4248 = vunpack.c.l.b16 %v4095
        %v4249 = vunpack.c.l.b16 %v4096
        %v4250 = vunpack.c.l.b16 %v4097
        %v4251 = vunpack.c.l.b16 %v4098
        %v4252 = vunpack.c.l.b16 %v4099
        %v4253 = vunpack.c.l.b16 %v4100
        %v4254 = vunpack.c.l.b16 %v4101
        %v4255 = vunpack.c.l.b16 %v4102
        %v4256 = vunpack.c.l.b16 %v4103
        %v4257 = vunpack.c.l.b16 %v4104
        %v4258 = vunpack.c.l.b16 %v4105
        %v4259 = vunpack.c.l.b16 %v4106
        %v4260 = vunpack.c.l.b16 %v4107
        %v4261 = vunpack.c.l.b16 %v4108
        %v4262 = vunpack.c.l.b16 %v4109
        %v4263 = vunpack.c.l.b16 %v4110
        %v4264 = vunpack.c.l.b16 %v4111
        %v4265 = vunpack.c.l.b16 %v4112
        %v4266 = vunpack.c.l.b16 %v4113
        %v4267 = vunpack.c.l.b16 %v4114
        %v4268 = vunpack.c.l.b16 %v4115
        %v4269 = vunpack.c.l.b16 %v4116
        %v4270 = vunpack.c.l.b16 %v4117
        %v4271 = vunpack.c.l.b16 %v4118
        %v4272 = vunpack.c.l.b16 %v4119
        %v4273 = vunpack.c.l.b16 %v4120
        %v4274 = vunpack.c.l.b16 %v4121
        %v4275 = vunpack.c.l.b16 %v4122
        %v4276 = vunpack.c.l.b16 %v4123
        %v4277 = vunpack.c.l.b16 %v4124
        %v4278 = vunpack.c.l.b16 %v4125
        %v4279 = vunpack.c.l.b16 %v4126
        %v4280 = vunpack.c.l.b16 %v4127
        %v4281 = vunpack.c.l.b16 %v4128
        %v4282 = vunpack.c.l.b16 %v4129
        %v4283 = vunpack.c.l.b16 %v4130
        %v4284 = vunpack.c.l.b16 %v4131
        %v4285 = vunpack.c.l.b16 %v4132
        %v4286 = vunpack.c.l.b16 %v4133
        %v4287 = vunpack.c.l.b16 %v4134
        %v4288 = vunpack.c.l.b16 %v4135
        %v4289 = vunpack.c.l.b16 %v4136
        %v4290 = vunpack.c.l.b16 %v4137
        %v4291 = vunpack.c.l.b16 %v4138
        %v4292 = vunpack.c.l.b16 %v4139
        %v4293 = vunpack.c.l.b16 %v4140
        %v4294 = vunpack.c.l.b16 %v4141
        %v4295 = vunpack.c.l.b16 %v4142
        %v4296 = vunpack.c.l.b16 %v4143
        %v4297 = vunpack.c.l.b16 %v4144
        %v4298 = vunpack.c.l.b16 %v4145
        %v4299 = vunpack.c.l.b16 %v4146
        %v4300 = vunpack.c.l.b16 %v4147
        %v4301 = vunpack.c.l.b16 %v4148
        %v4302 = vunpack.c.l.b16 %v4149
        %v4303 = vunpack.c.l.b16 %v4150
        %v4304 = vunpack.c.l.b16 %v4151
        %v4305 = vunpack.c.l.b16 %v4152
        %v4306 = vunpack.c.l.b16 %v4153
        %v4307 = vpack.c.b16 %v4236, %v4235
        %v4308 = vpack.c.b16 %v4238, %v4237
        %v4309 = vpack.c.b16 %v4240, %v4239
        %v4310 = vpack.c.b16 %v4242, %v4241
        %v4311 = vpack.c.b16 %v4244, %v4243
        %v4312 = vpack.c.b16 %v4246, %v4245
        %v4313 = vpack.c.b16 %v4248, %v4247
        %v4314 = vpack.c.b16 %v4250, %v4249
        %v4315 = vpack.c.b16 %v4252, %v4251
        %v4316 = vpack.c.b16 %v4254, %v4253
        %v4317 = vpack.c.b16 %v4256, %v4255
        %v4318 = vpack.c.b16 %v4258, %v4257
        %v4319 = vpack.c.b16 %v4260, %v4259
        %v4320 = vpack.c.b16 %v4262, %v4261
        %v4321 = vpack.c.b16 %v4264, %v4263
        %v4322 = vpack.c.b16 %v4266, %v4265
        %v4323 = vpack.c.b16 %v4268, %v4267
        %v4324 = vpack.c.b16 %v4270, %v4269
        %v4325 = vpack.c.b16 %v4272, %v4271
        %v4326 = vpack.c.b16 %v4274, %v4273
        %v4327 = vpack.c.b16 %v4276, %v4275
        %v4328 = vpack.c.b16 %v4278, %v4277
        %v4329 = vpack.c.b16 %v4280, %v4279
        %v4330 = vpack.c.b16 %v4282, %v4281
        %v4331 = vpack.c.b16 %v4284, %v4283
        %v4332 = vpack.c.b16 %v4286, %v4285
        %v4333 = vpack.c.b16 %v4288, %v4287
        %v4334 = vpack.c.b16 %v4290, %v4289
        %v4335 = vpack.c.b16 %v4292, %v4291
        %v4336 = vpack.c.b16 %v4294, %v4293
        %v4337 = vpack.c.b16 %v4296, %v4295
        %v4338 = vpack.c.b16 %v4298, %v4297
        %v4339 = vpack.c.b16 %v4300, %v4299
        %v4340 = vpack.c.b16 %v4302, %v4301
        %v4341 = vpack.c.b16 %v4304, %v4303
        %v4342 = vpack.c.b16 %v4306, %v4305
        %v4380 = vsel %vm1479, %v4158, 0
        %4382 = vmatpush.bf16.msra.mxu0 %v4314
        %4383 = vmatpush.bf16.msra.mxu0 %v4313
        %4384 = vmatpush.bf16.msra.mxu0 %v4312
        %4385 = vmatpush.bf16.msra.mxu0 %v4311
        %4386 = vmatpush.bf16.msra.mxu0 %v4310
        %4387 = vmatpush.bf16.msra.mxu0 %v4309
        %4388 = vmatpush.bf16.msra.mxu0 %v4308
        %4389 = vmatpush.bf16.msra.mxu0 %v4307
        %4390 = vmatmul.bf16.gmra.mxu0 %v4154
        %v4391 = vpop.f32.mrf.mxu0
        %v4392 = vadd.f32 0.0, %v4391
        %v4393 = vpop.f32.mrf.mxu0
        %4394 = vdwg.mxu0
        %4395 = vmatpush.bf16.msra.mxu0 %v4322
        %4396 = vmatpush.bf16.msra.mxu0 %v4321
        %4397 = vmatpush.bf16.msra.mxu0 %v4320
        %4398 = vmatpush.bf16.msra.mxu0 %v4319
        %4399 = vmatpush.bf16.msra.mxu0 %v4318
        %4400 = vmatpush.bf16.msra.mxu0 %v4317
        %4401 = vmatpush.bf16.msra.mxu0 %v4316
        %4402 = vmatpush.bf16.msra.mxu0 %v4315
        %4403 = vmatmul.bf16.gmra.mxu0 %v4155
        %v4404 = vpop.f32.mrf.mxu0
        %v4405 = vadd.f32 %v4392, %v4404
        %v4406 = vpop.f32.mrf.mxu0
        %4407 = vdwg.mxu0
        %4408 = vmatpush.bf16.msra.mxu0 %v4330
        %4409 = vmatpush.bf16.msra.mxu0 %v4329
        %4410 = vmatpush.bf16.msra.mxu0 %v4328
        %4411 = vmatpush.bf16.msra.mxu0 %v4327
        %4412 = vmatpush.bf16.msra.mxu0 %v4326
        %4413 = vmatpush.bf16.msra.mxu0 %v4325
        %4414 = vmatpush.bf16.msra.mxu0 %v4324
        %4415 = vmatpush.bf16.msra.mxu0 %v4323
        %4416 = vmatmul.bf16.gmra.mxu0 %v4156
        %v4417 = vpop.f32.mrf.mxu0
        %v4418 = vadd.f32 %v4405, %v4417
        %v4419 = vpop.f32.mrf.mxu0
        %4420 = vdwg.mxu0
        %4421 = vmatpush.bf16.msra.mxu0 %v4338
        %4422 = vmatpush.bf16.msra.mxu0 %v4337
        %4423 = vmatpush.bf16.msra.mxu0 %v4336
        %4424 = vmatpush.bf16.msra.mxu0 %v4335
        %4425 = vmatpush.bf16.msra.mxu0 %v4334
        %4426 = vmatpush.bf16.msra.mxu0 %v4333
        %4427 = vmatpush.bf16.msra.mxu0 %v4332
        %4428 = vmatpush.bf16.msra.mxu0 %v4331
        %4429 = vmatmul.bf16.gmra.mxu0 %v4157
        %v4430 = vpop.f32.mrf.mxu0
        %v4431 = vadd.f32 %v4418, %v4430
        %v4432 = vpop.f32.mrf.mxu0
        %4433 = vdwg.mxu0
        %4434 = vmatpush.bf16.msra.mxu0 0
        %4435 = vmatpush.bf16.msra.mxu0 0
        %4436 = vmatpush.bf16.msra.mxu0 0
        %4437 = vmatpush.bf16.msra.mxu0 0
        %4438 = vmatpush.bf16.msra.mxu0 %v4342
        %4439 = vmatpush.bf16.msra.mxu0 %v4341
        %4440 = vmatpush.bf16.msra.mxu0 %v4340
        %4441 = vmatpush.bf16.msra.mxu0 %v4339
        %4442 = vmatmul.bf16.gmra.mxu0 %v4380
        %v4443 = vpop.f32.mrf.mxu0
        %v4444 = vadd.f32 %v4431, %v4443
        %v4445 = vpop.f32.mrf.mxu0
        %4446 = vdwg.mxu0
        %v4447 = vadd.f32 %v4080, %v4444
        %v4448 = vmax.f32 %v1470, 0.0
        %v4449 = vmax.f32 %v1471, 0.0
        %v4450 = vmax.f32 %v1472, 0.0
        %v4451 = vmax.f32 %v1473, 0.0
        %v4452 = vmax.f32 %v1474, 0.0
        %v4453 = vpack.c.bf16 %v4449, %v4448
        %v4454 = vpack.c.bf16 %v4451, %v4450
        %v4455 = vpack.c.bf16 %v4452, %v4452
        %s4456 = scalar_lea.vmem %s3, 2304
        %v4457 = vld [vmem:[%s4456] sm:$0xf]
        %v4458 = vld [vmem:[%s4456 + $0x4] sm:$0xf]
        %v4459 = vld [vmem:[%s4456 + $0x8] sm:$0xf]
        %v4460 = vld [vmem:[%s4456 + $0xc] sm:$0xf]
        %v4461 = vld [vmem:[%s4456 + $0x10] sm:$0xf]
        %v4462 = vld [vmem:[%s4456 + $0x14] sm:$0xf]
        %v4463 = vld [vmem:[%s4456 + $0x18] sm:$0xf]
        %v4464 = vld [vmem:[%s4456 + $0x1c] sm:$0xf]
        %v4465 = vld [vmem:[%s4456 + $0x20] sm:$0xf]
        %v4466 = vld [vmem:[%s4456 + $0x24] sm:$0xf]
        %v4467 = vld [vmem:[%s4456 + $0x28] sm:$0xf]
        %v4468 = vld [vmem:[%s4456 + $0x2c] sm:$0xf]
        %v4469 = vld [vmem:[%s4456 + $0x30] sm:$0xf]
        %v4470 = vld [vmem:[%s4456 + $0x34] sm:$0xf]
        %v4471 = vld [vmem:[%s4456 + $0x38] sm:$0xf]
        %v4472 = vld [vmem:[%s4456 + $0x3c] sm:$0xf]
        %v4473 = vld [vmem:[%s4456 + $0x40] sm:$0xf]
        %v4474 = vld [vmem:[%s4456 + $0x44] sm:$0xf]
        %v4475 = vld [vmem:[%s4456 + $0x48] sm:$0xf]
        %v4476 = vld [vmem:[%s4456 + $0x4c] sm:$0xf]
        %v4477 = vld [vmem:[%s4456 + $0x50] sm:$0xf]
        %v4478 = vld [vmem:[%s4456 + $0x54] sm:$0xf]
        %v4479 = vld [vmem:[%s4456 + $0x58] sm:$0xf]
        %v4480 = vld [vmem:[%s4456 + $0x5c] sm:$0xf]
        %v4481 = vld [vmem:[%s4456 + $0x60] sm:$0xf]
        %v4482 = vld [vmem:[%s4456 + $0x64] sm:$0xf]
        %v4483 = vld [vmem:[%s4456 + $0x68] sm:$0xf]
        %v4484 = vld [vmem:[%s4456 + $0x6c] sm:$0xf]
        %v4485 = vld [vmem:[%s4456 + $0x70] sm:$0xf]
        %v4486 = vld [vmem:[%s4456 + $0x74] sm:$0xf]
        %v4487 = vld [vmem:[%s4456 + $0x78] sm:$0xf]
        %v4488 = vld [vmem:[%s4456 + $0x7c] sm:$0xf]
        %v4489 = vld [vmem:[%s4456 + $0x80] sm:$0xf]
        %v4490 = vld [vmem:[%s4456 + $0x84] sm:$0xf]
        %v4491 = vld [vmem:[%s4456 + $0x88] sm:$0xf]
        %v4492 = vld [vmem:[%s4456 + $0x8c] sm:$0xf]
        %v4493 = vld [vmem:[%s4456 + $0x90] sm:$0xf]
        %v4494 = vld [vmem:[%s4456 + $0x94] sm:$0xf]
        %v4495 = vld [vmem:[%s4456 + $0x98] sm:$0xf]
        %v4496 = vld [vmem:[%s4456 + $0x9c] sm:$0xf]
        %v4497 = vld [vmem:[%s4456 + $0xa0] sm:$0xf]
        %v4498 = vld [vmem:[%s4456 + $0xa4] sm:$0xf]
        %v4499 = vld [vmem:[%s4456 + $0xa8] sm:$0xf]
        %v4500 = vld [vmem:[%s4456 + $0xac] sm:$0xf]
        %v4501 = vld [vmem:[%s4456 + $0xb0] sm:$0xf]
        %v4502 = vld [vmem:[%s4456 + $0xb4] sm:$0xf]
        %v4503 = vld [vmem:[%s4456 + $0xb8] sm:$0xf]
        %v4504 = vld [vmem:[%s4456 + $0xbc] sm:$0xf]
        %v4505 = vld [vmem:[%s4456 + $0xc0] sm:$0xf]
        %v4506 = vld [vmem:[%s4456 + $0xc4] sm:$0xf]
        %v4507 = vld [vmem:[%s4456 + $0xc8] sm:$0xf]
        %v4508 = vld [vmem:[%s4456 + $0xcc] sm:$0xf]
        %v4509 = vld [vmem:[%s4456 + $0xd0] sm:$0xf]
        %v4510 = vld [vmem:[%s4456 + $0xd4] sm:$0xf]
        %v4511 = vld [vmem:[%s4456 + $0xd8] sm:$0xf]
        %v4512 = vld [vmem:[%s4456 + $0xdc] sm:$0xf]
        %v4513 = vld [vmem:[%s4456 + $0xe0] sm:$0xf]
        %v4514 = vld [vmem:[%s4456 + $0xe4] sm:$0xf]
        %v4515 = vld [vmem:[%s4456 + $0xe8] sm:$0xf]
        %v4516 = vld [vmem:[%s4456 + $0xec] sm:$0xf]
        %v4517 = vld [vmem:[%s4456 + $0xf0] sm:$0xf]
        %v4518 = vld [vmem:[%s4456 + $0xf4] sm:$0xf]
        %v4519 = vld [vmem:[%s4456 + $0xf8] sm:$0xf]
        %v4520 = vld [vmem:[%s4456 + $0xfc] sm:$0xf]
        %v4521 = vld [vmem:[%s4456 + $0x100] sm:$0xf]
        %v4522 = vld [vmem:[%s4456 + $0x104] sm:$0xf]
        %v4523 = vld [vmem:[%s4456 + $0x108] sm:$0xf]
        %v4524 = vld [vmem:[%s4456 + $0x10c] sm:$0xf]
        %v4525 = vld [vmem:[%s4456 + $0x110] sm:$0xf]
        %v4526 = vld [vmem:[%s4456 + $0x114] sm:$0xf]
        %v4527 = vld [vmem:[%s4456 + $0x118] sm:$0xf]
        %v4528 = vld [vmem:[%s4456 + $0x11c] sm:$0xf]
        %v4532 = vunpack.c.l.b16 %v4453
        %v4533 = vunpack.c.h.b16 %v4453
        %v4534 = vunpack.c.l.b16 %v4454
        %v4535 = vunpack.c.h.b16 %v4454
        %v4536 = vunpack.c.l.b16 %v4455
        %v4537 = vpack.c.b16 %v4532, %v4532
        %v4538 = vpack.c.b16 %v4533, %v4533
        %v4539 = vpack.c.b16 %v4534, %v4534
        %v4540 = vpack.c.b16 %v4535, %v4535
        %v4541 = vpack.c.b16 %v4536, %v4536
        %v4618 = vunpack.c.l.b16 %v4457
        %v4619 = vunpack.c.l.b16 %v4458
        %v4620 = vunpack.c.l.b16 %v4459
        %v4621 = vunpack.c.l.b16 %v4460
        %v4622 = vunpack.c.l.b16 %v4461
        %v4623 = vunpack.c.l.b16 %v4462
        %v4624 = vunpack.c.l.b16 %v4463
        %v4625 = vunpack.c.l.b16 %v4464
        %v4626 = vunpack.c.l.b16 %v4465
        %v4627 = vunpack.c.l.b16 %v4466
        %v4628 = vunpack.c.l.b16 %v4467
        %v4629 = vunpack.c.l.b16 %v4468
        %v4630 = vunpack.c.l.b16 %v4469
        %v4631 = vunpack.c.l.b16 %v4470
        %v4632 = vunpack.c.l.b16 %v4471
        %v4633 = vunpack.c.l.b16 %v4472
        %v4634 = vunpack.c.l.b16 %v4473
        %v4635 = vunpack.c.l.b16 %v4474
        %v4636 = vunpack.c.l.b16 %v4475
        %v4637 = vunpack.c.l.b16 %v4476
        %v4638 = vunpack.c.l.b16 %v4477
        %v4639 = vunpack.c.l.b16 %v4478
        %v4640 = vunpack.c.l.b16 %v4479
        %v4641 = vunpack.c.l.b16 %v4480
        %v4642 = vunpack.c.l.b16 %v4481
        %v4643 = vunpack.c.l.b16 %v4482
        %v4644 = vunpack.c.l.b16 %v4483
        %v4645 = vunpack.c.l.b16 %v4484
        %v4646 = vunpack.c.l.b16 %v4485
        %v4647 = vunpack.c.l.b16 %v4486
        %v4648 = vunpack.c.l.b16 %v4487
        %v4649 = vunpack.c.l.b16 %v4488
        %v4650 = vunpack.c.l.b16 %v4489
        %v4651 = vunpack.c.l.b16 %v4490
        %v4652 = vunpack.c.l.b16 %v4491
        %v4653 = vunpack.c.l.b16 %v4492
        %v4654 = vunpack.c.l.b16 %v4493
        %v4655 = vunpack.c.l.b16 %v4494
        %v4656 = vunpack.c.l.b16 %v4495
        %v4657 = vunpack.c.l.b16 %v4496
        %v4658 = vunpack.c.l.b16 %v4497
        %v4659 = vunpack.c.l.b16 %v4498
        %v4660 = vunpack.c.l.b16 %v4499
        %v4661 = vunpack.c.l.b16 %v4500
        %v4662 = vunpack.c.l.b16 %v4501
        %v4663 = vunpack.c.l.b16 %v4502
        %v4664 = vunpack.c.l.b16 %v4503
        %v4665 = vunpack.c.l.b16 %v4504
        %v4666 = vunpack.c.l.b16 %v4505
        %v4667 = vunpack.c.l.b16 %v4506
        %v4668 = vunpack.c.l.b16 %v4507
        %v4669 = vunpack.c.l.b16 %v4508
        %v4670 = vunpack.c.l.b16 %v4509
        %v4671 = vunpack.c.l.b16 %v4510
        %v4672 = vunpack.c.l.b16 %v4511
        %v4673 = vunpack.c.l.b16 %v4512
        %v4674 = vunpack.c.l.b16 %v4513
        %v4675 = vunpack.c.l.b16 %v4514
        %v4676 = vunpack.c.l.b16 %v4515
        %v4677 = vunpack.c.l.b16 %v4516
        %v4678 = vunpack.c.l.b16 %v4517
        %v4679 = vunpack.c.l.b16 %v4518
        %v4680 = vunpack.c.l.b16 %v4519
        %v4681 = vunpack.c.l.b16 %v4520
        %v4682 = vunpack.c.l.b16 %v4521
        %v4683 = vunpack.c.l.b16 %v4522
        %v4684 = vunpack.c.l.b16 %v4523
        %v4685 = vunpack.c.l.b16 %v4524
        %v4686 = vunpack.c.l.b16 %v4525
        %v4687 = vunpack.c.l.b16 %v4526
        %v4688 = vunpack.c.l.b16 %v4527
        %v4689 = vunpack.c.l.b16 %v4528
        %v4690 = vpack.c.b16 %v4619, %v4618
        %v4691 = vpack.c.b16 %v4621, %v4620
        %v4692 = vpack.c.b16 %v4623, %v4622
        %v4693 = vpack.c.b16 %v4625, %v4624
        %v4694 = vpack.c.b16 %v4627, %v4626
        %v4695 = vpack.c.b16 %v4629, %v4628
        %v4696 = vpack.c.b16 %v4631, %v4630
        %v4697 = vpack.c.b16 %v4633, %v4632
        %v4698 = vpack.c.b16 %v4635, %v4634
        %v4699 = vpack.c.b16 %v4637, %v4636
        %v4700 = vpack.c.b16 %v4639, %v4638
        %v4701 = vpack.c.b16 %v4641, %v4640
        %v4702 = vpack.c.b16 %v4643, %v4642
        %v4703 = vpack.c.b16 %v4645, %v4644
        %v4704 = vpack.c.b16 %v4647, %v4646
        %v4705 = vpack.c.b16 %v4649, %v4648
        %v4706 = vpack.c.b16 %v4651, %v4650
        %v4707 = vpack.c.b16 %v4653, %v4652
        %v4708 = vpack.c.b16 %v4655, %v4654
        %v4709 = vpack.c.b16 %v4657, %v4656
        %v4710 = vpack.c.b16 %v4659, %v4658
        %v4711 = vpack.c.b16 %v4661, %v4660
        %v4712 = vpack.c.b16 %v4663, %v4662
        %v4713 = vpack.c.b16 %v4665, %v4664
        %v4714 = vpack.c.b16 %v4667, %v4666
        %v4715 = vpack.c.b16 %v4669, %v4668
        %v4716 = vpack.c.b16 %v4671, %v4670
        %v4717 = vpack.c.b16 %v4673, %v4672
        %v4718 = vpack.c.b16 %v4675, %v4674
        %v4719 = vpack.c.b16 %v4677, %v4676
        %v4720 = vpack.c.b16 %v4679, %v4678
        %v4721 = vpack.c.b16 %v4681, %v4680
        %v4722 = vpack.c.b16 %v4683, %v4682
        %v4723 = vpack.c.b16 %v4685, %v4684
        %v4724 = vpack.c.b16 %v4687, %v4686
        %v4725 = vpack.c.b16 %v4689, %v4688
        %v4763 = vsel %vm1479, %v4541, 0
        %4765 = vmatpush.bf16.msra.mxu0 %v4697
        %4766 = vmatpush.bf16.msra.mxu0 %v4696
        %4767 = vmatpush.bf16.msra.mxu0 %v4695
        %4768 = vmatpush.bf16.msra.mxu0 %v4694
        %4769 = vmatpush.bf16.msra.mxu0 %v4693
        %4770 = vmatpush.bf16.msra.mxu0 %v4692
        %4771 = vmatpush.bf16.msra.mxu0 %v4691
        %4772 = vmatpush.bf16.msra.mxu0 %v4690
        %4773 = vmatmul.bf16.gmra.mxu0 %v4537
        %v4774 = vpop.f32.mrf.mxu0
        %v4775 = vadd.f32 0.0, %v4774
        %v4776 = vpop.f32.mrf.mxu0
        %4777 = vdwg.mxu0
        %4778 = vmatpush.bf16.msra.mxu0 %v4705
        %4779 = vmatpush.bf16.msra.mxu0 %v4704
        %4780 = vmatpush.bf16.msra.mxu0 %v4703
        %4781 = vmatpush.bf16.msra.mxu0 %v4702
        %4782 = vmatpush.bf16.msra.mxu0 %v4701
        %4783 = vmatpush.bf16.msra.mxu0 %v4700
        %4784 = vmatpush.bf16.msra.mxu0 %v4699
        %4785 = vmatpush.bf16.msra.mxu0 %v4698
        %4786 = vmatmul.bf16.gmra.mxu0 %v4538
        %v4787 = vpop.f32.mrf.mxu0
        %v4788 = vadd.f32 %v4775, %v4787
        %v4789 = vpop.f32.mrf.mxu0
        %4790 = vdwg.mxu0
        %4791 = vmatpush.bf16.msra.mxu0 %v4713
        %4792 = vmatpush.bf16.msra.mxu0 %v4712
        %4793 = vmatpush.bf16.msra.mxu0 %v4711
        %4794 = vmatpush.bf16.msra.mxu0 %v4710
        %4795 = vmatpush.bf16.msra.mxu0 %v4709
        %4796 = vmatpush.bf16.msra.mxu0 %v4708
        %4797 = vmatpush.bf16.msra.mxu0 %v4707
        %4798 = vmatpush.bf16.msra.mxu0 %v4706
        %4799 = vmatmul.bf16.gmra.mxu0 %v4539
        %v4800 = vpop.f32.mrf.mxu0
        %v4801 = vadd.f32 %v4788, %v4800
        %v4802 = vpop.f32.mrf.mxu0
        %4803 = vdwg.mxu0
        %4804 = vmatpush.bf16.msra.mxu0 %v4721
        %4805 = vmatpush.bf16.msra.mxu0 %v4720
        %4806 = vmatpush.bf16.msra.mxu0 %v4719
        %4807 = vmatpush.bf16.msra.mxu0 %v4718
        %4808 = vmatpush.bf16.msra.mxu0 %v4717
        %4809 = vmatpush.bf16.msra.mxu0 %v4716
        %4810 = vmatpush.bf16.msra.mxu0 %v4715
        %4811 = vmatpush.bf16.msra.mxu0 %v4714
        %4812 = vmatmul.bf16.gmra.mxu0 %v4540
        %v4813 = vpop.f32.mrf.mxu0
        %v4814 = vadd.f32 %v4801, %v4813
        %v4815 = vpop.f32.mrf.mxu0
        %4816 = vdwg.mxu0
        %4817 = vmatpush.bf16.msra.mxu0 0
        %4818 = vmatpush.bf16.msra.mxu0 0
        %4819 = vmatpush.bf16.msra.mxu0 0
        %4820 = vmatpush.bf16.msra.mxu0 0
        %4821 = vmatpush.bf16.msra.mxu0 %v4725
        %4822 = vmatpush.bf16.msra.mxu0 %v4724
        %4823 = vmatpush.bf16.msra.mxu0 %v4723
        %4824 = vmatpush.bf16.msra.mxu0 %v4722
        %4825 = vmatmul.bf16.gmra.mxu0 %v4763
        %v4826 = vpop.f32.mrf.mxu0
        %v4827 = vadd.f32 %v4814, %v4826
        %v4828 = vpop.f32.mrf.mxu0
        %4829 = vdwg.mxu0
        %v4830 = vadd.f32 %v4447, %v4827
        %s4831 = scalar_lea.vmem %s3, 2592
        %v4832 = vld [vmem:[%s4831] sm:$0xf]
        %v4833 = vld [vmem:[%s4831 + $0x4] sm:$0xf]
        %v4834 = vld [vmem:[%s4831 + $0x8] sm:$0xf]
        %v4835 = vld [vmem:[%s4831 + $0xc] sm:$0xf]
        %v4836 = vld [vmem:[%s4831 + $0x10] sm:$0xf]
        %v4837 = vld [vmem:[%s4831 + $0x14] sm:$0xf]
        %v4838 = vld [vmem:[%s4831 + $0x18] sm:$0xf]
        %v4839 = vld [vmem:[%s4831 + $0x1c] sm:$0xf]
        %v4840 = vld [vmem:[%s4831 + $0x20] sm:$0xf]
        %v4841 = vld [vmem:[%s4831 + $0x24] sm:$0xf]
        %v4842 = vld [vmem:[%s4831 + $0x28] sm:$0xf]
        %v4843 = vld [vmem:[%s4831 + $0x2c] sm:$0xf]
        %v4844 = vld [vmem:[%s4831 + $0x30] sm:$0xf]
        %v4845 = vld [vmem:[%s4831 + $0x34] sm:$0xf]
        %v4846 = vld [vmem:[%s4831 + $0x38] sm:$0xf]
        %v4847 = vld [vmem:[%s4831 + $0x3c] sm:$0xf]
        %v4848 = vld [vmem:[%s4831 + $0x40] sm:$0xf]
        %v4849 = vld [vmem:[%s4831 + $0x44] sm:$0xf]
        %v4850 = vld [vmem:[%s4831 + $0x48] sm:$0xf]
        %v4851 = vld [vmem:[%s4831 + $0x4c] sm:$0xf]
        %v4852 = vld [vmem:[%s4831 + $0x50] sm:$0xf]
        %v4853 = vld [vmem:[%s4831 + $0x54] sm:$0xf]
        %v4854 = vld [vmem:[%s4831 + $0x58] sm:$0xf]
        %v4855 = vld [vmem:[%s4831 + $0x5c] sm:$0xf]
        %v4856 = vld [vmem:[%s4831 + $0x60] sm:$0xf]
        %v4857 = vld [vmem:[%s4831 + $0x64] sm:$0xf]
        %v4858 = vld [vmem:[%s4831 + $0x68] sm:$0xf]
        %v4859 = vld [vmem:[%s4831 + $0x6c] sm:$0xf]
        %v4860 = vld [vmem:[%s4831 + $0x70] sm:$0xf]
        %v4861 = vld [vmem:[%s4831 + $0x74] sm:$0xf]
        %v4862 = vld [vmem:[%s4831 + $0x78] sm:$0xf]
        %v4863 = vld [vmem:[%s4831 + $0x7c] sm:$0xf]
        %v4864 = vld [vmem:[%s4831 + $0x80] sm:$0xf]
        %v4865 = vld [vmem:[%s4831 + $0x84] sm:$0xf]
        %v4866 = vld [vmem:[%s4831 + $0x88] sm:$0xf]
        %v4867 = vld [vmem:[%s4831 + $0x8c] sm:$0xf]
        %v4868 = vld [vmem:[%s4831 + $0x90] sm:$0xf]
        %v4869 = vld [vmem:[%s4831 + $0x94] sm:$0xf]
        %v4870 = vld [vmem:[%s4831 + $0x98] sm:$0xf]
        %v4871 = vld [vmem:[%s4831 + $0x9c] sm:$0xf]
        %v4872 = vld [vmem:[%s4831 + $0xa0] sm:$0xf]
        %v4873 = vld [vmem:[%s4831 + $0xa4] sm:$0xf]
        %v4874 = vld [vmem:[%s4831 + $0xa8] sm:$0xf]
        %v4875 = vld [vmem:[%s4831 + $0xac] sm:$0xf]
        %v4876 = vld [vmem:[%s4831 + $0xb0] sm:$0xf]
        %v4877 = vld [vmem:[%s4831 + $0xb4] sm:$0xf]
        %v4878 = vld [vmem:[%s4831 + $0xb8] sm:$0xf]
        %v4879 = vld [vmem:[%s4831 + $0xbc] sm:$0xf]
        %v4880 = vld [vmem:[%s4831 + $0xc0] sm:$0xf]
        %v4881 = vld [vmem:[%s4831 + $0xc4] sm:$0xf]
        %v4882 = vld [vmem:[%s4831 + $0xc8] sm:$0xf]
        %v4883 = vld [vmem:[%s4831 + $0xcc] sm:$0xf]
        %v4884 = vld [vmem:[%s4831 + $0xd0] sm:$0xf]
        %v4885 = vld [vmem:[%s4831 + $0xd4] sm:$0xf]
        %v4886 = vld [vmem:[%s4831 + $0xd8] sm:$0xf]
        %v4887 = vld [vmem:[%s4831 + $0xdc] sm:$0xf]
        %v4888 = vld [vmem:[%s4831 + $0xe0] sm:$0xf]
        %v4889 = vld [vmem:[%s4831 + $0xe4] sm:$0xf]
        %v4890 = vld [vmem:[%s4831 + $0xe8] sm:$0xf]
        %v4891 = vld [vmem:[%s4831 + $0xec] sm:$0xf]
        %v4892 = vld [vmem:[%s4831 + $0xf0] sm:$0xf]
        %v4893 = vld [vmem:[%s4831 + $0xf4] sm:$0xf]
        %v4894 = vld [vmem:[%s4831 + $0xf8] sm:$0xf]
        %v4895 = vld [vmem:[%s4831 + $0xfc] sm:$0xf]
        %v4896 = vld [vmem:[%s4831 + $0x100] sm:$0xf]
        %v4897 = vld [vmem:[%s4831 + $0x104] sm:$0xf]
        %v4898 = vld [vmem:[%s4831 + $0x108] sm:$0xf]
        %v4899 = vld [vmem:[%s4831 + $0x10c] sm:$0xf]
        %v4900 = vld [vmem:[%s4831 + $0x110] sm:$0xf]
        %v4901 = vld [vmem:[%s4831 + $0x114] sm:$0xf]
        %v4902 = vld [vmem:[%s4831 + $0x118] sm:$0xf]
        %v4903 = vld [vmem:[%s4831 + $0x11c] sm:$0xf]
        %v4905 = vshrl.u32 %v4537, 16
        %v4908 = vshrl.u32 %v4538, 16
        %v4911 = vshrl.u32 %v4539, 16
        %v4914 = vshrl.u32 %v4540, 16
        %v4916 = vshrl.u32 %v4541, 16
        %v4994 = vunpack.c.l.b16 %v4832
        %v4995 = vunpack.c.l.b16 %v4833
        %v4996 = vunpack.c.l.b16 %v4834
        %v4997 = vunpack.c.l.b16 %v4835
        %v4998 = vunpack.c.l.b16 %v4836
        %v4999 = vunpack.c.l.b16 %v4837
        %v5000 = vunpack.c.l.b16 %v4838
        %v5001 = vunpack.c.l.b16 %v4839
        %v5002 = vunpack.c.l.b16 %v4840
        %v5003 = vunpack.c.l.b16 %v4841
        %v5004 = vunpack.c.l.b16 %v4842
        %v5005 = vunpack.c.l.b16 %v4843
        %v5006 = vunpack.c.l.b16 %v4844
        %v5007 = vunpack.c.l.b16 %v4845
        %v5008 = vunpack.c.l.b16 %v4846
        %v5009 = vunpack.c.l.b16 %v4847
        %v5010 = vunpack.c.l.b16 %v4848
        %v5011 = vunpack.c.l.b16 %v4849
        %v5012 = vunpack.c.l.b16 %v4850
        %v5013 = vunpack.c.l.b16 %v4851
        %v5014 = vunpack.c.l.b16 %v4852
        %v5015 = vunpack.c.l.b16 %v4853
        %v5016 = vunpack.c.l.b16 %v4854
        %v5017 = vunpack.c.l.b16 %v4855
        %v5018 = vunpack.c.l.b16 %v4856
        %v5019 = vunpack.c.l.b16 %v4857
        %v5020 = vunpack.c.l.b16 %v4858
        %v5021 = vunpack.c.l.b16 %v4859
        %v5022 = vunpack.c.l.b16 %v4860
        %v5023 = vunpack.c.l.b16 %v4861
        %v5024 = vunpack.c.l.b16 %v4862
        %v5025 = vunpack.c.l.b16 %v4863
        %v5026 = vunpack.c.l.b16 %v4864
        %v5027 = vunpack.c.l.b16 %v4865
        %v5028 = vunpack.c.l.b16 %v4866
        %v5029 = vunpack.c.l.b16 %v4867
        %v5030 = vunpack.c.l.b16 %v4868
        %v5031 = vunpack.c.l.b16 %v4869
        %v5032 = vunpack.c.l.b16 %v4870
        %v5033 = vunpack.c.l.b16 %v4871
        %v5034 = vunpack.c.l.b16 %v4872
        %v5035 = vunpack.c.l.b16 %v4873
        %v5036 = vunpack.c.l.b16 %v4874
        %v5037 = vunpack.c.l.b16 %v4875
        %v5038 = vunpack.c.l.b16 %v4876
        %v5039 = vunpack.c.l.b16 %v4877
        %v5040 = vunpack.c.l.b16 %v4878
        %v5041 = vunpack.c.l.b16 %v4879
        %v5042 = vunpack.c.l.b16 %v4880
        %v5043 = vunpack.c.l.b16 %v4881
        %v5044 = vunpack.c.l.b16 %v4882
        %v5045 = vunpack.c.l.b16 %v4883
        %v5046 = vunpack.c.l.b16 %v4884
        %v5047 = vunpack.c.l.b16 %v4885
        %v5048 = vunpack.c.l.b16 %v4886
        %v5049 = vunpack.c.l.b16 %v4887
        %v5050 = vunpack.c.l.b16 %v4888
        %v5051 = vunpack.c.l.b16 %v4889
        %v5052 = vunpack.c.l.b16 %v4890
        %v5053 = vunpack.c.l.b16 %v4891
        %v5054 = vunpack.c.l.b16 %v4892
        %v5055 = vunpack.c.l.b16 %v4893
        %v5056 = vunpack.c.l.b16 %v4894
        %v5057 = vunpack.c.l.b16 %v4895
        %v5058 = vunpack.c.l.b16 %v4896
        %v5059 = vunpack.c.l.b16 %v4897
        %v5060 = vunpack.c.l.b16 %v4898
        %v5061 = vunpack.c.l.b16 %v4899
        %v5062 = vunpack.c.l.b16 %v4900
        %v5063 = vunpack.c.l.b16 %v4901
        %v5064 = vunpack.c.l.b16 %v4902
        %v5065 = vunpack.c.l.b16 %v4903
        %v5066 = vpack.c.b16 %v4995, %v4994
        %v5067 = vpack.c.b16 %v4997, %v4996
        %v5068 = vpack.c.b16 %v4999, %v4998
        %v5069 = vpack.c.b16 %v5001, %v5000
        %v5070 = vpack.c.b16 %v5003, %v5002
        %v5071 = vpack.c.b16 %v5005, %v5004
        %v5072 = vpack.c.b16 %v5007, %v5006
        %v5073 = vpack.c.b16 %v5009, %v5008
        %v5074 = vpack.c.b16 %v5011, %v5010
        %v5075 = vpack.c.b16 %v5013, %v5012
        %v5076 = vpack.c.b16 %v5015, %v5014
        %v5077 = vpack.c.b16 %v5017, %v5016
        %v5078 = vpack.c.b16 %v5019, %v5018
        %v5079 = vpack.c.b16 %v5021, %v5020
        %v5080 = vpack.c.b16 %v5023, %v5022
        %v5081 = vpack.c.b16 %v5025, %v5024
        %v5082 = vpack.c.b16 %v5027, %v5026
        %v5083 = vpack.c.b16 %v5029, %v5028
        %v5084 = vpack.c.b16 %v5031, %v5030
        %v5085 = vpack.c.b16 %v5033, %v5032
        %v5086 = vpack.c.b16 %v5035, %v5034
        %v5087 = vpack.c.b16 %v5037, %v5036
        %v5088 = vpack.c.b16 %v5039, %v5038
        %v5089 = vpack.c.b16 %v5041, %v5040
        %v5090 = vpack.c.b16 %v5043, %v5042
        %v5091 = vpack.c.b16 %v5045, %v5044
        %v5092 = vpack.c.b16 %v5047, %v5046
        %v5093 = vpack.c.b16 %v5049, %v5048
        %v5094 = vpack.c.b16 %v5051, %v5050
        %v5095 = vpack.c.b16 %v5053, %v5052
        %v5096 = vpack.c.b16 %v5055, %v5054
        %v5097 = vpack.c.b16 %v5057, %v5056
        %v5098 = vpack.c.b16 %v5059, %v5058
        %v5099 = vpack.c.b16 %v5061, %v5060
        %v5100 = vpack.c.b16 %v5063, %v5062
        %v5101 = vpack.c.b16 %v5065, %v5064
        %v5139 = vsel %vm1479, %v4916, 0
        %5141 = vmatpush.bf16.msra.mxu0 %v5073
        %5142 = vmatpush.bf16.msra.mxu0 %v5072
        %5143 = vmatpush.bf16.msra.mxu0 %v5071
        %5144 = vmatpush.bf16.msra.mxu0 %v5070
        %5145 = vmatpush.bf16.msra.mxu0 %v5069
        %5146 = vmatpush.bf16.msra.mxu0 %v5068
        %5147 = vmatpush.bf16.msra.mxu0 %v5067
        %5148 = vmatpush.bf16.msra.mxu0 %v5066
        %5149 = vmatmul.bf16.gmra.mxu0 %v4905
        %v5150 = vpop.f32.mrf.mxu0
        %v5151 = vadd.f32 0.0, %v5150
        %v5152 = vpop.f32.mrf.mxu0
        %5153 = vdwg.mxu0
        %5154 = vmatpush.bf16.msra.mxu0 %v5081
        %5155 = vmatpush.bf16.msra.mxu0 %v5080
        %5156 = vmatpush.bf16.msra.mxu0 %v5079
        %5157 = vmatpush.bf16.msra.mxu0 %v5078
        %5158 = vmatpush.bf16.msra.mxu0 %v5077
        %5159 = vmatpush.bf16.msra.mxu0 %v5076
        %5160 = vmatpush.bf16.msra.mxu0 %v5075
        %5161 = vmatpush.bf16.msra.mxu0 %v5074
        %5162 = vmatmul.bf16.gmra.mxu0 %v4908
        %v5163 = vpop.f32.mrf.mxu0
        %v5164 = vadd.f32 %v5151, %v5163
        %v5165 = vpop.f32.mrf.mxu0
        %5166 = vdwg.mxu0
        %5167 = vmatpush.bf16.msra.mxu0 %v5089
        %5168 = vmatpush.bf16.msra.mxu0 %v5088
        %5169 = vmatpush.bf16.msra.mxu0 %v5087
        %5170 = vmatpush.bf16.msra.mxu0 %v5086
        %5171 = vmatpush.bf16.msra.mxu0 %v5085
        %5172 = vmatpush.bf16.msra.mxu0 %v5084
        %5173 = vmatpush.bf16.msra.mxu0 %v5083
        %5174 = vmatpush.bf16.msra.mxu0 %v5082
        %5175 = vmatmul.bf16.gmra.mxu0 %v4911
        %v5176 = vpop.f32.mrf.mxu0
        %v5177 = vadd.f32 %v5164, %v5176
        %v5178 = vpop.f32.mrf.mxu0
        %5179 = vdwg.mxu0
        %5180 = vmatpush.bf16.msra.mxu0 %v5097
        %5181 = vmatpush.bf16.msra.mxu0 %v5096
        %5182 = vmatpush.bf16.msra.mxu0 %v5095
        %5183 = vmatpush.bf16.msra.mxu0 %v5094
        %5184 = vmatpush.bf16.msra.mxu0 %v5093
        %5185 = vmatpush.bf16.msra.mxu0 %v5092
        %5186 = vmatpush.bf16.msra.mxu0 %v5091
        %5187 = vmatpush.bf16.msra.mxu0 %v5090
        %5188 = vmatmul.bf16.gmra.mxu0 %v4914
        %v5189 = vpop.f32.mrf.mxu0
        %v5190 = vadd.f32 %v5177, %v5189
        %v5191 = vpop.f32.mrf.mxu0
        %5192 = vdwg.mxu0
        %5193 = vmatpush.bf16.msra.mxu0 0
        %5194 = vmatpush.bf16.msra.mxu0 0
        %5195 = vmatpush.bf16.msra.mxu0 0
        %5196 = vmatpush.bf16.msra.mxu0 0
        %5197 = vmatpush.bf16.msra.mxu0 %v5101
        %5198 = vmatpush.bf16.msra.mxu0 %v5100
        %5199 = vmatpush.bf16.msra.mxu0 %v5099
        %5200 = vmatpush.bf16.msra.mxu0 %v5098
        %5201 = vmatmul.bf16.gmra.mxu0 %v5139
        %v5202 = vpop.f32.mrf.mxu0
        %v5203 = vadd.f32 %v5190, %v5202
        %v5204 = vpop.f32.mrf.mxu0
        %5205 = vdwg.mxu0
        %v5206 = vadd.f32 %v4830, %v5203
        %v5207 = vmax.f32 %v5206, 0.0
        %v5208 = vld [vmem:[%s5] sm:$0xff]
        %v5209 = vld [vmem:[%s5 + $0x8] sm:$0xff]
        %v5210 = vld [vmem:[%s5 + $0x10] sm:$0xff]
        %v5211 = vld [vmem:[%s5 + $0x18] sm:$0xff]
        %v5212 = vld [vmem:[%s5 + $0x20] sm:$0xff]
        %v5213 = vld [vmem:[%s5 + $0x28] sm:$0xff]
        %v5214 = vld [vmem:[%s5 + $0x30] sm:$0xff]
        %v5215 = vld [vmem:[%s5 + $0x38] sm:$0xff]
        %v5216 = vld [vmem:[%s5 + $0x40] sm:$0xff]
        %v5217 = vld [vmem:[%s5 + $0x48] sm:$0xff]
        %v5218 = vld [vmem:[%s5 + $0x50] sm:$0xff]
        %v5219 = vld [vmem:[%s5 + $0x58] sm:$0xff]
        %v5220 = vld [vmem:[%s5 + $0x60] sm:$0xff]
        %v5221 = vld [vmem:[%s5 + $0x68] sm:$0xff]
        %v5222 = vld [vmem:[%s5 + $0x70] sm:$0xff]
        %v5223 = vld [vmem:[%s5 + $0x78] sm:$0xff]
        %v5224 = vld [vmem:[%s6] sm:$0x1]
        %5225 = vmatpush.msra.mxu0 %v5223
        %5226 = vmatpush.msra.mxu0 %v5222
        %5227 = vmatpush.msra.mxu0 %v5221
        %5228 = vmatpush.msra.mxu0 %v5220
        %5229 = vmatpush.msra.mxu0 %v5219
        %5230 = vmatpush.msra.mxu0 %v5218
        %5231 = vmatpush.msra.mxu0 %v5217
        %5232 = vmatpush.msra.mxu0 %v5216
        %5233 = vmatpush.msra.mxu0 %v5215
        %5234 = vmatpush.msra.mxu0 %v5214
        %5235 = vmatpush.msra.mxu0 %v5213
        %5236 = vmatpush.msra.mxu0 %v5212
        %5237 = vmatpush.msra.mxu0 %v5211
        %5238 = vmatpush.msra.mxu0 %v5210
        %5239 = vmatpush.msra.mxu0 %v5209
        %5240 = vmatpush.msra.mxu0 %v5208
        %5241 = vmatmul.f32.gmra.mxu0 %v5207
        %v5242 = vpop.f32.mrf.mxu0
        %v5243 = vadd.f32 %v5224, %v5242
        %5244 = vdwg.mxu0
        %vm5245 = vcmask 73728
        %5246 = vst.msk [vmem:[%s305] sm:$0x1] %vm5245, %v5243
        %p5247 = scmp.lt.s32.totalorder %s23, 1
        %s5248 = scalar_select %p5247, %s23, 1
        %s5249 = smul.addr %s5248, 10
        %s5250 = smul.addr %s5249, 8
        %s5251 = scalar_lea.vmem %s7, %s5250
        %s5252 = sand.u32 %s209, 1
        %s5253 = scalar_lea.sflag [#allocation3], %s5252
        %s5254 = sand.u32 %s209, 1
        %s5255 = scalar_lea.vmem [#allocation2], %s5254
        // Predicated region
        $region49: #{mnist_net_forward.1} parent=47 // pred_check
          %p5256 = pneg %p193
        $region50: #{mnist_net_forward.1} parent=47 // pred_check_branch
          %5258 = sbr.rel (%p5256) target = $region52
        $region51: #{mnist_net_forward.1} parent=47 // pred_region
          _
        $region52: #{mnist_net_forward.1} parent=47 // pred_fallthru
          _
        // Predicated region
        $region53: #{mnist_net_forward.1} parent=47 // pred_check
          %p5259 = pneg %p219
        $region54: #{mnist_net_forward.1} parent=47 // pred_check_branch
          %5261 = sbr.rel (%p5259) target = $region56
        $region55: #{mnist_net_forward.1} parent=47 // pred_region
          %5263 = vsyncadd %s5253, 0
          %s5264 = scalar_lea.hbm %s8, %s23
          %s5266 = sshll.u32 %s5255, 4
          %s5267 = int_to_ptr.vmem [resolvable:$true] %s5266
          %s5268 = sshll.u32 %s5264, 4
          %s5269 = int_to_ptr.hbm [resolvable:$true] %s5268
          %5271 = dma.vmem_to_hbm [thread:$0]  %s5267, 16, %s5269, %s5253
        $region56: #{mnist_net_forward.1} parent=47 // pred_fallthru
          _
      $region48: #{mnist_net_forward.1} parent=5 // pred_fallthru
        _
      %p5272 = scmp.le.s32.totalorder 2, %s18
      // Predicated region
      $region57: #{mnist_net_forward.1} parent=5 // pred_check
        %p5273 = pneg %p5272
      $region58: #{mnist_net_forward.1} parent=5 // pred_check_branch
        %5275 = sbr.rel (%p5273) target = $region60
      $region59: #{mnist_net_forward.1} parent=5 // pred_region
        %s5276 = ssub.s32 %s18, 2
        // Predicated region
        $region61: #{mnist_net_forward.1} parent=59 // pred_check
          %p5277 = pneg %p199
        $region62: #{mnist_net_forward.1} parent=59 // pred_check_branch
          %5279 = sbr.rel (%p5277) target = $region64
        $region63: #{mnist_net_forward.1} parent=59 // pred_region
          %p5280 = scmp.lt.s32.totalorder %s24, 1
          %s5281 = scalar_select %p5280, %s24, 1
          %s5282 = smul.addr %s5281, 10
          %s5283 = smul.addr %s5282, 8
          %s5284 = scalar_lea.vmem %s7, %s5283
        $region64: #{mnist_net_forward.1} parent=59 // pred_fallthru
          _
        // Predicated region
        $region65: #{mnist_net_forward.1} parent=59 // pred_check
          %p5285 = pneg %p225
        $region66: #{mnist_net_forward.1} parent=59 // pred_check_branch
          %5287 = sbr.rel (%p5285) target = $region68
        $region67: #{mnist_net_forward.1} parent=59 // pred_region
          %s5288 = sand.u32 %s210, 1
          %s5289 = scalar_lea.sflag [#allocation3], %s5288
          %s5290 = sand.u32 %s210, 1
          %s5291 = scalar_lea.vmem [#allocation2], %s5290
          %5293 = dma.done %s5289, 16
        $region68: #{mnist_net_forward.1} parent=59 // pred_fallthru
          _
      $region60: #{mnist_net_forward.1} parent=5 // pred_fallthru
        _
    $region6: #{mnist_net_forward.1} parent=1 // loop_footer
      %s22 = sadd.s32 1, %s18
    $region7: #{mnist_net_forward.1} parent=1 // loop_footer_branch
      %17 = sbr.rel target = $region3
    $region8: #{mnist_net_forward.1} parent=1 // loop_exit
      _
    %5294 = vsyncpa [#allocation3], 1
    %s5295 = scalar_lea.sflag [#allocation3], 1
    %5296 = vsyncpa %s5295, 1

</llo_original>
